<compile_context>
chip_gen: v6e
topology: v6e:2x2x1
jax: 0.10.0
libtpu: 0.0.40
codegen_flags: <defaults>
</compile_context>

<pallas_src>
import numpy as np
import jax
import jax.numpy as jnp
from jax import lax
from jax.experimental import pallas as pl
from jax.experimental.pallas import tpu as pltpu

# ----- small, deterministic synthetic config ---------------------------------
K_BANK = 4          # conv bank kernel sizes 1..K
C_IN   = 16         # in_channels (== proj_channels[-1] so the residual add works)
CH     = 32         # `channels` (highway size == GRU hidden size)
P1, P2 = 32, 16     # proj_channels
N_HW   = 2          # num_highways
B, L   = 2, 16      # batch, sequence length
H      = CH
BN_EPS = 1e-5

BP  = 8                      # batch rows padded to one sublane tile
LBP = L * BP
BANK_OFFS = (-2, -1, 0, 1)   # union of taps needed by kernel sizes 1..4 (pad=k//2)
PROJ_OFFS = (-1, 0, 1)       # k=3, pad=1

# column offsets inside consts row 2
_P1SC, _P1SH = 0, P1
_BFOLD = 2 * P1
_BHN   = 2 * P1 + CH


# ----- in-kernel helper -------------------------------------------------------
def _time_taps(xf, offsets):
    """xf: (L*BP, C) time-major flat slab (row = t*BP + b_pad).

    Returns (L*BP, len(offsets)*C): column block i holds x at time t+offsets[i]
    (zeros outside [0, L)).  Time shifts are sublane rotations on the XLU
    (pltpu.roll) with iota row-masking -- no padded buffer copies.
    """
    Lr, C = xf.shape
    rows = lax.broadcasted_iota(jnp.int32, (Lr, C), 0)
    cols = []
    for o in offsets:
        if o == 0:
            cols.append(xf)
            continue
        shifted = pltpu.roll(xf, shift=(-o * BP) % Lr, axis=0)   # out[r] = xf[r+o*BP]
        if o > 0:
            cols.append(jnp.where(rows < Lr - o * BP, shifted, 0.0))
        else:
            cols.append(jnp.where(rows >= -o * BP, shifted, 0.0))
    return jnp.concatenate(cols, axis=-1) if len(cols) > 1 else cols[0]


# ----- the fused CBHG kernel --------------------------------------------------
def cbhg_kernel(x_ref, bank_w_ref, p1w_ref, p2f_ref, prehw_ref, hw_w_ref,
                wih_ref, whh_ref, consts_ref, out_ref, gi_scr):
    f32 = jnp.float32
    x = x_ref[...].astype(f32)                       # (LBP, C_IN)
    consts = consts_ref[...]                         # (8, 6H)

    # residual -> pre_highway matmul issued early (hidden under the bank dot)
    res_pre = jnp.dot(x, prehw_ref[...], preferred_element_type=f32)   # (LBP, CH)

    # ---- conv1d bank (k=1..4): one im2col matmul + ReLU + folded BatchNorm ----
    xb = _time_taps(x, BANK_OFFS)                                      # (LBP, 4*C_IN)
    bank = jnp.dot(xb, bank_w_ref[...], preferred_element_type=f32)    # (LBP, 128)
    bank = (jnp.maximum(bank, 0.0) * consts[0:1, :K_BANK * CH]
            + consts[1:2, :K_BANK * CH])

    # ---- MaxPool1d(kernel=2, stride=1, padding=1)[..., :L] ----
    # out[t] = max(bank[t-1], bank[t]); out[0] = bank[0] (pad is -inf).
    rolled = pltpu.roll(bank, shift=BP, axis=0)
    rows = lax.broadcasted_iota(jnp.int32, bank.shape, 0)
    prev = jnp.where(rows < BP, bank, rolled)
    mp = jnp.maximum(prev, bank)                                       # (LBP, 128)

    # ---- projection conv 1 (k=3) as a single im2col matmul ----
    h1 = jnp.dot(_time_taps(mp, PROJ_OFFS), p1w_ref[...],
                 preferred_element_type=f32)                           # (LBP, P1)
    h1 = (jnp.maximum(h1, 0.0) * consts[2:3, _P1SC:_P1SC + P1]
          + consts[2:3, _P1SH:_P1SH + P1])

    # ---- projection conv 2 folded (host-side) through BN affine + residual +
    #      pre_highway:  hwx = taps(h1) @ W_fold + x @ prehw + b_fold ----
    hwx = (jnp.dot(_time_taps(h1, PROJ_OFFS), p2f_ref[...],
                   preferred_element_type=f32)
           + res_pre + consts[2:3, _BFOLD:_BFOLD + CH])                # (LBP, CH)

    # ---- highway stack: one (32,64) matmul per layer, lane-split x1/x2 ----
    for i in range(N_HW):
        hcat = (jnp.dot(hwx, hw_w_ref[i], preferred_element_type=f32)
                + consts[3:4, 2 * CH * i:2 * CH * (i + 1)])            # (LBP, 2CH)
        g = jax.nn.sigmoid(hcat[:, CH:2 * CH])
        hwx = g * jnp.maximum(hcat[:, 0:CH], 0.0) + (1.0 - g) * hwx

    # ---- GRU input gates for BOTH directions in one matmul ----
    # column layout [r_f, r_b, z_f, z_b, n_f, n_b]; b_hr/b_hz folded into bias.
    gi_scr[...] = (jnp.dot(hwx, wih_ref[...], preferred_element_type=f32)
                   + consts[4:5, :])                                   # (LBP, 6H)

    # ---- merged bidirectional recurrence: one (8,2H)x(2H,6H) MXU op / step ----
    whh = whh_ref[...]                                # block-diagonal (2H, 6H)
    bhn = consts[2:3, _BHN:_BHN + 2 * H]              # (1, 2H) = [bhn_f | bhn_b]
    fwd_mask = consts[5:6, :] > 0.5                   # fwd-gate lane selector (1, 6H)
    h = jnp.zeros((BP, 2 * H), f32)                   # [h_f | h_b]
    for i in range(L):
        f0 = i * BP                                   # forward time i
        b0 = (L - 1 - i) * BP                         # backward time L-1-i
        gi = jnp.where(fwd_mask, gi_scr[f0:f0 + BP, :], gi_scr[b0:b0 + BP, :])
        gh = jnp.dot(h, whh, preferred_element_type=f32)               # (BP, 6H)
        r = jax.nn.sigmoid(gi[:, 0:2 * H] + gh[:, 0:2 * H])
        z = jax.nn.sigmoid(gi[:, 2 * H:4 * H] + gh[:, 2 * H:4 * H])
        n = jnp.tanh(gi[:, 4 * H:6 * H] + r * (gh[:, 4 * H:6 * H] + bhn))
        h = (1.0 - z) * n + z * h
        # lanes 0:H = fwd output at time i, lanes H:2H = bwd output at time L-1-i
        out_ref[f0:f0 + BP, :] = h.astype(out_ref.dtype)


# ----- wrapper ----------------------------------------------------------------
def cbhg_forward(x_ncl, packed):
    """x_ncl: (B, C_IN, L) -- PyTorch NCW layout. Returns (B, L, 2*CH)."""
    # time-major, batch padded to BP sublane rows, flattened to (L*BP, C_IN)
    x_lbc = jnp.transpose(x_ncl, (2, 0, 1)).astype(jnp.float32)      # (L, B, C_IN)
    x_pad = jnp.zeros((L, BP, C_IN), jnp.float32).at[:, :B, :].set(x_lbc)
    x_flat = x_pad.reshape(LBP, C_IN)

    in_arrays = [
        x_flat,
        packed['bank_w'], packed['p1_w'], packed['p2f_w'], packed['prehw'],
        packed['hw_w'], packed['gru_wih'], packed['gru_whh'], packed['consts'],
    ]

    def full_spec(shape):
        zero = (0,) * len(shape)
        return pl.BlockSpec(shape, lambda i, _z=zero: _z)

    out = pl.pallas_call(
        cbhg_kernel,
        out_shape=jax.ShapeDtypeStruct((LBP, 2 * H), jnp.float32),
        grid=(1,),
        in_specs=[full_spec(a.shape) for a in in_arrays],
        out_specs=full_spec((LBP, 2 * H)),
        scratch_shapes=[
            pltpu.VMEM((LBP, 6 * H), jnp.float32),   # precomputed GRU input gates
        ],
        compiler_params=pltpu.CompilerParams(dimension_semantics=("arbitrary",)),
    )(*in_arrays)

    # (L, BP, 2H) -> drop batch padding; bwd half is step-ordered -> flip time
    o = out.reshape(L, BP, 2 * H)[:, :B, :]
    fwd = o[:, :, :H]           # (L, B, H), already time-ordered
    bwd = o[::-1, :, H:]        # (L, B, H), time-ordered after flip
    res = jnp.concatenate([fwd, bwd], axis=-1)       # (L, B, 2H)
    return jnp.transpose(res, (1, 0, 2))             # (B, L, 2H)


# ----- host-side packing of natural params into fused kernel arrays -----------
def pack_params(p):
    n_taps = len(BANK_OFFS)

    # conv bank: zero-padded packed weight (taps*C_IN, K_BANK*CH)
    bank_w = np.zeros((n_taps * C_IN, K_BANK * CH), np.float32)
    for idx in range(K_BANK):
        k = idx + 1
        pad = k // 2
        wk = np.asarray(p['bw'][idx])                        # (k, C_IN, CH)
        for j in range(k):
            tap = BANK_OFFS.index(j - pad)
            bank_w[tap * C_IN:(tap + 1) * C_IN, idx * CH:(idx + 1) * CH] = wk[j]

    # projection 1 as 2-D im2col weight (tap-major rows)
    p1_w = np.asarray(p['p1w']).reshape(3 * K_BANK * CH, P1)

    # projection 2 folded through its BN affine and pre_highway (all linear):
    #   y = (taps(h1)@p2_w)*sc + sh + x ; hwx = y @ prehw
    #   => hwx = taps(h1) @ ((p2_w*sc)@prehw) + x @ prehw + sh@prehw
    prehw = np.asarray(p['prehw'], np.float32)               # (P2, CH)
    p2sc = np.asarray(p['p2sc']).reshape(-1)
    p2sh = np.asarray(p['p2sh']).reshape(-1)
    p2_w = np.asarray(p['p2w']).reshape(3 * P1, P2)
    p2f_w = (p2_w * p2sc[None, :]) @ prehw                   # (3*P1, CH)
    b_fold = p2sh @ prehw                                    # (CH,)

    # highway: W1|W2 lane-packed per layer
    hw_w = np.zeros((N_HW, CH, 2 * CH), np.float32)
    hw_b = np.zeros((N_HW, 2 * CH), np.float32)
    for i in range(N_HW):
        hw_w[i, :, :CH] = np.asarray(p['hw_w1'][i])
        hw_w[i, :, CH:] = np.asarray(p['hw_w2'][i])
        hw_b[i, :CH] = np.asarray(p['hw_b1'][i]).reshape(-1)
        hw_b[i, CH:] = np.asarray(p['hw_b2'][i]).reshape(-1)

    # GRU packing, column layout [r_f, r_b, z_f, z_b, n_f, n_b]:
    #   input weight (CH, 6H) shared-LHS; recurrent weight (2H, 6H) block-diag
    #   over directions (rows 0:H act on h_f, rows H:2H on h_b).
    #   b_hr / b_hz folded into the input bias; b_hn kept separate (gated by r).
    gru_wih = np.zeros((CH, 6 * H), np.float32)
    gru_whh = np.zeros((2 * H, 6 * H), np.float32)
    gru_bih = np.zeros((6 * H,), np.float32)
    bhn_cat = np.zeros((2 * H,), np.float32)
    for d, tag in enumerate(('f', 'b')):
        wih = np.asarray(p[f'wih_{tag}'])                    # (CH, 3H)
        whh = np.asarray(p[f'whh_{tag}'])                    # (H, 3H)
        bih = np.asarray(p[f'bih_{tag}']).reshape(-1)
        bhh = np.asarray(p[f'bhh_{tag}']).reshape(-1)
        for g in range(3):                                   # gate order r, z, n
            col = g * 2 * H + d * H
            gru_wih[:, col:col + H] = wih[:, g * H:(g + 1) * H]
            gru_whh[d * H:(d + 1) * H, col:col + H] = whh[:, g * H:(g + 1) * H]
            bias = bih[g * H:(g + 1) * H].copy()
            if g < 2:
                bias = bias + bhh[g * H:(g + 1) * H]
            gru_bih[col:col + H] = bias
        bhn_cat[d * H:(d + 1) * H] = bhh[2 * H:3 * H]

    # all small affines / biases / masks in one (8, 6H) array
    consts = np.zeros((8, 6 * H), np.float32)
    consts[0, :K_BANK * CH] = np.asarray(p['bank_sc']).reshape(-1)
    consts[1, :K_BANK * CH] = np.asarray(p['bank_sh']).reshape(-1)
    consts[2, _P1SC:_P1SC + P1] = np.asarray(p['p1sc']).reshape(-1)
    consts[2, _P1SH:_P1SH + P1] = np.asarray(p['p1sh']).reshape(-1)
    consts[2, _BFOLD:_BFOLD + CH] = b_fold
    consts[2, _BHN:_BHN + 2 * H] = bhn_cat
    for i in range(N_HW):
        consts[3, 2 * CH * i:2 * CH * (i + 1)] = hw_b[i]
    consts[4, :] = gru_bih
    for g in range(3):
        consts[5, g * 2 * H:g * 2 * H + H] = 1.0             # fwd-gate lane mask

    packed = dict(bank_w=bank_w, p1_w=p1_w, p2f_w=p2f_w, prehw=prehw,
                  hw_w=hw_w, gru_wih=gru_wih, gru_whh=gru_whh, consts=consts)
    return {k: jnp.asarray(v, jnp.float32) for k, v in packed.items()}


# ----- deterministic synthetic parameters -------------------------------------
def make_params(key):
    keys = iter(jax.random.split(key, 64))

    def nrm(shape, scale):
        return scale * jax.random.normal(next(keys), shape, jnp.float32)

    def bn_fold(c):
        gamma = 1.0 + 0.1 * jax.random.normal(next(keys), (c,), jnp.float32)
        beta = 0.1 * jax.random.normal(next(keys), (c,), jnp.float32)
        mean = 0.1 * jax.random.normal(next(keys), (c,), jnp.float32)
        var = jnp.exp(0.2 * jax.random.normal(next(keys), (c,), jnp.float32))
        scale = gamma / jnp.sqrt(var + BN_EPS)
        shift = beta - mean * scale
        return scale, shift

    p = {}
    p['bw'] = [nrm((k, C_IN, CH), 0.2) for k in range(1, K_BANK + 1)]
    sc, sh = [], []
    for _ in range(K_BANK):
        s, b = bn_fold(CH)
        sc.append(s); sh.append(b)
    p['bank_sc'] = jnp.stack(sc)                    # (K_BANK, CH)
    p['bank_sh'] = jnp.stack(sh)
    p['p1w'] = nrm((3, K_BANK * CH, P1), 0.05)
    s, b = bn_fold(P1); p['p1sc'] = s[None, :]; p['p1sh'] = b[None, :]
    p['p2w'] = nrm((3, P1, P2), 0.1)
    s, b = bn_fold(P2); p['p2sc'] = s[None, :]; p['p2sh'] = b[None, :]
    p['prehw'] = nrm((P2, CH), 0.15)                # pre_highway (no bias)
    p['hw_w1'] = nrm((N_HW, CH, CH), 0.15)
    p['hw_b1'] = jnp.zeros((N_HW, 1, CH), jnp.float32)   # W1.bias.data.fill_(0.)
    p['hw_w2'] = nrm((N_HW, CH, CH), 0.15)
    p['hw_b2'] = nrm((N_HW, 1, CH), 0.1)
    for d in ('f', 'b'):                            # GRU forward / reverse dirs
        p[f'wih_{d}'] = nrm((CH, 3 * H), 0.1)       # gate order [r, z, n]
        p[f'whh_{d}'] = nrm((H, 3 * H), 0.1)
        p[f'bih_{d}'] = nrm((1, 3 * H), 0.1)
        p[f'bhh_{d}'] = nrm((1, 3 * H), 0.1)
    return p


# ----- plain-JAX reference (same math) for a correctness check -----------------
def reference_forward(x_ncl, p):
    x = jnp.transpose(x_ncl, (0, 2, 1)).astype(jnp.float32)    # (B, L, C_IN)

    def conv1d(v, w, pad):
        k = w.shape[0]
        P = max(pad, k - 1 - pad)
        vp = jnp.pad(v, ((0, 0), (P, P), (0, 0)))
        out = jnp.zeros((v.shape[0], v.shape[1], w.shape[2]), jnp.float32)
        for j in range(k):
            s = P - pad + j
            out = out + jnp.einsum('blc,cd->bld', vp[:, s:s + v.shape[1], :], w[j])
        return out

    parts = []
    for idx in range(K_BANK):
        k = idx + 1
        c = jnp.maximum(conv1d(x, p['bw'][idx], k // 2), 0.0)
        c = c * p['bank_sc'][idx] + p['bank_sh'][idx]
        parts.append(c)
    bank = jnp.concatenate(parts, axis=-1)
    prev = jnp.concatenate([bank[:, :1, :], bank[:, :-1, :]], axis=1)
    mp = jnp.maximum(prev, bank)
    h1 = jnp.maximum(conv1d(mp, p['p1w'], 1), 0.0) * p['p1sc'] + p['p1sh']
    h2 = conv1d(h1, p['p2w'], 1) * p['p2sc'] + p['p2sh']
    y = h2 + x
    hwx = jnp.einsum('blc,cd->bld', y, p['prehw'])
    for i in range(N_HW):
        x1 = jnp.einsum('blc,cd->bld', hwx, p['hw_w1'][i]) + p['hw_b1'][i]
        x2 = jnp.einsum('blc,cd->bld', hwx, p['hw_w2'][i]) + p['hw_b2'][i]
        g = jax.nn.sigmoid(x2)
        hwx = g * jnp.maximum(x1, 0.0) + (1.0 - g) * hwx

    def gru_dir(xs, wih, whh, bih, bhh, reverse):
        gi_all = jnp.einsum('blc,ch->blh', xs, wih) + bih
        h = jnp.zeros((xs.shape[0], H), jnp.float32)
        outs = [None] * L
        ts = range(L - 1, -1, -1) if reverse else range(L)
        for t in ts:
            gi = gi_all[:, t]
            gh = h @ whh + bhh
            r = jax.nn.sigmoid(gi[:, :H] + gh[:, :H])
            z = jax.nn.sigmoid(gi[:, H:2 * H] + gh[:, H:2 * H])
            n = jnp.tanh(gi[:, 2 * H:] + r * gh[:, 2 * H:])
            h = (1.0 - z) * n + z * h
            outs[t] = h
        return jnp.stack(outs, axis=1)

    fwd = gru_dir(hwx, p['wih_f'], p['whh_f'], p['bih_f'], p['bhh_f'], False)
    bwd = gru_dir(hwx, p['wih_b'], p['whh_b'], p['bih_b'], p['bhh_b'], True)
    return jnp.concatenate([fwd, bwd], axis=-1)


if __name__ == "__main__":
    key = jax.random.PRNGKey(0)
    kx, kp = jax.random.split(key)
    x = 0.5 * jax.random.normal(kx, (B, C_IN, L), jnp.float32)   # PyTorch NCW input
    params = make_params(kp)
    packed = pack_params(params)

    out = cbhg_forward(x, packed)
    out = jax.block_until_ready(out)

    assert out.shape == (B, L, 2 * H)
    assert bool(jnp.all(jnp.isfinite(out)))

    ref = reference_forward(x, params)
    np.testing.assert_allclose(np.asarray(out), np.asarray(ref),
                               rtol=2e-2, atol=2e-2)
    print("KERNEL_OK")
</pallas_src>

<mosaic_0001>
module attributes {stable_mosaic.version = 11 : i64} {
  func.func @cbhg_kernel(%arg0: i32, %arg1: memref<128x16xf32, #tpu.memory_space<vmem>>, %arg2: memref<64x128xf32, #tpu.memory_space<vmem>>, %arg3: memref<384x32xf32, #tpu.memory_space<vmem>>, %arg4: memref<96x32xf32, #tpu.memory_space<vmem>>, %arg5: memref<16x32xf32, #tpu.memory_space<vmem>>, %arg6: memref<2x32x64xf32, #tpu.memory_space<vmem>>, %arg7: memref<32x192xf32, #tpu.memory_space<vmem>>, %arg8: memref<64x192xf32, #tpu.memory_space<vmem>>, %arg9: memref<8x192xf32, #tpu.memory_space<vmem>>, %arg10: memref<128x64xf32, #tpu.memory_space<vmem>>, %arg11: memref<128x192xf32, #tpu.memory_space<vmem>>) attributes {dimension_semantics = [#tpu.dimension_semantics<arbitrary>], iteration_bounds = array<i64: 1>, scalar_prefetch = 0 : i64, scratch_operands = 1 : i64, tpu.core_type = #tpu.core_type<tc>, window_params = [{pipeline_mode = #tpu.pipeline_mode<synchronous>, transform_indices = @transform_0, window_bounds = array<i64: 128, 16>}, {pipeline_mode = #tpu.pipeline_mode<synchronous>, transform_indices = @transform_1, window_bounds = array<i64: 64, 128>}, {pipeline_mode = #tpu.pipeline_mode<synchronous>, transform_indices = @transform_2, window_bounds = array<i64: 384, 32>}, {pipeline_mode = #tpu.pipeline_mode<synchronous>, transform_indices = @transform_3, window_bounds = array<i64: 96, 32>}, {pipeline_mode = #tpu.pipeline_mode<synchronous>, transform_indices = @transform_4, window_bounds = array<i64: 16, 32>}, {pipeline_mode = #tpu.pipeline_mode<synchronous>, transform_indices = @transform_5, window_bounds = array<i64: 2, 32, 64>}, {pipeline_mode = #tpu.pipeline_mode<synchronous>, transform_indices = @transform_6, window_bounds = array<i64: 32, 192>}, {pipeline_mode = #tpu.pipeline_mode<synchronous>, transform_indices = @transform_7, window_bounds = array<i64: 64, 192>}, {pipeline_mode = #tpu.pipeline_mode<synchronous>, transform_indices = @transform_8, window_bounds = array<i64: 8, 192>}, {pipeline_mode = #tpu.pipeline_mode<synchronous>, transform_indices = @transform_9, window_bounds = array<i64: 128, 64>}]} {
    %c0 = arith.constant 0 : index
    %c0_0 = arith.constant 0 : index
    %0 = vector.load %arg1[%c0, %c0_0] : memref<128x16xf32, #tpu.memory_space<vmem>>, vector<128x16xf32>
    %c0_1 = arith.constant 0 : index
    %c0_2 = arith.constant 0 : index
    %1 = vector.load %arg9[%c0_1, %c0_2] : memref<8x192xf32, #tpu.memory_space<vmem>>, vector<8x192xf32>
    %c0_3 = arith.constant 0 : index
    %c0_4 = arith.constant 0 : index
    %2 = vector.load %arg5[%c0_3, %c0_4] : memref<16x32xf32, #tpu.memory_space<vmem>>, vector<16x32xf32>
    %cst = arith.constant dense<0.000000e+00> : vector<128x32xf32>
    %3 = tpu.matmul %0, %2, %cst {dimension_numbers = #tpu.dot_dimension_numbers<[1], [0], [0], [1], [0, 0, 1, 1], [], []>} : vector<128x16xf32>, vector<16x32xf32>, vector<128x32xf32> -> vector<128x32xf32>
    %4 = tpu.iota {dimensions = array<i32: 0>} : vector<128x16xi32>
    %c16_i32 = arith.constant 16 : i32
    %5 = tpu.dynamic_rotate %0 by %c16_i32 dim 0 : vector<128x16xf32>, i32 -> vector<128x16xf32>
    %c16_i32_5 = arith.constant 16 : i32
    %6 = vector.broadcast %c16_i32_5 : i32 to vector<128x16xi32>
    %7 = arith.cmpi sge, %4, %6 : vector<128x16xi32>
    %cst_6 = arith.constant 0.000000e+00 : f32
    %8 = vector.broadcast %cst_6 : f32 to vector<128x16xf32>
    %9 = arith.select %7, %5, %8 : vector<128x16xi1>, vector<128x16xf32>
    %c8_i32 = arith.constant 8 : i32
    %10 = tpu.dynamic_rotate %0 by %c8_i32 dim 0 : vector<128x16xf32>, i32 -> vector<128x16xf32>
    %c8_i32_7 = arith.constant 8 : i32
    %11 = vector.broadcast %c8_i32_7 : i32 to vector<128x16xi32>
    %12 = arith.cmpi sge, %4, %11 : vector<128x16xi32>
    %cst_8 = arith.constant 0.000000e+00 : f32
    %13 = vector.broadcast %cst_8 : f32 to vector<128x16xf32>
    %14 = arith.select %12, %10, %13 : vector<128x16xi1>, vector<128x16xf32>
    %c120_i32 = arith.constant 120 : i32
    %15 = tpu.dynamic_rotate %0 by %c120_i32 dim 0 : vector<128x16xf32>, i32 -> vector<128x16xf32>
    %c120_i32_9 = arith.constant 120 : i32
    %16 = vector.broadcast %c120_i32_9 : i32 to vector<128x16xi32>
    %17 = arith.cmpi slt, %4, %16 : vector<128x16xi32>
    %cst_10 = arith.constant 0.000000e+00 : f32
    %18 = vector.broadcast %cst_10 : f32 to vector<128x16xf32>
    %19 = arith.select %17, %15, %18 : vector<128x16xi1>, vector<128x16xf32>
    %20 = tpu.concatenate %9, %14, %0, %19 in 1 : vector<128x16xf32>, vector<128x16xf32>, vector<128x16xf32>, vector<128x16xf32> -> vector<128x64xf32>
    %c0_11 = arith.constant 0 : index
    %c0_12 = arith.constant 0 : index
    %21 = vector.load %arg2[%c0_11, %c0_12] : memref<64x128xf32, #tpu.memory_space<vmem>>, vector<64x128xf32>
    %cst_13 = arith.constant dense<0.000000e+00> : vector<128x128xf32>
    %22 = tpu.matmul %20, %21, %cst_13 {dimension_numbers = #tpu.dot_dimension_numbers<[1], [0], [0], [1], [0, 0, 1, 1], [], []>} : vector<128x64xf32>, vector<64x128xf32>, vector<128x128xf32> -> vector<128x128xf32>
    %cst_14 = arith.constant 0.000000e+00 : f32
    %23 = vector.broadcast %cst_14 : f32 to vector<128x128xf32>
    %24 = arith.maximumf %22, %23 : vector<128x128xf32>
    %25 = vector.extract_strided_slice %1 {offsets = [0, 0], sizes = [1, 128], strides = [1, 1]} : vector<8x192xf32> to vector<1x128xf32>
    %26 = vector.broadcast %25 : vector<1x128xf32> to vector<128x128xf32>
    %27 = arith.mulf %24, %26 : vector<128x128xf32>
    %28 = vector.extract_strided_slice %1 {offsets = [1, 0], sizes = [1, 128], strides = [1, 1]} : vector<8x192xf32> to vector<1x128xf32>
    %29 = vector.broadcast %28 : vector<1x128xf32> to vector<128x128xf32>
    %30 = arith.addf %27, %29 : vector<128x128xf32>
    %c8_i32_15 = arith.constant 8 : i32
    %31 = tpu.dynamic_rotate %30 by %c8_i32_15 dim 0 : vector<128x128xf32>, i32 -> vector<128x128xf32>
    %32 = tpu.iota {dimensions = array<i32: 0>} : vector<128x128xi32>
    %c8_i32_16 = arith.constant 8 : i32
    %33 = vector.broadcast %c8_i32_16 : i32 to vector<128x128xi32>
    %34 = arith.cmpi slt, %32, %33 : vector<128x128xi32>
    %35 = arith.select %34, %30, %31 : vector<128x128xi1>, vector<128x128xf32>
    %36 = arith.maximumf %35, %30 : vector<128x128xf32>
    %37 = tpu.iota {dimensions = array<i32: 0>} : vector<128x128xi32>
    %c8_i32_17 = arith.constant 8 : i32
    %38 = tpu.dynamic_rotate %36 by %c8_i32_17 dim 0 : vector<128x128xf32>, i32 -> vector<128x128xf32>
    %c8_i32_18 = arith.constant 8 : i32
    %39 = vector.broadcast %c8_i32_18 : i32 to vector<128x128xi32>
    %40 = arith.cmpi sge, %37, %39 : vector<128x128xi32>
    %cst_19 = arith.constant 0.000000e+00 : f32
    %41 = vector.broadcast %cst_19 : f32 to vector<128x128xf32>
    %42 = arith.select %40, %38, %41 : vector<128x128xi1>, vector<128x128xf32>
    %c120_i32_20 = arith.constant 120 : i32
    %43 = tpu.dynamic_rotate %36 by %c120_i32_20 dim 0 : vector<128x128xf32>, i32 -> vector<128x128xf32>
    %c120_i32_21 = arith.constant 120 : i32
    %44 = vector.broadcast %c120_i32_21 : i32 to vector<128x128xi32>
    %45 = arith.cmpi slt, %37, %44 : vector<128x128xi32>
    %cst_22 = arith.constant 0.000000e+00 : f32
    %46 = vector.broadcast %cst_22 : f32 to vector<128x128xf32>
    %47 = arith.select %45, %43, %46 : vector<128x128xi1>, vector<128x128xf32>
    %48 = tpu.concatenate %42, %36, %47 in 1 : vector<128x128xf32>, vector<128x128xf32>, vector<128x128xf32> -> vector<128x384xf32>
    %c0_23 = arith.constant 0 : index
    %c0_24 = arith.constant 0 : index
    %49 = vector.load %arg3[%c0_23, %c0_24] : memref<384x32xf32, #tpu.memory_space<vmem>>, vector<384x32xf32>
    %cst_25 = arith.constant dense<0.000000e+00> : vector<128x32xf32>
    %50 = tpu.matmul %48, %49, %cst_25 {dimension_numbers = #tpu.dot_dimension_numbers<[1], [0], [0], [1], [0, 0, 1, 1], [], []>} : vector<128x384xf32>, vector<384x32xf32>, vector<128x32xf32> -> vector<128x32xf32>
    %cst_26 = arith.constant 0.000000e+00 : f32
    %51 = vector.broadcast %cst_26 : f32 to vector<128x32xf32>
    %52 = arith.maximumf %50, %51 : vector<128x32xf32>
    %53 = vector.extract_strided_slice %1 {offsets = [2, 0], sizes = [1, 32], strides = [1, 1]} : vector<8x192xf32> to vector<1x32xf32>
    %54 = vector.broadcast %53 : vector<1x32xf32> to vector<128x32xf32>
    %55 = arith.mulf %52, %54 : vector<128x32xf32>
    %56 = vector.extract_strided_slice %1 {offsets = [2, 32], sizes = [1, 32], strides = [1, 1]} : vector<8x192xf32> to vector<1x32xf32>
    %57 = vector.broadcast %56 : vector<1x32xf32> to vector<128x32xf32>
    %58 = arith.addf %55, %57 : vector<128x32xf32>
    %59 = tpu.iota {dimensions = array<i32: 0>} : vector<128x32xi32>
    %c8_i32_27 = arith.constant 8 : i32
    %60 = tpu.dynamic_rotate %58 by %c8_i32_27 dim 0 : vector<128x32xf32>, i32 -> vector<128x32xf32>
    %c8_i32_28 = arith.constant 8 : i32
    %61 = vector.broadcast %c8_i32_28 : i32 to vector<128x32xi32>
    %62 = arith.cmpi sge, %59, %61 : vector<128x32xi32>
    %cst_29 = arith.constant 0.000000e+00 : f32
    %63 = vector.broadcast %cst_29 : f32 to vector<128x32xf32>
    %64 = arith.select %62, %60, %63 : vector<128x32xi1>, vector<128x32xf32>
    %c120_i32_30 = arith.constant 120 : i32
    %65 = tpu.dynamic_rotate %58 by %c120_i32_30 dim 0 : vector<128x32xf32>, i32 -> vector<128x32xf32>
    %c120_i32_31 = arith.constant 120 : i32
    %66 = vector.broadcast %c120_i32_31 : i32 to vector<128x32xi32>
    %67 = arith.cmpi slt, %59, %66 : vector<128x32xi32>
    %cst_32 = arith.constant 0.000000e+00 : f32
    %68 = vector.broadcast %cst_32 : f32 to vector<128x32xf32>
    %69 = arith.select %67, %65, %68 : vector<128x32xi1>, vector<128x32xf32>
    %70 = tpu.concatenate %64, %58, %69 in 1 : vector<128x32xf32>, vector<128x32xf32>, vector<128x32xf32> -> vector<128x96xf32>
    %c0_33 = arith.constant 0 : index
    %c0_34 = arith.constant 0 : index
    %71 = vector.load %arg4[%c0_33, %c0_34] : memref<96x32xf32, #tpu.memory_space<vmem>>, vector<96x32xf32>
    %cst_35 = arith.constant dense<0.000000e+00> : vector<128x32xf32>
    %72 = tpu.matmul %70, %71, %cst_35 {dimension_numbers = #tpu.dot_dimension_numbers<[1], [0], [0], [1], [0, 0, 1, 1], [], []>} : vector<128x96xf32>, vector<96x32xf32>, vector<128x32xf32> -> vector<128x32xf32>
    %73 = arith.addf %72, %3 : vector<128x32xf32>
    %74 = vector.extract_strided_slice %1 {offsets = [2, 64], sizes = [1, 32], strides = [1, 1]} : vector<8x192xf32> to vector<1x32xf32>
    %75 = vector.broadcast %74 : vector<1x32xf32> to vector<128x32xf32>
    %76 = arith.addf %73, %75 : vector<128x32xf32>
    %c0_36 = arith.constant 0 : index
    %c0_37 = arith.constant 0 : index
    %c0_38 = arith.constant 0 : index
    %77 = vector.load %arg6[%c0_36, %c0_37, %c0_38] : memref<2x32x64xf32, #tpu.memory_space<vmem>>, vector<1x32x64xf32>
    %78 = vector.shape_cast %77 : vector<1x32x64xf32> to vector<32x64xf32>
    %cst_39 = arith.constant dense<0.000000e+00> : vector<128x64xf32>
    %79 = tpu.matmul %76, %78, %cst_39 {dimension_numbers = #tpu.dot_dimension_numbers<[1], [0], [0], [1], [0, 0, 1, 1], [], []>} : vector<128x32xf32>, vector<32x64xf32>, vector<128x64xf32> -> vector<128x64xf32>
    %80 = vector.extract_strided_slice %1 {offsets = [3, 0], sizes = [1, 64], strides = [1, 1]} : vector<8x192xf32> to vector<1x64xf32>
    %81 = vector.broadcast %80 : vector<1x64xf32> to vector<128x64xf32>
    %82 = arith.addf %79, %81 : vector<128x64xf32>
    %83 = vector.extract_strided_slice %82 {offsets = [0, 32], sizes = [128, 32], strides = [1, 1]} : vector<128x64xf32> to vector<128x32xf32>
    %84 = arith.negf %83 : vector<128x32xf32>
    %85 = math.exp %84 : vector<128x32xf32>
    %cst_40 = arith.constant 1.000000e+00 : f32
    %86 = vector.broadcast %cst_40 : f32 to vector<128x32xf32>
    %87 = arith.addf %86, %85 : vector<128x32xf32>
    %88 = arith.divf %86, %87 : vector<128x32xf32>
    %89 = vector.extract_strided_slice %82 {offsets = [0, 0], sizes = [128, 32], strides = [1, 1]} : vector<128x64xf32> to vector<128x32xf32>
    %cst_41 = arith.constant 0.000000e+00 : f32
    %90 = vector.broadcast %cst_41 : f32 to vector<128x32xf32>
    %91 = arith.maximumf %89, %90 : vector<128x32xf32>
    %92 = arith.mulf %88, %91 : vector<128x32xf32>
    %cst_42 = arith.constant 1.000000e+00 : f32
    %93 = vector.broadcast %cst_42 : f32 to vector<128x32xf32>
    %94 = arith.subf %93, %88 : vector<128x32xf32>
    %95 = arith.mulf %94, %76 : vector<128x32xf32>
    %96 = arith.addf %92, %95 : vector<128x32xf32>
    %c1 = arith.constant 1 : index
    %c0_43 = arith.constant 0 : index
    %c0_44 = arith.constant 0 : index
    %97 = vector.load %arg6[%c1, %c0_43, %c0_44] : memref<2x32x64xf32, #tpu.memory_space<vmem>>, vector<1x32x64xf32>
    %98 = vector.shape_cast %97 : vector<1x32x64xf32> to vector<32x64xf32>
    %cst_45 = arith.constant dense<0.000000e+00> : vector<128x64xf32>
    %99 = tpu.matmul %96, %98, %cst_45 {dimension_numbers = #tpu.dot_dimension_numbers<[1], [0], [0], [1], [0, 0, 1, 1], [], []>} : vector<128x32xf32>, vector<32x64xf32>, vector<128x64xf32> -> vector<128x64xf32>
    %100 = vector.extract_strided_slice %1 {offsets = [3, 64], sizes = [1, 64], strides = [1, 1]} : vector<8x192xf32> to vector<1x64xf32>
    %101 = vector.broadcast %100 : vector<1x64xf32> to vector<128x64xf32>
    %102 = arith.addf %99, %101 : vector<128x64xf32>
    %103 = vector.extract_strided_slice %102 {offsets = [0, 32], sizes = [128, 32], strides = [1, 1]} : vector<128x64xf32> to vector<128x32xf32>
    %104 = arith.negf %103 : vector<128x32xf32>
    %105 = math.exp %104 : vector<128x32xf32>
    %cst_46 = arith.constant 1.000000e+00 : f32
    %106 = vector.broadcast %cst_46 : f32 to vector<128x32xf32>
    %107 = arith.addf %106, %105 : vector<128x32xf32>
    %108 = arith.divf %106, %107 : vector<128x32xf32>
    %109 = vector.extract_strided_slice %102 {offsets = [0, 0], sizes = [128, 32], strides = [1, 1]} : vector<128x64xf32> to vector<128x32xf32>
    %cst_47 = arith.constant 0.000000e+00 : f32
    %110 = vector.broadcast %cst_47 : f32 to vector<128x32xf32>
    %111 = arith.maximumf %109, %110 : vector<128x32xf32>
    %112 = arith.mulf %108, %111 : vector<128x32xf32>
    %cst_48 = arith.constant 1.000000e+00 : f32
    %113 = vector.broadcast %cst_48 : f32 to vector<128x32xf32>
    %114 = arith.subf %113, %108 : vector<128x32xf32>
    %115 = arith.mulf %114, %96 : vector<128x32xf32>
    %116 = arith.addf %112, %115 : vector<128x32xf32>
    %c0_49 = arith.constant 0 : index
    %c0_50 = arith.constant 0 : index
    %117 = vector.load %arg7[%c0_49, %c0_50] : memref<32x192xf32, #tpu.memory_space<vmem>>, vector<32x192xf32>
    %cst_51 = arith.constant dense<0.000000e+00> : vector<128x192xf32>
    %118 = tpu.matmul %116, %117, %cst_51 {dimension_numbers = #tpu.dot_dimension_numbers<[1], [0], [0], [1], [0, 0, 1, 1], [], []>} : vector<128x32xf32>, vector<32x192xf32>, vector<128x192xf32> -> vector<128x192xf32>
    %119 = vector.extract_strided_slice %1 {offsets = [4, 0], sizes = [1, 192], strides = [1, 1]} : vector<8x192xf32> to vector<1x192xf32>
    %120 = vector.broadcast %119 : vector<1x192xf32> to vector<128x192xf32>
    %121 = arith.addf %118, %120 : vector<128x192xf32>
    %c0_52 = arith.constant 0 : index
    %c0_53 = arith.constant 0 : index
    %122 = vector.load %arg11[%c0_52, %c0_53] : memref<128x192xf32, #tpu.memory_space<vmem>>, vector<128x192xf32>
    tpu.vector_store %arg11[%c0_52, %c0_53], %121 {strides = array<i32>} : memref<128x192xf32, #tpu.memory_space<vmem>>, vector<128x192xf32>,
    %c0_54 = arith.constant 0 : index
    %c0_55 = arith.constant 0 : index
    %123 = vector.load %arg8[%c0_54, %c0_55] : memref<64x192xf32, #tpu.memory_space<vmem>>, vector<64x192xf32>
    %124 = vector.extract_strided_slice %1 {offsets = [2, 96], sizes = [1, 64], strides = [1, 1]} : vector<8x192xf32> to vector<1x64xf32>
    %125 = vector.extract_strided_slice %1 {offsets = [5, 0], sizes = [1, 192], strides = [1, 1]} : vector<8x192xf32> to vector<1x192xf32>
    %cst_56 = arith.constant 5.000000e-01 : f32
    %126 = vector.broadcast %cst_56 : f32 to vector<1x192xf32>
    %127 = arith.cmpf ogt, %125, %126 : vector<1x192xf32>
    %cst_57 = arith.constant 0.000000e+00 : f32
    %128 = vector.broadcast %cst_57 : f32 to vector<8x64xf32>
    %c0_58 = arith.constant 0 : index
    %c0_59 = arith.constant 0 : index
    %129 = vector.load %arg11[%c0_58, %c0_59] : memref<128x192xf32, #tpu.memory_space<vmem>>, vector<8x192xf32>
    %c120 = arith.constant 120 : index
    %c0_60 = arith.constant 0 : index
    %130 = vector.load %arg11[%c120, %c0_60] : memref<128x192xf32, #tpu.memory_space<vmem>>, vector<8x192xf32>
    %131 = vector.shape_cast %127 : vector<1x192xi1> to vector<1x192xi1>
    %132 = vector.broadcast %131 : vector<1x192xi1> to vector<8x192xi1>
    %133 = arith.select %132, %129, %130 : vector<8x192xi1>, vector<8x192xf32>
    %cst_61 = arith.constant dense<0.000000e+00> : vector<8x192xf32>
    %134 = tpu.matmul %128, %123, %cst_61 {dimension_numbers = #tpu.dot_dimension_numbers<[1], [0], [0], [1], [0, 0, 1, 1], [], []>} : vector<8x64xf32>, vector<64x192xf32>, vector<8x192xf32> -> vector<8x192xf32>
    %135 = vector.extract_strided_slice %133 {offsets = [0, 0], sizes = [8, 64], strides = [1, 1]} : vector<8x192xf32> to vector<8x64xf32>
    %136 = vector.extract_strided_slice %134 {offsets = [0, 0], sizes = [8, 64], strides = [1, 1]} : vector<8x192xf32> to vector<8x64xf32>
    %137 = arith.addf %135, %136 : vector<8x64xf32>
    %138 = arith.negf %137 : vector<8x64xf32>
    %139 = math.exp %138 : vector<8x64xf32>
    %cst_62 = arith.constant 1.000000e+00 : f32
    %140 = vector.broadcast %cst_62 : f32 to vector<8x64xf32>
    %141 = arith.addf %140, %139 : vector<8x64xf32>
    %142 = arith.divf %140, %141 : vector<8x64xf32>
    %143 = vector.extract_strided_slice %133 {offsets = [0, 64], sizes = [8, 64], strides = [1, 1]} : vector<8x192xf32> to vector<8x64xf32>
    %144 = vector.extract_strided_slice %134 {offsets = [0, 64], sizes = [8, 64], strides = [1, 1]} : vector<8x192xf32> to vector<8x64xf32>
    %145 = arith.addf %143, %144 : vector<8x64xf32>
    %146 = arith.negf %145 : vector<8x64xf32>
    %147 = math.exp %146 : vector<8x64xf32>
    %cst_63 = arith.constant 1.000000e+00 : f32
    %148 = vector.broadcast %cst_63 : f32 to vector<8x64xf32>
    %149 = arith.addf %148, %147 : vector<8x64xf32>
    %150 = arith.divf %148, %149 : vector<8x64xf32>
    %151 = vector.extract_strided_slice %133 {offsets = [0, 128], sizes = [8, 64], strides = [1, 1]} : vector<8x192xf32> to vector<8x64xf32>
    %152 = vector.extract_strided_slice %134 {offsets = [0, 128], sizes = [8, 64], strides = [1, 1]} : vector<8x192xf32> to vector<8x64xf32>
    %153 = vector.broadcast %124 : vector<1x64xf32> to vector<8x64xf32>
    %154 = arith.addf %152, %153 : vector<8x64xf32>
    %155 = arith.mulf %142, %154 : vector<8x64xf32>
    %156 = arith.addf %151, %155 : vector<8x64xf32>
    %157 = math.tanh %156 : vector<8x64xf32>
    %cst_64 = arith.constant 1.000000e+00 : f32
    %158 = vector.broadcast %cst_64 : f32 to vector<8x64xf32>
    %159 = arith.subf %158, %150 : vector<8x64xf32>
    %160 = arith.mulf %159, %157 : vector<8x64xf32>
    %161 = arith.mulf %150, %128 : vector<8x64xf32>
    %162 = arith.addf %160, %161 : vector<8x64xf32>
    %c0_65 = arith.constant 0 : index
    %c0_66 = arith.constant 0 : index
    %163 = vector.load %arg10[%c0_65, %c0_66] : memref<128x64xf32, #tpu.memory_space<vmem>>, vector<8x64xf32>
    tpu.vector_store %arg10[%c0_65, %c0_66], %162 {strides = array<i32>} : memref<128x64xf32, #tpu.memory_space<vmem>>, vector<8x64xf32>,
    %c8 = arith.constant 8 : index
    %c0_67 = arith.constant 0 : index
    %164 = vector.load %arg11[%c8, %c0_67] : memref<128x192xf32, #tpu.memory_space<vmem>>, vector<8x192xf32>
    %c112 = arith.constant 112 : index
    %c0_68 = arith.constant 0 : index
    %165 = vector.load %arg11[%c112, %c0_68] : memref<128x192xf32, #tpu.memory_space<vmem>>, vector<8x192xf32>
    %166 = vector.shape_cast %127 : vector<1x192xi1> to vector<1x192xi1>
    %167 = vector.broadcast %166 : vector<1x192xi1> to vector<8x192xi1>
    %168 = arith.select %167, %164, %165 : vector<8x192xi1>, vector<8x192xf32>
    %cst_69 = arith.constant dense<0.000000e+00> : vector<8x192xf32>
    %169 = tpu.matmul %162, %123, %cst_69 {dimension_numbers = #tpu.dot_dimension_numbers<[1], [0], [0], [1], [0, 0, 1, 1], [], []>} : vector<8x64xf32>, vector<64x192xf32>, vector<8x192xf32> -> vector<8x192xf32>
    %170 = vector.extract_strided_slice %168 {offsets = [0, 0], sizes = [8, 64], strides = [1, 1]} : vector<8x192xf32> to vector<8x64xf32>
    %171 = vector.extract_strided_slice %169 {offsets = [0, 0], sizes = [8, 64], strides = [1, 1]} : vector<8x192xf32> to vector<8x64xf32>
    %172 = arith.addf %170, %171 : vector<8x64xf32>
    %173 = arith.negf %172 : vector<8x64xf32>
    %174 = math.exp %173 : vector<8x64xf32>
    %cst_70 = arith.constant 1.000000e+00 : f32
    %175 = vector.broadcast %cst_70 : f32 to vector<8x64xf32>
    %176 = arith.addf %175, %174 : vector<8x64xf32>
    %177 = arith.divf %175, %176 : vector<8x64xf32>
    %178 = vector.extract_strided_slice %168 {offsets = [0, 64], sizes = [8, 64], strides = [1, 1]} : vector<8x192xf32> to vector<8x64xf32>
    %179 = vector.extract_strided_slice %169 {offsets = [0, 64], sizes = [8, 64], strides = [1, 1]} : vector<8x192xf32> to vector<8x64xf32>
    %180 = arith.addf %178, %179 : vector<8x64xf32>
    %181 = arith.negf %180 : vector<8x64xf32>
    %182 = math.exp %181 : vector<8x64xf32>
    %cst_71 = arith.constant 1.000000e+00 : f32
    %183 = vector.broadcast %cst_71 : f32 to vector<8x64xf32>
    %184 = arith.addf %183, %182 : vector<8x64xf32>
    %185 = arith.divf %183, %184 : vector<8x64xf32>
    %186 = vector.extract_strided_slice %168 {offsets = [0, 128], sizes = [8, 64], strides = [1, 1]} : vector<8x192xf32> to vector<8x64xf32>
    %187 = vector.extract_strided_slice %169 {offsets = [0, 128], sizes = [8, 64], strides = [1, 1]} : vector<8x192xf32> to vector<8x64xf32>
    %188 = vector.broadcast %124 : vector<1x64xf32> to vector<8x64xf32>
    %189 = arith.addf %187, %188 : vector<8x64xf32>
    %190 = arith.mulf %177, %189 : vector<8x64xf32>
    %191 = arith.addf %186, %190 : vector<8x64xf32>
    %192 = math.tanh %191 : vector<8x64xf32>
    %cst_72 = arith.constant 1.000000e+00 : f32
    %193 = vector.broadcast %cst_72 : f32 to vector<8x64xf32>
    %194 = arith.subf %193, %185 : vector<8x64xf32>
    %195 = arith.mulf %194, %192 : vector<8x64xf32>
    %196 = arith.mulf %185, %162 : vector<8x64xf32>
    %197 = arith.addf %195, %196 : vector<8x64xf32>
    %c8_73 = arith.constant 8 : index
    %c0_74 = arith.constant 0 : index
    %198 = vector.load %arg10[%c8_73, %c0_74] : memref<128x64xf32, #tpu.memory_space<vmem>>, vector<8x64xf32>
    tpu.vector_store %arg10[%c8_73, %c0_74], %197 {strides = array<i32>} : memref<128x64xf32, #tpu.memory_space<vmem>>, vector<8x64xf32>,
    %c16 = arith.constant 16 : index
    %c0_75 = arith.constant 0 : index
    %199 = vector.load %arg11[%c16, %c0_75] : memref<128x192xf32, #tpu.memory_space<vmem>>, vector<8x192xf32>
    %c104 = arith.constant 104 : index
    %c0_76 = arith.constant 0 : index
    %200 = vector.load %arg11[%c104, %c0_76] : memref<128x192xf32, #tpu.memory_space<vmem>>, vector<8x192xf32>
    %201 = vector.shape_cast %127 : vector<1x192xi1> to vector<1x192xi1>
    %202 = vector.broadcast %201 : vector<1x192xi1> to vector<8x192xi1>
    %203 = arith.select %202, %199, %200 : vector<8x192xi1>, vector<8x192xf32>
    %cst_77 = arith.constant dense<0.000000e+00> : vector<8x192xf32>
    %204 = tpu.matmul %197, %123, %cst_77 {dimension_numbers = #tpu.dot_dimension_numbers<[1], [0], [0], [1], [0, 0, 1, 1], [], []>} : vector<8x64xf32>, vector<64x192xf32>, vector<8x192xf32> -> vector<8x192xf32>
    %205 = vector.extract_strided_slice %203 {offsets = [0, 0], sizes = [8, 64], strides = [1, 1]} : vector<8x192xf32> to vector<8x64xf32>
    %206 = vector.extract_strided_slice %204 {offsets = [0, 0], sizes = [8, 64], strides = [1, 1]} : vector<8x192xf32> to vector<8x64xf32>
    %207 = arith.addf %205, %206 : vector<8x64xf32>
    %208 = arith.negf %207 : vector<8x64xf32>
    %209 = math.exp %208 : vector<8x64xf32>
    %cst_78 = arith.constant 1.000000e+00 : f32
    %210 = vector.broadcast %cst_78 : f32 to vector<8x64xf32>
    %211 = arith.addf %210, %209 : vector<8x64xf32>
    %212 = arith.divf %210, %211 : vector<8x64xf32>
    %213 = vector.extract_strided_slice %203 {offsets = [0, 64], sizes = [8, 64], strides = [1, 1]} : vector<8x192xf32> to vector<8x64xf32>
    %214 = vector.extract_strided_slice %204 {offsets = [0, 64], sizes = [8, 64], strides = [1, 1]} : vector<8x192xf32> to vector<8x64xf32>
    %215 = arith.addf %213, %214 : vector<8x64xf32>
    %216 = arith.negf %215 : vector<8x64xf32>
    %217 = math.exp %216 : vector<8x64xf32>
    %cst_79 = arith.constant 1.000000e+00 : f32
    %218 = vector.broadcast %cst_79 : f32 to vector<8x64xf32>
    %219 = arith.addf %218, %217 : vector<8x64xf32>
    %220 = arith.divf %218, %219 : vector<8x64xf32>
    %221 = vector.extract_strided_slice %203 {offsets = [0, 128], sizes = [8, 64], strides = [1, 1]} : vector<8x192xf32> to vector<8x64xf32>
    %222 = vector.extract_strided_slice %204 {offsets = [0, 128], sizes = [8, 64], strides = [1, 1]} : vector<8x192xf32> to vector<8x64xf32>
    %223 = vector.broadcast %124 : vector<1x64xf32> to vector<8x64xf32>
    %224 = arith.addf %222, %223 : vector<8x64xf32>
    %225 = arith.mulf %212, %224 : vector<8x64xf32>
    %226 = arith.addf %221, %225 : vector<8x64xf32>
    %227 = math.tanh %226 : vector<8x64xf32>
    %cst_80 = arith.constant 1.000000e+00 : f32
    %228 = vector.broadcast %cst_80 : f32 to vector<8x64xf32>
    %229 = arith.subf %228, %220 : vector<8x64xf32>
    %230 = arith.mulf %229, %227 : vector<8x64xf32>
    %231 = arith.mulf %220, %197 : vector<8x64xf32>
    %232 = arith.addf %230, %231 : vector<8x64xf32>
    %c16_81 = arith.constant 16 : index
    %c0_82 = arith.constant 0 : index
    %233 = vector.load %arg10[%c16_81, %c0_82] : memref<128x64xf32, #tpu.memory_space<vmem>>, vector<8x64xf32>
    tpu.vector_store %arg10[%c16_81, %c0_82], %232 {strides = array<i32>} : memref<128x64xf32, #tpu.memory_space<vmem>>, vector<8x64xf32>,
    %c24 = arith.constant 24 : index
    %c0_83 = arith.constant 0 : index
    %234 = vector.load %arg11[%c24, %c0_83] : memref<128x192xf32, #tpu.memory_space<vmem>>, vector<8x192xf32>
    %c96 = arith.constant 96 : index
    %c0_84 = arith.constant 0 : index
    %235 = vector.load %arg11[%c96, %c0_84] : memref<128x192xf32, #tpu.memory_space<vmem>>, vector<8x192xf32>
    %236 = vector.shape_cast %127 : vector<1x192xi1> to vector<1x192xi1>
    %237 = vector.broadcast %236 : vector<1x192xi1> to vector<8x192xi1>
    %238 = arith.select %237, %234, %235 : vector<8x192xi1>, vector<8x192xf32>
    %cst_85 = arith.constant dense<0.000000e+00> : vector<8x192xf32>
    %239 = tpu.matmul %232, %123, %cst_85 {dimension_numbers = #tpu.dot_dimension_numbers<[1], [0], [0], [1], [0, 0, 1, 1], [], []>} : vector<8x64xf32>, vector<64x192xf32>, vector<8x192xf32> -> vector<8x192xf32>
    %240 = vector.extract_strided_slice %238 {offsets = [0, 0], sizes = [8, 64], strides = [1, 1]} : vector<8x192xf32> to vector<8x64xf32>
    %241 = vector.extract_strided_slice %239 {offsets = [0, 0], sizes = [8, 64], strides = [1, 1]} : vector<8x192xf32> to vector<8x64xf32>
    %242 = arith.addf %240, %241 : vector<8x64xf32>
    %243 = arith.negf %242 : vector<8x64xf32>
    %244 = math.exp %243 : vector<8x64xf32>
    %cst_86 = arith.constant 1.000000e+00 : f32
    %245 = vector.broadcast %cst_86 : f32 to vector<8x64xf32>
    %246 = arith.addf %245, %244 : vector<8x64xf32>
    %247 = arith.divf %245, %246 : vector<8x64xf32>
    %248 = vector.extract_strided_slice %238 {offsets = [0, 64], sizes = [8, 64], strides = [1, 1]} : vector<8x192xf32> to vector<8x64xf32>
    %249 = vector.extract_strided_slice %239 {offsets = [0, 64], sizes = [8, 64], strides = [1, 1]} : vector<8x192xf32> to vector<8x64xf32>
    %250 = arith.addf %248, %249 : vector<8x64xf32>
    %251 = arith.negf %250 : vector<8x64xf32>
    %252 = math.exp %251 : vector<8x64xf32>
    %cst_87 = arith.constant 1.000000e+00 : f32
    %253 = vector.broadcast %cst_87 : f32 to vector<8x64xf32>
    %254 = arith.addf %253, %252 : vector<8x64xf32>
    %255 = arith.divf %253, %254 : vector<8x64xf32>
    %256 = vector.extract_strided_slice %238 {offsets = [0, 128], sizes = [8, 64], strides = [1, 1]} : vector<8x192xf32> to vector<8x64xf32>
    %257 = vector.extract_strided_slice %239 {offsets = [0, 128], sizes = [8, 64], strides = [1, 1]} : vector<8x192xf32> to vector<8x64xf32>
    %258 = vector.broadcast %124 : vector<1x64xf32> to vector<8x64xf32>
    %259 = arith.addf %257, %258 : vector<8x64xf32>
    %260 = arith.mulf %247, %259 : vector<8x64xf32>
    %261 = arith.addf %256, %260 : vector<8x64xf32>
    %262 = math.tanh %261 : vector<8x64xf32>
    %cst_88 = arith.constant 1.000000e+00 : f32
    %263 = vector.broadcast %cst_88 : f32 to vector<8x64xf32>
    %264 = arith.subf %263, %255 : vector<8x64xf32>
    %265 = arith.mulf %264, %262 : vector<8x64xf32>
    %266 = arith.mulf %255, %232 : vector<8x64xf32>
    %267 = arith.addf %265, %266 : vector<8x64xf32>
    %c24_89 = arith.constant 24 : index
    %c0_90 = arith.constant 0 : index
    %268 = vector.load %arg10[%c24_89, %c0_90] : memref<128x64xf32, #tpu.memory_space<vmem>>, vector<8x64xf32>
    tpu.vector_store %arg10[%c24_89, %c0_90], %267 {strides = array<i32>} : memref<128x64xf32, #tpu.memory_space<vmem>>, vector<8x64xf32>,
    %c32 = arith.constant 32 : index
    %c0_91 = arith.constant 0 : index
    %269 = vector.load %arg11[%c32, %c0_91] : memref<128x192xf32, #tpu.memory_space<vmem>>, vector<8x192xf32>
    %c88 = arith.constant 88 : index
    %c0_92 = arith.constant 0 : index
    %270 = vector.load %arg11[%c88, %c0_92] : memref<128x192xf32, #tpu.memory_space<vmem>>, vector<8x192xf32>
    %271 = vector.shape_cast %127 : vector<1x192xi1> to vector<1x192xi1>
    %272 = vector.broadcast %271 : vector<1x192xi1> to vector<8x192xi1>
    %273 = arith.select %272, %269, %270 : vector<8x192xi1>, vector<8x192xf32>
    %cst_93 = arith.constant dense<0.000000e+00> : vector<8x192xf32>
    %274 = tpu.matmul %267, %123, %cst_93 {dimension_numbers = #tpu.dot_dimension_numbers<[1], [0], [0], [1], [0, 0, 1, 1], [], []>} : vector<8x64xf32>, vector<64x192xf32>, vector<8x192xf32> -> vector<8x192xf32>
    %275 = vector.extract_strided_slice %273 {offsets = [0, 0], sizes = [8, 64], strides = [1, 1]} : vector<8x192xf32> to vector<8x64xf32>
    %276 = vector.extract_strided_slice %274 {offsets = [0, 0], sizes = [8, 64], strides = [1, 1]} : vector<8x192xf32> to vector<8x64xf32>
    %277 = arith.addf %275, %276 : vector<8x64xf32>
    %278 = arith.negf %277 : vector<8x64xf32>
    %279 = math.exp %278 : vector<8x64xf32>
    %cst_94 = arith.constant 1.000000e+00 : f32
    %280 = vector.broadcast %cst_94 : f32 to vector<8x64xf32>
    %281 = arith.addf %280, %279 : vector<8x64xf32>
    %282 = arith.divf %280, %281 : vector<8x64xf32>
    %283 = vector.extract_strided_slice %273 {offsets = [0, 64], sizes = [8, 64], strides = [1, 1]} : vector<8x192xf32> to vector<8x64xf32>
    %284 = vector.extract_strided_slice %274 {offsets = [0, 64], sizes = [8, 64], strides = [1, 1]} : vector<8x192xf32> to vector<8x64xf32>
    %285 = arith.addf %283, %284 : vector<8x64xf32>
    %286 = arith.negf %285 : vector<8x64xf32>
    %287 = math.exp %286 : vector<8x64xf32>
    %cst_95 = arith.constant 1.000000e+00 : f32
    %288 = vector.broadcast %cst_95 : f32 to vector<8x64xf32>
    %289 = arith.addf %288, %287 : vector<8x64xf32>
    %290 = arith.divf %288, %289 : vector<8x64xf32>
    %291 = vector.extract_strided_slice %273 {offsets = [0, 128], sizes = [8, 64], strides = [1, 1]} : vector<8x192xf32> to vector<8x64xf32>
    %292 = vector.extract_strided_slice %274 {offsets = [0, 128], sizes = [8, 64], strides = [1, 1]} : vector<8x192xf32> to vector<8x64xf32>
    %293 = vector.broadcast %124 : vector<1x64xf32> to vector<8x64xf32>
    %294 = arith.addf %292, %293 : vector<8x64xf32>
    %295 = arith.mulf %282, %294 : vector<8x64xf32>
    %296 = arith.addf %291, %295 : vector<8x64xf32>
    %297 = math.tanh %296 : vector<8x64xf32>
    %cst_96 = arith.constant 1.000000e+00 : f32
    %298 = vector.broadcast %cst_96 : f32 to vector<8x64xf32>
    %299 = arith.subf %298, %290 : vector<8x64xf32>
    %300 = arith.mulf %299, %297 : vector<8x64xf32>
    %301 = arith.mulf %290, %267 : vector<8x64xf32>
    %302 = arith.addf %300, %301 : vector<8x64xf32>
    %c32_97 = arith.constant 32 : index
    %c0_98 = arith.constant 0 : index
    %303 = vector.load %arg10[%c32_97, %c0_98] : memref<128x64xf32, #tpu.memory_space<vmem>>, vector<8x64xf32>
    tpu.vector_store %arg10[%c32_97, %c0_98], %302 {strides = array<i32>} : memref<128x64xf32, #tpu.memory_space<vmem>>, vector<8x64xf32>,
    %c40 = arith.constant 40 : index
    %c0_99 = arith.constant 0 : index
    %304 = vector.load %arg11[%c40, %c0_99] : memref<128x192xf32, #tpu.memory_space<vmem>>, vector<8x192xf32>
    %c80 = arith.constant 80 : index
    %c0_100 = arith.constant 0 : index
    %305 = vector.load %arg11[%c80, %c0_100] : memref<128x192xf32, #tpu.memory_space<vmem>>, vector<8x192xf32>
    %306 = vector.shape_cast %127 : vector<1x192xi1> to vector<1x192xi1>
    %307 = vector.broadcast %306 : vector<1x192xi1> to vector<8x192xi1>
    %308 = arith.select %307, %304, %305 : vector<8x192xi1>, vector<8x192xf32>
    %cst_101 = arith.constant dense<0.000000e+00> : vector<8x192xf32>
    %309 = tpu.matmul %302, %123, %cst_101 {dimension_numbers = #tpu.dot_dimension_numbers<[1], [0], [0], [1], [0, 0, 1, 1], [], []>} : vector<8x64xf32>, vector<64x192xf32>, vector<8x192xf32> -> vector<8x192xf32>
    %310 = vector.extract_strided_slice %308 {offsets = [0, 0], sizes = [8, 64], strides = [1, 1]} : vector<8x192xf32> to vector<8x64xf32>
    %311 = vector.extract_strided_slice %309 {offsets = [0, 0], sizes = [8, 64], strides = [1, 1]} : vector<8x192xf32> to vector<8x64xf32>
    %312 = arith.addf %310, %311 : vector<8x64xf32>
    %313 = arith.negf %312 : vector<8x64xf32>
    %314 = math.exp %313 : vector<8x64xf32>
    %cst_102 = arith.constant 1.000000e+00 : f32
    %315 = vector.broadcast %cst_102 : f32 to vector<8x64xf32>
    %316 = arith.addf %315, %314 : vector<8x64xf32>
    %317 = arith.divf %315, %316 : vector<8x64xf32>
    %318 = vector.extract_strided_slice %308 {offsets = [0, 64], sizes = [8, 64], strides = [1, 1]} : vector<8x192xf32> to vector<8x64xf32>
    %319 = vector.extract_strided_slice %309 {offsets = [0, 64], sizes = [8, 64], strides = [1, 1]} : vector<8x192xf32> to vector<8x64xf32>
    %320 = arith.addf %318, %319 : vector<8x64xf32>
    %321 = arith.negf %320 : vector<8x64xf32>
    %322 = math.exp %321 : vector<8x64xf32>
    %cst_103 = arith.constant 1.000000e+00 : f32
    %323 = vector.broadcast %cst_103 : f32 to vector<8x64xf32>
    %324 = arith.addf %323, %322 : vector<8x64xf32>
    %325 = arith.divf %323, %324 : vector<8x64xf32>
    %326 = vector.extract_strided_slice %308 {offsets = [0, 128], sizes = [8, 64], strides = [1, 1]} : vector<8x192xf32> to vector<8x64xf32>
    %327 = vector.extract_strided_slice %309 {offsets = [0, 128], sizes = [8, 64], strides = [1, 1]} : vector<8x192xf32> to vector<8x64xf32>
    %328 = vector.broadcast %124 : vector<1x64xf32> to vector<8x64xf32>
    %329 = arith.addf %327, %328 : vector<8x64xf32>
    %330 = arith.mulf %317, %329 : vector<8x64xf32>
    %331 = arith.addf %326, %330 : vector<8x64xf32>
    %332 = math.tanh %331 : vector<8x64xf32>
    %cst_104 = arith.constant 1.000000e+00 : f32
    %333 = vector.broadcast %cst_104 : f32 to vector<8x64xf32>
    %334 = arith.subf %333, %325 : vector<8x64xf32>
    %335 = arith.mulf %334, %332 : vector<8x64xf32>
    %336 = arith.mulf %325, %302 : vector<8x64xf32>
    %337 = arith.addf %335, %336 : vector<8x64xf32>
    %c40_105 = arith.constant 40 : index
    %c0_106 = arith.constant 0 : index
    %338 = vector.load %arg10[%c40_105, %c0_106] : memref<128x64xf32, #tpu.memory_space<vmem>>, vector<8x64xf32>
    tpu.vector_store %arg10[%c40_105, %c0_106], %337 {strides = array<i32>} : memref<128x64xf32, #tpu.memory_space<vmem>>, vector<8x64xf32>,
    %c48 = arith.constant 48 : index
    %c0_107 = arith.constant 0 : index
    %339 = vector.load %arg11[%c48, %c0_107] : memref<128x192xf32, #tpu.memory_space<vmem>>, vector<8x192xf32>
    %c72 = arith.constant 72 : index
    %c0_108 = arith.constant 0 : index
    %340 = vector.load %arg11[%c72, %c0_108] : memref<128x192xf32, #tpu.memory_space<vmem>>, vector<8x192xf32>
    %341 = vector.shape_cast %127 : vector<1x192xi1> to vector<1x192xi1>
    %342 = vector.broadcast %341 : vector<1x192xi1> to vector<8x192xi1>
    %343 = arith.select %342, %339, %340 : vector<8x192xi1>, vector<8x192xf32>
    %cst_109 = arith.constant dense<0.000000e+00> : vector<8x192xf32>
    %344 = tpu.matmul %337, %123, %cst_109 {dimension_numbers = #tpu.dot_dimension_numbers<[1], [0], [0], [1], [0, 0, 1, 1], [], []>} : vector<8x64xf32>, vector<64x192xf32>, vector<8x192xf32> -> vector<8x192xf32>
    %345 = vector.extract_strided_slice %343 {offsets = [0, 0], sizes = [8, 64], strides = [1, 1]} : vector<8x192xf32> to vector<8x64xf32>
    %346 = vector.extract_strided_slice %344 {offsets = [0, 0], sizes = [8, 64], strides = [1, 1]} : vector<8x192xf32> to vector<8x64xf32>
    %347 = arith.addf %345, %346 : vector<8x64xf32>
    %348 = arith.negf %347 : vector<8x64xf32>
    %349 = math.exp %348 : vector<8x64xf32>
    %cst_110 = arith.constant 1.000000e+00 : f32
    %350 = vector.broadcast %cst_110 : f32 to vector<8x64xf32>
    %351 = arith.addf %350, %349 : vector<8x64xf32>
    %352 = arith.divf %350, %351 : vector<8x64xf32>
    %353 = vector.extract_strided_slice %343 {offsets = [0, 64], sizes = [8, 64], strides = [1, 1]} : vector<8x192xf32> to vector<8x64xf32>
    %354 = vector.extract_strided_slice %344 {offsets = [0, 64], sizes = [8, 64], strides = [1, 1]} : vector<8x192xf32> to vector<8x64xf32>
    %355 = arith.addf %353, %354 : vector<8x64xf32>
    %356 = arith.negf %355 : vector<8x64xf32>
    %357 = math.exp %356 : vector<8x64xf32>
    %cst_111 = arith.constant 1.000000e+00 : f32
    %358 = vector.broadcast %cst_111 : f32 to vector<8x64xf32>
    %359 = arith.addf %358, %357 : vector<8x64xf32>
    %360 = arith.divf %358, %359 : vector<8x64xf32>
    %361 = vector.extract_strided_slice %343 {offsets = [0, 128], sizes = [8, 64], strides = [1, 1]} : vector<8x192xf32> to vector<8x64xf32>
    %362 = vector.extract_strided_slice %344 {offsets = [0, 128], sizes = [8, 64], strides = [1, 1]} : vector<8x192xf32> to vector<8x64xf32>
    %363 = vector.broadcast %124 : vector<1x64xf32> to vector<8x64xf32>
    %364 = arith.addf %362, %363 : vector<8x64xf32>
    %365 = arith.mulf %352, %364 : vector<8x64xf32>
    %366 = arith.addf %361, %365 : vector<8x64xf32>
    %367 = math.tanh %366 : vector<8x64xf32>
    %cst_112 = arith.constant 1.000000e+00 : f32
    %368 = vector.broadcast %cst_112 : f32 to vector<8x64xf32>
    %369 = arith.subf %368, %360 : vector<8x64xf32>
    %370 = arith.mulf %369, %367 : vector<8x64xf32>
    %371 = arith.mulf %360, %337 : vector<8x64xf32>
    %372 = arith.addf %370, %371 : vector<8x64xf32>
    %c48_113 = arith.constant 48 : index
    %c0_114 = arith.constant 0 : index
    %373 = vector.load %arg10[%c48_113, %c0_114] : memref<128x64xf32, #tpu.memory_space<vmem>>, vector<8x64xf32>
    tpu.vector_store %arg10[%c48_113, %c0_114], %372 {strides = array<i32>} : memref<128x64xf32, #tpu.memory_space<vmem>>, vector<8x64xf32>,
    %c56 = arith.constant 56 : index
    %c0_115 = arith.constant 0 : index
    %374 = vector.load %arg11[%c56, %c0_115] : memref<128x192xf32, #tpu.memory_space<vmem>>, vector<8x192xf32>
    %c64 = arith.constant 64 : index
    %c0_116 = arith.constant 0 : index
    %375 = vector.load %arg11[%c64, %c0_116] : memref<128x192xf32, #tpu.memory_space<vmem>>, vector<8x192xf32>
    %376 = vector.shape_cast %127 : vector<1x192xi1> to vector<1x192xi1>
    %377 = vector.broadcast %376 : vector<1x192xi1> to vector<8x192xi1>
    %378 = arith.select %377, %374, %375 : vector<8x192xi1>, vector<8x192xf32>
    %cst_117 = arith.constant dense<0.000000e+00> : vector<8x192xf32>
    %379 = tpu.matmul %372, %123, %cst_117 {dimension_numbers = #tpu.dot_dimension_numbers<[1], [0], [0], [1], [0, 0, 1, 1], [], []>} : vector<8x64xf32>, vector<64x192xf32>, vector<8x192xf32> -> vector<8x192xf32>
    %380 = vector.extract_strided_slice %378 {offsets = [0, 0], sizes = [8, 64], strides = [1, 1]} : vector<8x192xf32> to vector<8x64xf32>
    %381 = vector.extract_strided_slice %379 {offsets = [0, 0], sizes = [8, 64], strides = [1, 1]} : vector<8x192xf32> to vector<8x64xf32>
    %382 = arith.addf %380, %381 : vector<8x64xf32>
    %383 = arith.negf %382 : vector<8x64xf32>
    %384 = math.exp %383 : vector<8x64xf32>
    %cst_118 = arith.constant 1.000000e+00 : f32
    %385 = vector.broadcast %cst_118 : f32 to vector<8x64xf32>
    %386 = arith.addf %385, %384 : vector<8x64xf32>
    %387 = arith.divf %385, %386 : vector<8x64xf32>
    %388 = vector.extract_strided_slice %378 {offsets = [0, 64], sizes = [8, 64], strides = [1, 1]} : vector<8x192xf32> to vector<8x64xf32>
    %389 = vector.extract_strided_slice %379 {offsets = [0, 64], sizes = [8, 64], strides = [1, 1]} : vector<8x192xf32> to vector<8x64xf32>
    %390 = arith.addf %388, %389 : vector<8x64xf32>
    %391 = arith.negf %390 : vector<8x64xf32>
    %392 = math.exp %391 : vector<8x64xf32>
    %cst_119 = arith.constant 1.000000e+00 : f32
    %393 = vector.broadcast %cst_119 : f32 to vector<8x64xf32>
    %394 = arith.addf %393, %392 : vector<8x64xf32>
    %395 = arith.divf %393, %394 : vector<8x64xf32>
    %396 = vector.extract_strided_slice %378 {offsets = [0, 128], sizes = [8, 64], strides = [1, 1]} : vector<8x192xf32> to vector<8x64xf32>
    %397 = vector.extract_strided_slice %379 {offsets = [0, 128], sizes = [8, 64], strides = [1, 1]} : vector<8x192xf32> to vector<8x64xf32>
    %398 = vector.broadcast %124 : vector<1x64xf32> to vector<8x64xf32>
    %399 = arith.addf %397, %398 : vector<8x64xf32>
    %400 = arith.mulf %387, %399 : vector<8x64xf32>
    %401 = arith.addf %396, %400 : vector<8x64xf32>
    %402 = math.tanh %401 : vector<8x64xf32>
    %cst_120 = arith.constant 1.000000e+00 : f32
    %403 = vector.broadcast %cst_120 : f32 to vector<8x64xf32>
    %404 = arith.subf %403, %395 : vector<8x64xf32>
    %405 = arith.mulf %404, %402 : vector<8x64xf32>
    %406 = arith.mulf %395, %372 : vector<8x64xf32>
    %407 = arith.addf %405, %406 : vector<8x64xf32>
    %c56_121 = arith.constant 56 : index
    %c0_122 = arith.constant 0 : index
    %408 = vector.load %arg10[%c56_121, %c0_122] : memref<128x64xf32, #tpu.memory_space<vmem>>, vector<8x64xf32>
    tpu.vector_store %arg10[%c56_121, %c0_122], %407 {strides = array<i32>} : memref<128x64xf32, #tpu.memory_space<vmem>>, vector<8x64xf32>,
    %c64_123 = arith.constant 64 : index
    %c0_124 = arith.constant 0 : index
    %409 = vector.load %arg11[%c64_123, %c0_124] : memref<128x192xf32, #tpu.memory_space<vmem>>, vector<8x192xf32>
    %c56_125 = arith.constant 56 : index
    %c0_126 = arith.constant 0 : index
    %410 = vector.load %arg11[%c56_125, %c0_126] : memref<128x192xf32, #tpu.memory_space<vmem>>, vector<8x192xf32>
    %411 = vector.shape_cast %127 : vector<1x192xi1> to vector<1x192xi1>
    %412 = vector.broadcast %411 : vector<1x192xi1> to vector<8x192xi1>
    %413 = arith.select %412, %409, %410 : vector<8x192xi1>, vector<8x192xf32>
    %cst_127 = arith.constant dense<0.000000e+00> : vector<8x192xf32>
    %414 = tpu.matmul %407, %123, %cst_127 {dimension_numbers = #tpu.dot_dimension_numbers<[1], [0], [0], [1], [0, 0, 1, 1], [], []>} : vector<8x64xf32>, vector<64x192xf32>, vector<8x192xf32> -> vector<8x192xf32>
    %415 = vector.extract_strided_slice %413 {offsets = [0, 0], sizes = [8, 64], strides = [1, 1]} : vector<8x192xf32> to vector<8x64xf32>
    %416 = vector.extract_strided_slice %414 {offsets = [0, 0], sizes = [8, 64], strides = [1, 1]} : vector<8x192xf32> to vector<8x64xf32>
    %417 = arith.addf %415, %416 : vector<8x64xf32>
    %418 = arith.negf %417 : vector<8x64xf32>
    %419 = math.exp %418 : vector<8x64xf32>
    %cst_128 = arith.constant 1.000000e+00 : f32
    %420 = vector.broadcast %cst_128 : f32 to vector<8x64xf32>
    %421 = arith.addf %420, %419 : vector<8x64xf32>
    %422 = arith.divf %420, %421 : vector<8x64xf32>
    %423 = vector.extract_strided_slice %413 {offsets = [0, 64], sizes = [8, 64], strides = [1, 1]} : vector<8x192xf32> to vector<8x64xf32>
    %424 = vector.extract_strided_slice %414 {offsets = [0, 64], sizes = [8, 64], strides = [1, 1]} : vector<8x192xf32> to vector<8x64xf32>
    %425 = arith.addf %423, %424 : vector<8x64xf32>
    %426 = arith.negf %425 : vector<8x64xf32>
    %427 = math.exp %426 : vector<8x64xf32>
    %cst_129 = arith.constant 1.000000e+00 : f32
    %428 = vector.broadcast %cst_129 : f32 to vector<8x64xf32>
    %429 = arith.addf %428, %427 : vector<8x64xf32>
    %430 = arith.divf %428, %429 : vector<8x64xf32>
    %431 = vector.extract_strided_slice %413 {offsets = [0, 128], sizes = [8, 64], strides = [1, 1]} : vector<8x192xf32> to vector<8x64xf32>
    %432 = vector.extract_strided_slice %414 {offsets = [0, 128], sizes = [8, 64], strides = [1, 1]} : vector<8x192xf32> to vector<8x64xf32>
    %433 = vector.broadcast %124 : vector<1x64xf32> to vector<8x64xf32>
    %434 = arith.addf %432, %433 : vector<8x64xf32>
    %435 = arith.mulf %422, %434 : vector<8x64xf32>
    %436 = arith.addf %431, %435 : vector<8x64xf32>
    %437 = math.tanh %436 : vector<8x64xf32>
    %cst_130 = arith.constant 1.000000e+00 : f32
    %438 = vector.broadcast %cst_130 : f32 to vector<8x64xf32>
    %439 = arith.subf %438, %430 : vector<8x64xf32>
    %440 = arith.mulf %439, %437 : vector<8x64xf32>
    %441 = arith.mulf %430, %407 : vector<8x64xf32>
    %442 = arith.addf %440, %441 : vector<8x64xf32>
    %c64_131 = arith.constant 64 : index
    %c0_132 = arith.constant 0 : index
    %443 = vector.load %arg10[%c64_131, %c0_132] : memref<128x64xf32, #tpu.memory_space<vmem>>, vector<8x64xf32>
    tpu.vector_store %arg10[%c64_131, %c0_132], %442 {strides = array<i32>} : memref<128x64xf32, #tpu.memory_space<vmem>>, vector<8x64xf32>,
    %c72_133 = arith.constant 72 : index
    %c0_134 = arith.constant 0 : index
    %444 = vector.load %arg11[%c72_133, %c0_134] : memref<128x192xf32, #tpu.memory_space<vmem>>, vector<8x192xf32>
    %c48_135 = arith.constant 48 : index
    %c0_136 = arith.constant 0 : index
    %445 = vector.load %arg11[%c48_135, %c0_136] : memref<128x192xf32, #tpu.memory_space<vmem>>, vector<8x192xf32>
    %446 = vector.shape_cast %127 : vector<1x192xi1> to vector<1x192xi1>
    %447 = vector.broadcast %446 : vector<1x192xi1> to vector<8x192xi1>
    %448 = arith.select %447, %444, %445 : vector<8x192xi1>, vector<8x192xf32>
    %cst_137 = arith.constant dense<0.000000e+00> : vector<8x192xf32>
    %449 = tpu.matmul %442, %123, %cst_137 {dimension_numbers = #tpu.dot_dimension_numbers<[1], [0], [0], [1], [0, 0, 1, 1], [], []>} : vector<8x64xf32>, vector<64x192xf32>, vector<8x192xf32> -> vector<8x192xf32>
    %450 = vector.extract_strided_slice %448 {offsets = [0, 0], sizes = [8, 64], strides = [1, 1]} : vector<8x192xf32> to vector<8x64xf32>
    %451 = vector.extract_strided_slice %449 {offsets = [0, 0], sizes = [8, 64], strides = [1, 1]} : vector<8x192xf32> to vector<8x64xf32>
    %452 = arith.addf %450, %451 : vector<8x64xf32>
    %453 = arith.negf %452 : vector<8x64xf32>
    %454 = math.exp %453 : vector<8x64xf32>
    %cst_138 = arith.constant 1.000000e+00 : f32
    %455 = vector.broadcast %cst_138 : f32 to vector<8x64xf32>
    %456 = arith.addf %455, %454 : vector<8x64xf32>
    %457 = arith.divf %455, %456 : vector<8x64xf32>
    %458 = vector.extract_strided_slice %448 {offsets = [0, 64], sizes = [8, 64], strides = [1, 1]} : vector<8x192xf32> to vector<8x64xf32>
    %459 = vector.extract_strided_slice %449 {offsets = [0, 64], sizes = [8, 64], strides = [1, 1]} : vector<8x192xf32> to vector<8x64xf32>
    %460 = arith.addf %458, %459 : vector<8x64xf32>
    %461 = arith.negf %460 : vector<8x64xf32>
    %462 = math.exp %461 : vector<8x64xf32>
    %cst_139 = arith.constant 1.000000e+00 : f32
    %463 = vector.broadcast %cst_139 : f32 to vector<8x64xf32>
    %464 = arith.addf %463, %462 : vector<8x64xf32>
    %465 = arith.divf %463, %464 : vector<8x64xf32>
    %466 = vector.extract_strided_slice %448 {offsets = [0, 128], sizes = [8, 64], strides = [1, 1]} : vector<8x192xf32> to vector<8x64xf32>
    %467 = vector.extract_strided_slice %449 {offsets = [0, 128], sizes = [8, 64], strides = [1, 1]} : vector<8x192xf32> to vector<8x64xf32>
    %468 = vector.broadcast %124 : vector<1x64xf32> to vector<8x64xf32>
    %469 = arith.addf %467, %468 : vector<8x64xf32>
    %470 = arith.mulf %457, %469 : vector<8x64xf32>
    %471 = arith.addf %466, %470 : vector<8x64xf32>
    %472 = math.tanh %471 : vector<8x64xf32>
    %cst_140 = arith.constant 1.000000e+00 : f32
    %473 = vector.broadcast %cst_140 : f32 to vector<8x64xf32>
    %474 = arith.subf %473, %465 : vector<8x64xf32>
    %475 = arith.mulf %474, %472 : vector<8x64xf32>
    %476 = arith.mulf %465, %442 : vector<8x64xf32>
    %477 = arith.addf %475, %476 : vector<8x64xf32>
    %c72_141 = arith.constant 72 : index
    %c0_142 = arith.constant 0 : index
    %478 = vector.load %arg10[%c72_141, %c0_142] : memref<128x64xf32, #tpu.memory_space<vmem>>, vector<8x64xf32>
    tpu.vector_store %arg10[%c72_141, %c0_142], %477 {strides = array<i32>} : memref<128x64xf32, #tpu.memory_space<vmem>>, vector<8x64xf32>,
    %c80_143 = arith.constant 80 : index
    %c0_144 = arith.constant 0 : index
    %479 = vector.load %arg11[%c80_143, %c0_144] : memref<128x192xf32, #tpu.memory_space<vmem>>, vector<8x192xf32>
    %c40_145 = arith.constant 40 : index
    %c0_146 = arith.constant 0 : index
    %480 = vector.load %arg11[%c40_145, %c0_146] : memref<128x192xf32, #tpu.memory_space<vmem>>, vector<8x192xf32>
    %481 = vector.shape_cast %127 : vector<1x192xi1> to vector<1x192xi1>
    %482 = vector.broadcast %481 : vector<1x192xi1> to vector<8x192xi1>
    %483 = arith.select %482, %479, %480 : vector<8x192xi1>, vector<8x192xf32>
    %cst_147 = arith.constant dense<0.000000e+00> : vector<8x192xf32>
    %484 = tpu.matmul %477, %123, %cst_147 {dimension_numbers = #tpu.dot_dimension_numbers<[1], [0], [0], [1], [0, 0, 1, 1], [], []>} : vector<8x64xf32>, vector<64x192xf32>, vector<8x192xf32> -> vector<8x192xf32>
    %485 = vector.extract_strided_slice %483 {offsets = [0, 0], sizes = [8, 64], strides = [1, 1]} : vector<8x192xf32> to vector<8x64xf32>
    %486 = vector.extract_strided_slice %484 {offsets = [0, 0], sizes = [8, 64], strides = [1, 1]} : vector<8x192xf32> to vector<8x64xf32>
    %487 = arith.addf %485, %486 : vector<8x64xf32>
    %488 = arith.negf %487 : vector<8x64xf32>
    %489 = math.exp %488 : vector<8x64xf32>
    %cst_148 = arith.constant 1.000000e+00 : f32
    %490 = vector.broadcast %cst_148 : f32 to vector<8x64xf32>
    %491 = arith.addf %490, %489 : vector<8x64xf32>
    %492 = arith.divf %490, %491 : vector<8x64xf32>
    %493 = vector.extract_strided_slice %483 {offsets = [0, 64], sizes = [8, 64], strides = [1, 1]} : vector<8x192xf32> to vector<8x64xf32>
    %494 = vector.extract_strided_slice %484 {offsets = [0, 64], sizes = [8, 64], strides = [1, 1]} : vector<8x192xf32> to vector<8x64xf32>
    %495 = arith.addf %493, %494 : vector<8x64xf32>
    %496 = arith.negf %495 : vector<8x64xf32>
    %497 = math.exp %496 : vector<8x64xf32>
    %cst_149 = arith.constant 1.000000e+00 : f32
    %498 = vector.broadcast %cst_149 : f32 to vector<8x64xf32>
    %499 = arith.addf %498, %497 : vector<8x64xf32>
    %500 = arith.divf %498, %499 : vector<8x64xf32>
    %501 = vector.extract_strided_slice %483 {offsets = [0, 128], sizes = [8, 64], strides = [1, 1]} : vector<8x192xf32> to vector<8x64xf32>
    %502 = vector.extract_strided_slice %484 {offsets = [0, 128], sizes = [8, 64], strides = [1, 1]} : vector<8x192xf32> to vector<8x64xf32>
    %503 = vector.broadcast %124 : vector<1x64xf32> to vector<8x64xf32>
    %504 = arith.addf %502, %503 : vector<8x64xf32>
    %505 = arith.mulf %492, %504 : vector<8x64xf32>
    %506 = arith.addf %501, %505 : vector<8x64xf32>
    %507 = math.tanh %506 : vector<8x64xf32>
    %cst_150 = arith.constant 1.000000e+00 : f32
    %508 = vector.broadcast %cst_150 : f32 to vector<8x64xf32>
    %509 = arith.subf %508, %500 : vector<8x64xf32>
    %510 = arith.mulf %509, %507 : vector<8x64xf32>
    %511 = arith.mulf %500, %477 : vector<8x64xf32>
    %512 = arith.addf %510, %511 : vector<8x64xf32>
    %c80_151 = arith.constant 80 : index
    %c0_152 = arith.constant 0 : index
    %513 = vector.load %arg10[%c80_151, %c0_152] : memref<128x64xf32, #tpu.memory_space<vmem>>, vector<8x64xf32>
    tpu.vector_store %arg10[%c80_151, %c0_152], %512 {strides = array<i32>} : memref<128x64xf32, #tpu.memory_space<vmem>>, vector<8x64xf32>,
    %c88_153 = arith.constant 88 : index
    %c0_154 = arith.constant 0 : index
    %514 = vector.load %arg11[%c88_153, %c0_154] : memref<128x192xf32, #tpu.memory_space<vmem>>, vector<8x192xf32>
    %c32_155 = arith.constant 32 : index
    %c0_156 = arith.constant 0 : index
    %515 = vector.load %arg11[%c32_155, %c0_156] : memref<128x192xf32, #tpu.memory_space<vmem>>, vector<8x192xf32>
    %516 = vector.shape_cast %127 : vector<1x192xi1> to vector<1x192xi1>
    %517 = vector.broadcast %516 : vector<1x192xi1> to vector<8x192xi1>
    %518 = arith.select %517, %514, %515 : vector<8x192xi1>, vector<8x192xf32>
    %cst_157 = arith.constant dense<0.000000e+00> : vector<8x192xf32>
    %519 = tpu.matmul %512, %123, %cst_157 {dimension_numbers = #tpu.dot_dimension_numbers<[1], [0], [0], [1], [0, 0, 1, 1], [], []>} : vector<8x64xf32>, vector<64x192xf32>, vector<8x192xf32> -> vector<8x192xf32>
    %520 = vector.extract_strided_slice %518 {offsets = [0, 0], sizes = [8, 64], strides = [1, 1]} : vector<8x192xf32> to vector<8x64xf32>
    %521 = vector.extract_strided_slice %519 {offsets = [0, 0], sizes = [8, 64], strides = [1, 1]} : vector<8x192xf32> to vector<8x64xf32>
    %522 = arith.addf %520, %521 : vector<8x64xf32>
    %523 = arith.negf %522 : vector<8x64xf32>
    %524 = math.exp %523 : vector<8x64xf32>
    %cst_158 = arith.constant 1.000000e+00 : f32
    %525 = vector.broadcast %cst_158 : f32 to vector<8x64xf32>
    %526 = arith.addf %525, %524 : vector<8x64xf32>
    %527 = arith.divf %525, %526 : vector<8x64xf32>
    %528 = vector.extract_strided_slice %518 {offsets = [0, 64], sizes = [8, 64], strides = [1, 1]} : vector<8x192xf32> to vector<8x64xf32>
    %529 = vector.extract_strided_slice %519 {offsets = [0, 64], sizes = [8, 64], strides = [1, 1]} : vector<8x192xf32> to vector<8x64xf32>
    %530 = arith.addf %528, %529 : vector<8x64xf32>
    %531 = arith.negf %530 : vector<8x64xf32>
    %532 = math.exp %531 : vector<8x64xf32>
    %cst_159 = arith.constant 1.000000e+00 : f32
    %533 = vector.broadcast %cst_159 : f32 to vector<8x64xf32>
    %534 = arith.addf %533, %532 : vector<8x64xf32>
    %535 = arith.divf %533, %534 : vector<8x64xf32>
    %536 = vector.extract_strided_slice %518 {offsets = [0, 128], sizes = [8, 64], strides = [1, 1]} : vector<8x192xf32> to vector<8x64xf32>
    %537 = vector.extract_strided_slice %519 {offsets = [0, 128], sizes = [8, 64], strides = [1, 1]} : vector<8x192xf32> to vector<8x64xf32>
    %538 = vector.broadcast %124 : vector<1x64xf32> to vector<8x64xf32>
    %539 = arith.addf %537, %538 : vector<8x64xf32>
    %540 = arith.mulf %527, %539 : vector<8x64xf32>
    %541 = arith.addf %536, %540 : vector<8x64xf32>
    %542 = math.tanh %541 : vector<8x64xf32>
    %cst_160 = arith.constant 1.000000e+00 : f32
    %543 = vector.broadcast %cst_160 : f32 to vector<8x64xf32>
    %544 = arith.subf %543, %535 : vector<8x64xf32>
    %545 = arith.mulf %544, %542 : vector<8x64xf32>
    %546 = arith.mulf %535, %512 : vector<8x64xf32>
    %547 = arith.addf %545, %546 : vector<8x64xf32>
    %c88_161 = arith.constant 88 : index
    %c0_162 = arith.constant 0 : index
    %548 = vector.load %arg10[%c88_161, %c0_162] : memref<128x64xf32, #tpu.memory_space<vmem>>, vector<8x64xf32>
    tpu.vector_store %arg10[%c88_161, %c0_162], %547 {strides = array<i32>} : memref<128x64xf32, #tpu.memory_space<vmem>>, vector<8x64xf32>,
    %c96_163 = arith.constant 96 : index
    %c0_164 = arith.constant 0 : index
    %549 = vector.load %arg11[%c96_163, %c0_164] : memref<128x192xf32, #tpu.memory_space<vmem>>, vector<8x192xf32>
    %c24_165 = arith.constant 24 : index
    %c0_166 = arith.constant 0 : index
    %550 = vector.load %arg11[%c24_165, %c0_166] : memref<128x192xf32, #tpu.memory_space<vmem>>, vector<8x192xf32>
    %551 = vector.shape_cast %127 : vector<1x192xi1> to vector<1x192xi1>
    %552 = vector.broadcast %551 : vector<1x192xi1> to vector<8x192xi1>
    %553 = arith.select %552, %549, %550 : vector<8x192xi1>, vector<8x192xf32>
    %cst_167 = arith.constant dense<0.000000e+00> : vector<8x192xf32>
    %554 = tpu.matmul %547, %123, %cst_167 {dimension_numbers = #tpu.dot_dimension_numbers<[1], [0], [0], [1], [0, 0, 1, 1], [], []>} : vector<8x64xf32>, vector<64x192xf32>, vector<8x192xf32> -> vector<8x192xf32>
    %555 = vector.extract_strided_slice %553 {offsets = [0, 0], sizes = [8, 64], strides = [1, 1]} : vector<8x192xf32> to vector<8x64xf32>
    %556 = vector.extract_strided_slice %554 {offsets = [0, 0], sizes = [8, 64], strides = [1, 1]} : vector<8x192xf32> to vector<8x64xf32>
    %557 = arith.addf %555, %556 : vector<8x64xf32>
    %558 = arith.negf %557 : vector<8x64xf32>
    %559 = math.exp %558 : vector<8x64xf32>
    %cst_168 = arith.constant 1.000000e+00 : f32
    %560 = vector.broadcast %cst_168 : f32 to vector<8x64xf32>
    %561 = arith.addf %560, %559 : vector<8x64xf32>
    %562 = arith.divf %560, %561 : vector<8x64xf32>
    %563 = vector.extract_strided_slice %553 {offsets = [0, 64], sizes = [8, 64], strides = [1, 1]} : vector<8x192xf32> to vector<8x64xf32>
    %564 = vector.extract_strided_slice %554 {offsets = [0, 64], sizes = [8, 64], strides = [1, 1]} : vector<8x192xf32> to vector<8x64xf32>
    %565 = arith.addf %563, %564 : vector<8x64xf32>
    %566 = arith.negf %565 : vector<8x64xf32>
    %567 = math.exp %566 : vector<8x64xf32>
    %cst_169 = arith.constant 1.000000e+00 : f32
    %568 = vector.broadcast %cst_169 : f32 to vector<8x64xf32>
    %569 = arith.addf %568, %567 : vector<8x64xf32>
    %570 = arith.divf %568, %569 : vector<8x64xf32>
    %571 = vector.extract_strided_slice %553 {offsets = [0, 128], sizes = [8, 64], strides = [1, 1]} : vector<8x192xf32> to vector<8x64xf32>
    %572 = vector.extract_strided_slice %554 {offsets = [0, 128], sizes = [8, 64], strides = [1, 1]} : vector<8x192xf32> to vector<8x64xf32>
    %573 = vector.broadcast %124 : vector<1x64xf32> to vector<8x64xf32>
    %574 = arith.addf %572, %573 : vector<8x64xf32>
    %575 = arith.mulf %562, %574 : vector<8x64xf32>
    %576 = arith.addf %571, %575 : vector<8x64xf32>
    %577 = math.tanh %576 : vector<8x64xf32>
    %cst_170 = arith.constant 1.000000e+00 : f32
    %578 = vector.broadcast %cst_170 : f32 to vector<8x64xf32>
    %579 = arith.subf %578, %570 : vector<8x64xf32>
    %580 = arith.mulf %579, %577 : vector<8x64xf32>
    %581 = arith.mulf %570, %547 : vector<8x64xf32>
    %582 = arith.addf %580, %581 : vector<8x64xf32>
    %c96_171 = arith.constant 96 : index
    %c0_172 = arith.constant 0 : index
    %583 = vector.load %arg10[%c96_171, %c0_172] : memref<128x64xf32, #tpu.memory_space<vmem>>, vector<8x64xf32>
    tpu.vector_store %arg10[%c96_171, %c0_172], %582 {strides = array<i32>} : memref<128x64xf32, #tpu.memory_space<vmem>>, vector<8x64xf32>,
    %c104_173 = arith.constant 104 : index
    %c0_174 = arith.constant 0 : index
    %584 = vector.load %arg11[%c104_173, %c0_174] : memref<128x192xf32, #tpu.memory_space<vmem>>, vector<8x192xf32>
    %c16_175 = arith.constant 16 : index
    %c0_176 = arith.constant 0 : index
    %585 = vector.load %arg11[%c16_175, %c0_176] : memref<128x192xf32, #tpu.memory_space<vmem>>, vector<8x192xf32>
    %586 = vector.shape_cast %127 : vector<1x192xi1> to vector<1x192xi1>
    %587 = vector.broadcast %586 : vector<1x192xi1> to vector<8x192xi1>
    %588 = arith.select %587, %584, %585 : vector<8x192xi1>, vector<8x192xf32>
    %cst_177 = arith.constant dense<0.000000e+00> : vector<8x192xf32>
    %589 = tpu.matmul %582, %123, %cst_177 {dimension_numbers = #tpu.dot_dimension_numbers<[1], [0], [0], [1], [0, 0, 1, 1], [], []>} : vector<8x64xf32>, vector<64x192xf32>, vector<8x192xf32> -> vector<8x192xf32>
    %590 = vector.extract_strided_slice %588 {offsets = [0, 0], sizes = [8, 64], strides = [1, 1]} : vector<8x192xf32> to vector<8x64xf32>
    %591 = vector.extract_strided_slice %589 {offsets = [0, 0], sizes = [8, 64], strides = [1, 1]} : vector<8x192xf32> to vector<8x64xf32>
    %592 = arith.addf %590, %591 : vector<8x64xf32>
    %593 = arith.negf %592 : vector<8x64xf32>
    %594 = math.exp %593 : vector<8x64xf32>
    %cst_178 = arith.constant 1.000000e+00 : f32
    %595 = vector.broadcast %cst_178 : f32 to vector<8x64xf32>
    %596 = arith.addf %595, %594 : vector<8x64xf32>
    %597 = arith.divf %595, %596 : vector<8x64xf32>
    %598 = vector.extract_strided_slice %588 {offsets = [0, 64], sizes = [8, 64], strides = [1, 1]} : vector<8x192xf32> to vector<8x64xf32>
    %599 = vector.extract_strided_slice %589 {offsets = [0, 64], sizes = [8, 64], strides = [1, 1]} : vector<8x192xf32> to vector<8x64xf32>
    %600 = arith.addf %598, %599 : vector<8x64xf32>
    %601 = arith.negf %600 : vector<8x64xf32>
    %602 = math.exp %601 : vector<8x64xf32>
    %cst_179 = arith.constant 1.000000e+00 : f32
    %603 = vector.broadcast %cst_179 : f32 to vector<8x64xf32>
    %604 = arith.addf %603, %602 : vector<8x64xf32>
    %605 = arith.divf %603, %604 : vector<8x64xf32>
    %606 = vector.extract_strided_slice %588 {offsets = [0, 128], sizes = [8, 64], strides = [1, 1]} : vector<8x192xf32> to vector<8x64xf32>
    %607 = vector.extract_strided_slice %589 {offsets = [0, 128], sizes = [8, 64], strides = [1, 1]} : vector<8x192xf32> to vector<8x64xf32>
    %608 = vector.broadcast %124 : vector<1x64xf32> to vector<8x64xf32>
    %609 = arith.addf %607, %608 : vector<8x64xf32>
    %610 = arith.mulf %597, %609 : vector<8x64xf32>
    %611 = arith.addf %606, %610 : vector<8x64xf32>
    %612 = math.tanh %611 : vector<8x64xf32>
    %cst_180 = arith.constant 1.000000e+00 : f32
    %613 = vector.broadcast %cst_180 : f32 to vector<8x64xf32>
    %614 = arith.subf %613, %605 : vector<8x64xf32>
    %615 = arith.mulf %614, %612 : vector<8x64xf32>
    %616 = arith.mulf %605, %582 : vector<8x64xf32>
    %617 = arith.addf %615, %616 : vector<8x64xf32>
    %c104_181 = arith.constant 104 : index
    %c0_182 = arith.constant 0 : index
    %618 = vector.load %arg10[%c104_181, %c0_182] : memref<128x64xf32, #tpu.memory_space<vmem>>, vector<8x64xf32>
    tpu.vector_store %arg10[%c104_181, %c0_182], %617 {strides = array<i32>} : memref<128x64xf32, #tpu.memory_space<vmem>>, vector<8x64xf32>,
    %c112_183 = arith.constant 112 : index
    %c0_184 = arith.constant 0 : index
    %619 = vector.load %arg11[%c112_183, %c0_184] : memref<128x192xf32, #tpu.memory_space<vmem>>, vector<8x192xf32>
    %c8_185 = arith.constant 8 : index
    %c0_186 = arith.constant 0 : index
    %620 = vector.load %arg11[%c8_185, %c0_186] : memref<128x192xf32, #tpu.memory_space<vmem>>, vector<8x192xf32>
    %621 = vector.shape_cast %127 : vector<1x192xi1> to vector<1x192xi1>
    %622 = vector.broadcast %621 : vector<1x192xi1> to vector<8x192xi1>
    %623 = arith.select %622, %619, %620 : vector<8x192xi1>, vector<8x192xf32>
    %cst_187 = arith.constant dense<0.000000e+00> : vector<8x192xf32>
    %624 = tpu.matmul %617, %123, %cst_187 {dimension_numbers = #tpu.dot_dimension_numbers<[1], [0], [0], [1], [0, 0, 1, 1], [], []>} : vector<8x64xf32>, vector<64x192xf32>, vector<8x192xf32> -> vector<8x192xf32>
    %625 = vector.extract_strided_slice %623 {offsets = [0, 0], sizes = [8, 64], strides = [1, 1]} : vector<8x192xf32> to vector<8x64xf32>
    %626 = vector.extract_strided_slice %624 {offsets = [0, 0], sizes = [8, 64], strides = [1, 1]} : vector<8x192xf32> to vector<8x64xf32>
    %627 = arith.addf %625, %626 : vector<8x64xf32>
    %628 = arith.negf %627 : vector<8x64xf32>
    %629 = math.exp %628 : vector<8x64xf32>
    %cst_188 = arith.constant 1.000000e+00 : f32
    %630 = vector.broadcast %cst_188 : f32 to vector<8x64xf32>
    %631 = arith.addf %630, %629 : vector<8x64xf32>
    %632 = arith.divf %630, %631 : vector<8x64xf32>
    %633 = vector.extract_strided_slice %623 {offsets = [0, 64], sizes = [8, 64], strides = [1, 1]} : vector<8x192xf32> to vector<8x64xf32>
    %634 = vector.extract_strided_slice %624 {offsets = [0, 64], sizes = [8, 64], strides = [1, 1]} : vector<8x192xf32> to vector<8x64xf32>
    %635 = arith.addf %633, %634 : vector<8x64xf32>
    %636 = arith.negf %635 : vector<8x64xf32>
    %637 = math.exp %636 : vector<8x64xf32>
    %cst_189 = arith.constant 1.000000e+00 : f32
    %638 = vector.broadcast %cst_189 : f32 to vector<8x64xf32>
    %639 = arith.addf %638, %637 : vector<8x64xf32>
    %640 = arith.divf %638, %639 : vector<8x64xf32>
    %641 = vector.extract_strided_slice %623 {offsets = [0, 128], sizes = [8, 64], strides = [1, 1]} : vector<8x192xf32> to vector<8x64xf32>
    %642 = vector.extract_strided_slice %624 {offsets = [0, 128], sizes = [8, 64], strides = [1, 1]} : vector<8x192xf32> to vector<8x64xf32>
    %643 = vector.broadcast %124 : vector<1x64xf32> to vector<8x64xf32>
    %644 = arith.addf %642, %643 : vector<8x64xf32>
    %645 = arith.mulf %632, %644 : vector<8x64xf32>
    %646 = arith.addf %641, %645 : vector<8x64xf32>
    %647 = math.tanh %646 : vector<8x64xf32>
    %cst_190 = arith.constant 1.000000e+00 : f32
    %648 = vector.broadcast %cst_190 : f32 to vector<8x64xf32>
    %649 = arith.subf %648, %640 : vector<8x64xf32>
    %650 = arith.mulf %649, %647 : vector<8x64xf32>
    %651 = arith.mulf %640, %617 : vector<8x64xf32>
    %652 = arith.addf %650, %651 : vector<8x64xf32>
    %c112_191 = arith.constant 112 : index
    %c0_192 = arith.constant 0 : index
    %653 = vector.load %arg10[%c112_191, %c0_192] : memref<128x64xf32, #tpu.memory_space<vmem>>, vector<8x64xf32>
    tpu.vector_store %arg10[%c112_191, %c0_192], %652 {strides = array<i32>} : memref<128x64xf32, #tpu.memory_space<vmem>>, vector<8x64xf32>,
    %c120_193 = arith.constant 120 : index
    %c0_194 = arith.constant 0 : index
    %654 = vector.load %arg11[%c120_193, %c0_194] : memref<128x192xf32, #tpu.memory_space<vmem>>, vector<8x192xf32>
    %c0_195 = arith.constant 0 : index
    %c0_196 = arith.constant 0 : index
    %655 = vector.load %arg11[%c0_195, %c0_196] : memref<128x192xf32, #tpu.memory_space<vmem>>, vector<8x192xf32>
    %656 = vector.shape_cast %127 : vector<1x192xi1> to vector<1x192xi1>
    %657 = vector.broadcast %656 : vector<1x192xi1> to vector<8x192xi1>
    %658 = arith.select %657, %654, %655 : vector<8x192xi1>, vector<8x192xf32>
    %cst_197 = arith.constant dense<0.000000e+00> : vector<8x192xf32>
    %659 = tpu.matmul %652, %123, %cst_197 {dimension_numbers = #tpu.dot_dimension_numbers<[1], [0], [0], [1], [0, 0, 1, 1], [], []>} : vector<8x64xf32>, vector<64x192xf32>, vector<8x192xf32> -> vector<8x192xf32>
    %660 = vector.extract_strided_slice %658 {offsets = [0, 0], sizes = [8, 64], strides = [1, 1]} : vector<8x192xf32> to vector<8x64xf32>
    %661 = vector.extract_strided_slice %659 {offsets = [0, 0], sizes = [8, 64], strides = [1, 1]} : vector<8x192xf32> to vector<8x64xf32>
    %662 = arith.addf %660, %661 : vector<8x64xf32>
    %663 = arith.negf %662 : vector<8x64xf32>
    %664 = math.exp %663 : vector<8x64xf32>
    %cst_198 = arith.constant 1.000000e+00 : f32
    %665 = vector.broadcast %cst_198 : f32 to vector<8x64xf32>
    %666 = arith.addf %665, %664 : vector<8x64xf32>
    %667 = arith.divf %665, %666 : vector<8x64xf32>
    %668 = vector.extract_strided_slice %658 {offsets = [0, 64], sizes = [8, 64], strides = [1, 1]} : vector<8x192xf32> to vector<8x64xf32>
    %669 = vector.extract_strided_slice %659 {offsets = [0, 64], sizes = [8, 64], strides = [1, 1]} : vector<8x192xf32> to vector<8x64xf32>
    %670 = arith.addf %668, %669 : vector<8x64xf32>
    %671 = arith.negf %670 : vector<8x64xf32>
    %672 = math.exp %671 : vector<8x64xf32>
    %cst_199 = arith.constant 1.000000e+00 : f32
    %673 = vector.broadcast %cst_199 : f32 to vector<8x64xf32>
    %674 = arith.addf %673, %672 : vector<8x64xf32>
    %675 = arith.divf %673, %674 : vector<8x64xf32>
    %676 = vector.extract_strided_slice %658 {offsets = [0, 128], sizes = [8, 64], strides = [1, 1]} : vector<8x192xf32> to vector<8x64xf32>
    %677 = vector.extract_strided_slice %659 {offsets = [0, 128], sizes = [8, 64], strides = [1, 1]} : vector<8x192xf32> to vector<8x64xf32>
    %678 = vector.broadcast %124 : vector<1x64xf32> to vector<8x64xf32>
    %679 = arith.addf %677, %678 : vector<8x64xf32>
    %680 = arith.mulf %667, %679 : vector<8x64xf32>
    %681 = arith.addf %676, %680 : vector<8x64xf32>
    %682 = math.tanh %681 : vector<8x64xf32>
    %cst_200 = arith.constant 1.000000e+00 : f32
    %683 = vector.broadcast %cst_200 : f32 to vector<8x64xf32>
    %684 = arith.subf %683, %675 : vector<8x64xf32>
    %685 = arith.mulf %684, %682 : vector<8x64xf32>
    %686 = arith.mulf %675, %652 : vector<8x64xf32>
    %687 = arith.addf %685, %686 : vector<8x64xf32>
    %c120_201 = arith.constant 120 : index
    %c0_202 = arith.constant 0 : index
    %688 = vector.load %arg10[%c120_201, %c0_202] : memref<128x64xf32, #tpu.memory_space<vmem>>, vector<8x64xf32>
    tpu.vector_store %arg10[%c120_201, %c0_202], %687 {strides = array<i32>} : memref<128x64xf32, #tpu.memory_space<vmem>>, vector<8x64xf32>,
    return
  }
  func.func @transform_0(%arg0: i32) -> (i32, i32) {
    %c0_i32 = arith.constant 0 : i32
    %c0_i32_0 = arith.constant 0 : i32
    %c0_i32_1 = arith.constant 0 : i32
    return %c0_i32, %c0_i32_0 : i32, i32
  }
  func.func @transform_1(%arg0: i32) -> (i32, i32) {
    %c0_i32 = arith.constant 0 : i32
    %c0_i32_0 = arith.constant 0 : i32
    %c0_i32_1 = arith.constant 0 : i32
    return %c0_i32, %c0_i32_0 : i32, i32
  }
  func.func @transform_2(%arg0: i32) -> (i32, i32) {
    %c0_i32 = arith.constant 0 : i32
    %c0_i32_0 = arith.constant 0 : i32
    %c0_i32_1 = arith.constant 0 : i32
    return %c0_i32, %c0_i32_0 : i32, i32
  }
  func.func @transform_3(%arg0: i32) -> (i32, i32) {
    %c0_i32 = arith.constant 0 : i32
    %c0_i32_0 = arith.constant 0 : i32
    %c0_i32_1 = arith.constant 0 : i32
    return %c0_i32, %c0_i32_0 : i32, i32
  }
  func.func @transform_4(%arg0: i32) -> (i32, i32) {
    %c0_i32 = arith.constant 0 : i32
    %c0_i32_0 = arith.constant 0 : i32
    %c0_i32_1 = arith.constant 0 : i32
    return %c0_i32, %c0_i32_0 : i32, i32
  }
  func.func @transform_5(%arg0: i32) -> (i32, i32, i32) {
    %c0_i32 = arith.constant 0 : i32
    %c0_i32_0 = arith.constant 0 : i32
    %c0_i32_1 = arith.constant 0 : i32
    %c0_i32_2 = arith.constant 0 : i32
    return %c0_i32, %c0_i32_0, %c0_i32_1 : i32, i32, i32
  }
  func.func @transform_6(%arg0: i32) -> (i32, i32) {
    %c0_i32 = arith.constant 0 : i32
    %c0_i32_0 = arith.constant 0 : i32
    %c0_i32_1 = arith.constant 0 : i32
    return %c0_i32, %c0_i32_0 : i32, i32
  }
  func.func @transform_7(%arg0: i32) -> (i32, i32) {
    %c0_i32 = arith.constant 0 : i32
    %c0_i32_0 = arith.constant 0 : i32
    %c0_i32_1 = arith.constant 0 : i32
    return %c0_i32, %c0_i32_0 : i32, i32
  }
  func.func @transform_8(%arg0: i32) -> (i32, i32) {
    %c0_i32 = arith.constant 0 : i32
    %c0_i32_0 = arith.constant 0 : i32
    %c0_i32_1 = arith.constant 0 : i32
    return %c0_i32, %c0_i32_0 : i32, i32
  }
  func.func @transform_9(%arg0: i32) -> (i32, i32) {
    %c0_i32 = arith.constant 0 : i32
    %c0_i32_0 = arith.constant 0 : i32
    %c0_i32_1 = arith.constant 0 : i32
    return %c0_i32, %c0_i32_0 : i32, i32
  }
}

</mosaic_0001>

<llo_original>
// kernel: tpu_custom_call.1
$region0: #{tpu_custom_call.1}
  #allocation0 [shape = 'u32[]', space=smem, size = 0x4, offset = 0x4, fixed_abs, tag = 'smem constant byte address 0x4 - core index']
  #allocation1 [shape = 'u32[144,128]{1,0:T(1,128)}', space=vmem, size = 0x12000, scoped, tag = 'internal scratch']
  #allocation2 [shape = 'f32[128,192]{1,0:T(8,128)}', space=vmem, size = 0x20000, scoped, tag = 'scratch operand']
  %s0 = inlined_call_operand.vmem [shape: f32[128,16], index: 0, kind: input, shape index: {}]
  %s1 = inlined_call_operand.vmem [shape: f32[64,128], index: 1, kind: input, shape index: {}]
  %s2 = inlined_call_operand.vmem [shape: f32[384,32], index: 2, kind: input, shape index: {}]
  %s3 = inlined_call_operand.vmem [shape: f32[96,32], index: 3, kind: input, shape index: {}]
  %s4 = inlined_call_operand.vmem [shape: f32[16,32], index: 4, kind: input, shape index: {}]
  %s5 = inlined_call_operand.vmem [shape: f32[2,32,64], index: 5, kind: input, shape index: {}]
  %s6 = inlined_call_operand.vmem [shape: f32[32,192], index: 6, kind: input, shape index: {}]
  %s7 = inlined_call_operand.vmem [shape: f32[64,192], index: 7, kind: input, shape index: {}]
  %s8 = inlined_call_operand.vmem [shape: f32[8,192], index: 8, kind: input, shape index: {}]
  %s9 = inlined_call_operand.vmem [shape: f32[128,64], index: 9, kind: output, shape index: {}]
  %s10 = sld [smem:[#allocation0]]
  $region46: #{tpu_custom_call.1} parent=0
    _
  %s12 = ssub.s32 1, %s10
  %s13 = scalar_select 0, %s12, %s10
  // Predicated region
  $region2: #{tpu_custom_call.1} parent=0 // pred_check
    _
  $region3: #{tpu_custom_call.1} parent=0 // pred_check_branch
    %15 = sbr.rel (0) target = $region5
  $region4: #{tpu_custom_call.1} parent=0 // pred_region
    _
  $region5: #{tpu_custom_call.1} parent=0 // pred_fallthru
    _
  // Predicated region
  $region6: #{tpu_custom_call.1} parent=0 // pred_check
    _
  $region7: #{tpu_custom_call.1} parent=0 // pred_check_branch
    %17 = sbr.rel (0) target = $region9
  $region8: #{tpu_custom_call.1} parent=0 // pred_region
    _
  $region9: #{tpu_custom_call.1} parent=0 // pred_fallthru
    _
  // Predicated region
  $region10: #{tpu_custom_call.1} parent=0 // pred_check
    _
  $region11: #{tpu_custom_call.1} parent=0 // pred_check_branch
    %19 = sbr.rel (0) target = $region13
  $region12: #{tpu_custom_call.1} parent=0 // pred_region
    _
  $region13: #{tpu_custom_call.1} parent=0 // pred_fallthru
    _
  // Predicated region
  $region14: #{tpu_custom_call.1} parent=0 // pred_check
    _
  $region15: #{tpu_custom_call.1} parent=0 // pred_check_branch
    %21 = sbr.rel (0) target = $region17
  $region16: #{tpu_custom_call.1} parent=0 // pred_region
    _
  $region17: #{tpu_custom_call.1} parent=0 // pred_fallthru
    _
  // Predicated region
  $region18: #{tpu_custom_call.1} parent=0 // pred_check
    _
  $region19: #{tpu_custom_call.1} parent=0 // pred_check_branch
    %23 = sbr.rel (0) target = $region21
  $region20: #{tpu_custom_call.1} parent=0 // pred_region
    _
  $region21: #{tpu_custom_call.1} parent=0 // pred_fallthru
    _
  // Predicated region
  $region22: #{tpu_custom_call.1} parent=0 // pred_check
    _
  $region23: #{tpu_custom_call.1} parent=0 // pred_check_branch
    %25 = sbr.rel (0) target = $region25
  $region24: #{tpu_custom_call.1} parent=0 // pred_region
    _
  $region25: #{tpu_custom_call.1} parent=0 // pred_fallthru
    _
  // Predicated region
  $region26: #{tpu_custom_call.1} parent=0 // pred_check
    _
  $region27: #{tpu_custom_call.1} parent=0 // pred_check_branch
    %27 = sbr.rel (0) target = $region29
  $region28: #{tpu_custom_call.1} parent=0 // pred_region
    _
  $region29: #{tpu_custom_call.1} parent=0 // pred_fallthru
    _
  // Predicated region
  $region30: #{tpu_custom_call.1} parent=0 // pred_check
    _
  $region31: #{tpu_custom_call.1} parent=0 // pred_check_branch
    %29 = sbr.rel (0) target = $region33
  $region32: #{tpu_custom_call.1} parent=0 // pred_region
    _
  $region33: #{tpu_custom_call.1} parent=0 // pred_fallthru
    _
  // Predicated region
  $region34: #{tpu_custom_call.1} parent=0 // pred_check
    _
  $region35: #{tpu_custom_call.1} parent=0 // pred_check_branch
    %31 = sbr.rel (0) target = $region37
  $region36: #{tpu_custom_call.1} parent=0 // pred_region
    _
  $region37: #{tpu_custom_call.1} parent=0 // pred_fallthru
    _
  %v32 = vld [vmem:[%s0] sm:$0xff]
  %v33 = vld [vmem:[%s0 + $0x8] sm:$0xff]
  %v34 = vld [vmem:[%s0 + $0x10] sm:$0xff]
  %v35 = vld [vmem:[%s0 + $0x18] sm:$0xff]
  %v36 = vld [vmem:[%s0 + $0x20] sm:$0xff]
  %v37 = vld [vmem:[%s0 + $0x28] sm:$0xff]
  %v38 = vld [vmem:[%s0 + $0x30] sm:$0xff]
  %v39 = vld [vmem:[%s0 + $0x38] sm:$0xff]
  %v40 = vld [vmem:[%s0 + $0x40] sm:$0xff]
  %v41 = vld [vmem:[%s0 + $0x48] sm:$0xff]
  %v42 = vld [vmem:[%s0 + $0x50] sm:$0xff]
  %v43 = vld [vmem:[%s0 + $0x58] sm:$0xff]
  %v44 = vld [vmem:[%s0 + $0x60] sm:$0xff]
  %v45 = vld [vmem:[%s0 + $0x68] sm:$0xff]
  %v46 = vld [vmem:[%s0 + $0x70] sm:$0xff]
  %v47 = vld [vmem:[%s0 + $0x78] sm:$0xff]
  %v48 = vld [vmem:[%s8] sm:$0xff]
  %v49 = vld [vmem:[%s8 + $0x8] sm:$0xff]
  %v50 = vld [vmem:[%s4] sm:$0xff]
  %v51 = vld [vmem:[%s4 + $0x8] sm:$0xff]
  %vm52 = vcmask 130048
  %v54 = vsel %vm52, %v32, 0
  %v57 = vsel %vm52, %v33, 0
  %v60 = vsel %vm52, %v34, 0
  %v63 = vsel %vm52, %v35, 0
  %v66 = vsel %vm52, %v36, 0
  %v69 = vsel %vm52, %v37, 0
  %v72 = vsel %vm52, %v38, 0
  %v75 = vsel %vm52, %v39, 0
  %v78 = vsel %vm52, %v40, 0
  %v81 = vsel %vm52, %v41, 0
  %v84 = vsel %vm52, %v42, 0
  %v87 = vsel %vm52, %v43, 0
  %v90 = vsel %vm52, %v44, 0
  %v93 = vsel %vm52, %v45, 0
  %v96 = vsel %vm52, %v46, 0
  %v99 = vsel %vm52, %v47, 0
  %101 = vmatprep.subr.mxu0 0.0
  %102 = vmatpush1.msra.mxu0 0.0
  %103 = vmatprep.subr.mxu0 0.0
  %104 = vmatpush1.msra.mxu0 0.0
  %105 = vmatprep.subr.mxu0 0.0
  %106 = vmatpush1.msra.mxu0 0.0
  %107 = vmatprep.subr.mxu0 0.0
  %108 = vmatpush1.msra.mxu0 0.0
  %109 = vmatprep.subr.mxu0 0.0
  %110 = vmatpush1.msra.mxu0 0.0
  %111 = vmatprep.subr.mxu0 0.0
  %112 = vmatpush1.msra.mxu0 0.0
  %113 = vmatprep.subr.mxu0 0.0
  %114 = vmatpush1.msra.mxu0 0.0
  %115 = vmatprep.subr.mxu0 0.0
  %116 = vmatpush1.msra.mxu0 0.0
  %117 = vmatprep.subr.mxu0 0.0
  %118 = vmatpush1.msra.mxu0 0.0
  %119 = vmatprep.subr.mxu0 0.0
  %120 = vmatpush1.msra.mxu0 0.0
  %121 = vmatprep.subr.mxu0 0.0
  %122 = vmatpush1.msra.mxu0 0.0
  %123 = vmatprep.subr.mxu0 0.0
  %124 = vmatpush1.msra.mxu0 0.0
  %125 = vmatprep.subr.mxu0 0.0
  %126 = vmatpush1.msra.mxu0 0.0
  %127 = vmatprep.subr.mxu0 0.0
  %128 = vmatpush1.msra.mxu0 0.0
  %129 = vmatprep.subr.mxu0 0.0
  %130 = vmatpush1.msra.mxu0 %v51
  %131 = vmatprep.subr.mxu0 0.0
  %132 = vmatpush1.msra.mxu0 %v50
  %133 = vmatprep.subr.mxu0 0.0
  %134 = vmatpush2.msra.mxu0 0.0
  %135 = vmatprep.subr.mxu0 0.0
  %136 = vmatpush2.msra.mxu0 0.0
  %137 = vmatprep.subr.mxu0 0.0
  %138 = vmatpush2.msra.mxu0 0.0
  %139 = vmatprep.subr.mxu0 0.0
  %140 = vmatpush2.msra.mxu0 0.0
  %141 = vmatprep.subr.mxu0 0.0
  %142 = vmatpush2.msra.mxu0 0.0
  %143 = vmatprep.subr.mxu0 0.0
  %144 = vmatpush2.msra.mxu0 0.0
  %145 = vmatprep.subr.mxu0 0.0
  %146 = vmatpush2.msra.mxu0 0.0
  %147 = vmatprep.subr.mxu0 0.0
  %148 = vmatpush2.msra.mxu0 0.0
  %149 = vmatprep.subr.mxu0 0.0
  %150 = vmatpush2.msra.mxu0 0.0
  %151 = vmatprep.subr.mxu0 0.0
  %152 = vmatpush2.msra.mxu0 0.0
  %153 = vmatprep.subr.mxu0 0.0
  %154 = vmatpush2.msra.mxu0 0.0
  %155 = vmatprep.subr.mxu0 0.0
  %156 = vmatpush2.msra.mxu0 0.0
  %157 = vmatprep.subr.mxu0 0.0
  %158 = vmatpush2.msra.mxu0 0.0
  %159 = vmatprep.subr.mxu0 0.0
  %160 = vmatpush2.msra.mxu0 0.0
  %161 = vmatprep.subr.mxu0 0.0
  %162 = vmatpush2.msra.mxu0 0.0
  %163 = vmatprep.subr.mxu0 0.0
  %164 = vmatpush2.msra.mxu0 0.0
  %165 = vmatprep.mubr.f32.mxu0 0.0
  %166 = vmatmul.mubr.f32.gmra.mxu0 %v54
  %v167 = vpop.f32.mrf.mxu0
  %v168 = vadd.f32 0.0, %v167
  %v169 = vpop.f32.mrf.mxu0
  %170 = vmatprep.mubr.f32.mxu0 0.0
  %171 = vmatmul.mubr.f32.gmra.mxu0 %v57
  %v172 = vpop.f32.mrf.mxu0
  %v173 = vadd.f32 0.0, %v172
  %v174 = vpop.f32.mrf.mxu0
  %175 = vmatprep.mubr.f32.mxu0 0.0
  %176 = vmatmul.mubr.f32.gmra.mxu0 %v60
  %v177 = vpop.f32.mrf.mxu0
  %v178 = vadd.f32 0.0, %v177
  %v179 = vpop.f32.mrf.mxu0
  %180 = vmatprep.mubr.f32.mxu0 0.0
  %181 = vmatmul.mubr.f32.gmra.mxu0 %v63
  %v182 = vpop.f32.mrf.mxu0
  %v183 = vadd.f32 0.0, %v182
  %v184 = vpop.f32.mrf.mxu0
  %185 = vmatprep.mubr.f32.mxu0 0.0
  %186 = vmatmul.mubr.f32.gmra.mxu0 %v66
  %v187 = vpop.f32.mrf.mxu0
  %v188 = vadd.f32 0.0, %v187
  %v189 = vpop.f32.mrf.mxu0
  %190 = vmatprep.mubr.f32.mxu0 0.0
  %191 = vmatmul.mubr.f32.gmra.mxu0 %v69
  %v192 = vpop.f32.mrf.mxu0
  %v193 = vadd.f32 0.0, %v192
  %v194 = vpop.f32.mrf.mxu0
  %195 = vmatprep.mubr.f32.mxu0 0.0
  %196 = vmatmul.mubr.f32.gmra.mxu0 %v72
  %v197 = vpop.f32.mrf.mxu0
  %v198 = vadd.f32 0.0, %v197
  %v199 = vpop.f32.mrf.mxu0
  %200 = vmatprep.mubr.f32.mxu0 0.0
  %201 = vmatmul.mubr.f32.gmra.mxu0 %v75
  %v202 = vpop.f32.mrf.mxu0
  %v203 = vadd.f32 0.0, %v202
  %v204 = vpop.f32.mrf.mxu0
  %205 = vmatprep.mubr.f32.mxu0 0.0
  %206 = vmatmul.mubr.f32.gmra.mxu0 %v78
  %v207 = vpop.f32.mrf.mxu0
  %v208 = vadd.f32 0.0, %v207
  %v209 = vpop.f32.mrf.mxu0
  %210 = vmatprep.mubr.f32.mxu0 0.0
  %211 = vmatmul.mubr.f32.gmra.mxu0 %v81
  %v212 = vpop.f32.mrf.mxu0
  %v213 = vadd.f32 0.0, %v212
  %v214 = vpop.f32.mrf.mxu0
  %215 = vmatprep.mubr.f32.mxu0 0.0
  %216 = vmatmul.mubr.f32.gmra.mxu0 %v84
  %v217 = vpop.f32.mrf.mxu0
  %v218 = vadd.f32 0.0, %v217
  %v219 = vpop.f32.mrf.mxu0
  %220 = vmatprep.mubr.f32.mxu0 0.0
  %221 = vmatmul.mubr.f32.gmra.mxu0 %v87
  %v222 = vpop.f32.mrf.mxu0
  %v223 = vadd.f32 0.0, %v222
  %v224 = vpop.f32.mrf.mxu0
  %225 = vmatprep.mubr.f32.mxu0 0.0
  %226 = vmatmul.mubr.f32.gmra.mxu0 %v90
  %v227 = vpop.f32.mrf.mxu0
  %v228 = vadd.f32 0.0, %v227
  %v229 = vpop.f32.mrf.mxu0
  %230 = vmatprep.mubr.f32.mxu0 0.0
  %231 = vmatmul.mubr.f32.gmra.mxu0 %v93
  %v232 = vpop.f32.mrf.mxu0
  %v233 = vadd.f32 0.0, %v232
  %v234 = vpop.f32.mrf.mxu0
  %235 = vmatprep.mubr.f32.mxu0 0.0
  %236 = vmatmul.mubr.f32.gmra.mxu0 %v96
  %v237 = vpop.f32.mrf.mxu0
  %v238 = vadd.f32 0.0, %v237
  %v239 = vpop.f32.mrf.mxu0
  %240 = vmatprep.mubr.f32.mxu0 0.0
  %241 = vmatmul.mubr.f32.gmra.mxu0 %v99
  %v242 = vpop.f32.mrf.mxu0
  %v243 = vadd.f32 0.0, %v242
  %v244 = vpop.f32.mrf.mxu0
  %245 = vdwg.mxu0
  %v246 = vlaneseq
  %v247 = vshrl.u32 %v246, 7
  %v248 = vadd.s32 %v247, 8
  %v249 = vadd.s32 %v247, 16
  %v250 = vadd.s32 %v247, 24
  %v251 = vadd.s32 %v247, 32
  %v252 = vadd.s32 %v247, 40
  %v253 = vadd.s32 %v247, 48
  %v254 = vadd.s32 %v247, 56
  %v255 = vadd.s32 %v247, 64
  %v256 = vadd.s32 %v247, 72
  %v257 = vadd.s32 %v247, 80
  %v258 = vadd.s32 %v247, 88
  %v259 = vadd.s32 %v247, 96
  %v260 = vadd.s32 %v247, 104
  %v261 = vadd.s32 %v247, 112
  %v262 = vadd.s32 %v247, 120
  %vm263 = vcmp.ge.s32.totalorder %v247, 16
  %vm264 = vcmp.ge.s32.totalorder %v248, 16
  %vm265 = vcmp.ge.s32.totalorder %v249, 16
  %vm266 = vcmp.ge.s32.totalorder %v250, 16
  %vm267 = vcmp.ge.s32.totalorder %v251, 16
  %vm268 = vcmp.ge.s32.totalorder %v252, 16
  %vm269 = vcmp.ge.s32.totalorder %v253, 16
  %vm270 = vcmp.ge.s32.totalorder %v254, 16
  %vm271 = vcmp.ge.s32.totalorder %v255, 16
  %vm272 = vcmp.ge.s32.totalorder %v256, 16
  %vm273 = vcmp.ge.s32.totalorder %v257, 16
  %vm274 = vcmp.ge.s32.totalorder %v258, 16
  %vm275 = vcmp.ge.s32.totalorder %v259, 16
  %vm276 = vcmp.ge.s32.totalorder %v260, 16
  %vm277 = vcmp.ge.s32.totalorder %v261, 16
  %vm278 = vcmp.ge.s32.totalorder %v262, 16
  %v279 = vsel %vm263, %v46, 0.0
  %v280 = vsel %vm264, %v47, 0.0
  %v281 = vsel %vm265, %v32, 0.0
  %v282 = vsel %vm266, %v33, 0.0
  %v283 = vsel %vm267, %v34, 0.0
  %v284 = vsel %vm268, %v35, 0.0
  %v285 = vsel %vm269, %v36, 0.0
  %v286 = vsel %vm270, %v37, 0.0
  %v287 = vsel %vm271, %v38, 0.0
  %v288 = vsel %vm272, %v39, 0.0
  %v289 = vsel %vm273, %v40, 0.0
  %v290 = vsel %vm274, %v41, 0.0
  %v291 = vsel %vm275, %v42, 0.0
  %v292 = vsel %vm276, %v43, 0.0
  %v293 = vsel %vm277, %v44, 0.0
  %v294 = vsel %vm278, %v45, 0.0
  %vm295 = vcmp.ge.s32.totalorder %v247, 8
  %vm296 = vcmp.ge.s32.totalorder %v248, 8
  %vm297 = vcmp.ge.s32.totalorder %v249, 8
  %vm298 = vcmp.ge.s32.totalorder %v250, 8
  %vm299 = vcmp.ge.s32.totalorder %v251, 8
  %vm300 = vcmp.ge.s32.totalorder %v252, 8
  %vm301 = vcmp.ge.s32.totalorder %v253, 8
  %vm302 = vcmp.ge.s32.totalorder %v254, 8
  %vm303 = vcmp.ge.s32.totalorder %v255, 8
  %vm304 = vcmp.ge.s32.totalorder %v256, 8
  %vm305 = vcmp.ge.s32.totalorder %v257, 8
  %vm306 = vcmp.ge.s32.totalorder %v258, 8
  %vm307 = vcmp.ge.s32.totalorder %v259, 8
  %vm308 = vcmp.ge.s32.totalorder %v260, 8
  %vm309 = vcmp.ge.s32.totalorder %v261, 8
  %vm310 = vcmp.ge.s32.totalorder %v262, 8
  %v311 = vsel %vm295, %v47, 0.0
  %v312 = vsel %vm296, %v32, 0.0
  %v313 = vsel %vm297, %v33, 0.0
  %v314 = vsel %vm298, %v34, 0.0
  %v315 = vsel %vm299, %v35, 0.0
  %v316 = vsel %vm300, %v36, 0.0
  %v317 = vsel %vm301, %v37, 0.0
  %v318 = vsel %vm302, %v38, 0.0
  %v319 = vsel %vm303, %v39, 0.0
  %v320 = vsel %vm304, %v40, 0.0
  %v321 = vsel %vm305, %v41, 0.0
  %v322 = vsel %vm306, %v42, 0.0
  %v323 = vsel %vm307, %v43, 0.0
  %v324 = vsel %vm308, %v44, 0.0
  %v325 = vsel %vm309, %v45, 0.0
  %v326 = vsel %vm310, %v46, 0.0
  %vm327 = vcmp.lt.s32.totalorder %v247, 120
  %vm328 = vcmp.lt.s32.totalorder %v248, 120
  %vm329 = vcmp.lt.s32.totalorder %v249, 120
  %vm330 = vcmp.lt.s32.totalorder %v250, 120
  %vm331 = vcmp.lt.s32.totalorder %v251, 120
  %vm332 = vcmp.lt.s32.totalorder %v252, 120
  %vm333 = vcmp.lt.s32.totalorder %v253, 120
  %vm334 = vcmp.lt.s32.totalorder %v254, 120
  %vm335 = vcmp.lt.s32.totalorder %v255, 120
  %vm336 = vcmp.lt.s32.totalorder %v256, 120
  %vm337 = vcmp.lt.s32.totalorder %v257, 120
  %vm338 = vcmp.lt.s32.totalorder %v258, 120
  %vm339 = vcmp.lt.s32.totalorder %v259, 120
  %vm340 = vcmp.lt.s32.totalorder %v260, 120
  %vm341 = vcmp.lt.s32.totalorder %v261, 120
  %vm342 = vcmp.lt.s32.totalorder %v262, 120
  %v343 = vsel %vm327, %v33, 0.0
  %v344 = vsel %vm328, %v34, 0.0
  %v345 = vsel %vm329, %v35, 0.0
  %v346 = vsel %vm330, %v36, 0.0
  %v347 = vsel %vm331, %v37, 0.0
  %v348 = vsel %vm332, %v38, 0.0
  %v349 = vsel %vm333, %v39, 0.0
  %v350 = vsel %vm334, %v40, 0.0
  %v351 = vsel %vm335, %v41, 0.0
  %v352 = vsel %vm336, %v42, 0.0
  %v353 = vsel %vm337, %v43, 0.0
  %v354 = vsel %vm338, %v44, 0.0
  %v355 = vsel %vm339, %v45, 0.0
  %v356 = vsel %vm340, %v46, 0.0
  %v357 = vsel %vm341, %v47, 0.0
  %v358 = vsel %vm342, %v32, 0.0
  %375 = vrot.lane.b32.xlu0 %v311, 16
  %v376 = vpop.permute.xlu0 %375
  %377 = vrot.lane.b32.xlu0 %v312, 16
  %v378 = vpop.permute.xlu0 %377
  %379 = vrot.lane.b32.xlu0 %v313, 16
  %v380 = vpop.permute.xlu0 %379
  %381 = vrot.lane.b32.xlu0 %v314, 16
  %v382 = vpop.permute.xlu0 %381
  %383 = vrot.lane.b32.xlu0 %v315, 16
  %v384 = vpop.permute.xlu0 %383
  %385 = vrot.lane.b32.xlu0 %v316, 16
  %v386 = vpop.permute.xlu0 %385
  %387 = vrot.lane.b32.xlu0 %v317, 16
  %v388 = vpop.permute.xlu0 %387
  %389 = vrot.lane.b32.xlu0 %v318, 16
  %v390 = vpop.permute.xlu0 %389
  %391 = vrot.lane.b32.xlu0 %v319, 16
  %v392 = vpop.permute.xlu0 %391
  %393 = vrot.lane.b32.xlu0 %v320, 16
  %v394 = vpop.permute.xlu0 %393
  %395 = vrot.lane.b32.xlu0 %v321, 16
  %v396 = vpop.permute.xlu0 %395
  %397 = vrot.lane.b32.xlu0 %v322, 16
  %v398 = vpop.permute.xlu0 %397
  %399 = vrot.lane.b32.xlu0 %v323, 16
  %v400 = vpop.permute.xlu0 %399
  %401 = vrot.lane.b32.xlu0 %v324, 16
  %v402 = vpop.permute.xlu0 %401
  %403 = vrot.lane.b32.xlu0 %v325, 16
  %v404 = vpop.permute.xlu0 %403
  %405 = vrot.lane.b32.xlu0 %v326, 16
  %v406 = vpop.permute.xlu0 %405
  %423 = vrot.lane.b32.xlu0 %v32, 32
  %v424 = vpop.permute.xlu0 %423
  %425 = vrot.lane.b32.xlu0 %v33, 32
  %v426 = vpop.permute.xlu0 %425
  %427 = vrot.lane.b32.xlu0 %v34, 32
  %v428 = vpop.permute.xlu0 %427
  %429 = vrot.lane.b32.xlu0 %v35, 32
  %v430 = vpop.permute.xlu0 %429
  %431 = vrot.lane.b32.xlu0 %v36, 32
  %v432 = vpop.permute.xlu0 %431
  %433 = vrot.lane.b32.xlu0 %v37, 32
  %v434 = vpop.permute.xlu0 %433
  %435 = vrot.lane.b32.xlu0 %v38, 32
  %v436 = vpop.permute.xlu0 %435
  %437 = vrot.lane.b32.xlu0 %v39, 32
  %v438 = vpop.permute.xlu0 %437
  %439 = vrot.lane.b32.xlu0 %v40, 32
  %v440 = vpop.permute.xlu0 %439
  %441 = vrot.lane.b32.xlu0 %v41, 32
  %v442 = vpop.permute.xlu0 %441
  %443 = vrot.lane.b32.xlu0 %v42, 32
  %v444 = vpop.permute.xlu0 %443
  %445 = vrot.lane.b32.xlu0 %v43, 32
  %v446 = vpop.permute.xlu0 %445
  %447 = vrot.lane.b32.xlu0 %v44, 32
  %v448 = vpop.permute.xlu0 %447
  %449 = vrot.lane.b32.xlu0 %v45, 32
  %v450 = vpop.permute.xlu0 %449
  %451 = vrot.lane.b32.xlu0 %v46, 32
  %v452 = vpop.permute.xlu0 %451
  %453 = vrot.lane.b32.xlu0 %v47, 32
  %v454 = vpop.permute.xlu0 %453
  %487 = vrot.lane.b32.xlu0 %v343, 48
  %v488 = vpop.permute.xlu0 %487
  %489 = vrot.lane.b32.xlu0 %v344, 48
  %v490 = vpop.permute.xlu0 %489
  %491 = vrot.lane.b32.xlu0 %v345, 48
  %v492 = vpop.permute.xlu0 %491
  %493 = vrot.lane.b32.xlu0 %v346, 48
  %v494 = vpop.permute.xlu0 %493
  %495 = vrot.lane.b32.xlu0 %v347, 48
  %v496 = vpop.permute.xlu0 %495
  %497 = vrot.lane.b32.xlu0 %v348, 48
  %v498 = vpop.permute.xlu0 %497
  %499 = vrot.lane.b32.xlu0 %v349, 48
  %v500 = vpop.permute.xlu0 %499
  %501 = vrot.lane.b32.xlu0 %v350, 48
  %v502 = vpop.permute.xlu0 %501
  %503 = vrot.lane.b32.xlu0 %v351, 48
  %v504 = vpop.permute.xlu0 %503
  %505 = vrot.lane.b32.xlu0 %v352, 48
  %v506 = vpop.permute.xlu0 %505
  %507 = vrot.lane.b32.xlu0 %v353, 48
  %v508 = vpop.permute.xlu0 %507
  %509 = vrot.lane.b32.xlu0 %v354, 48
  %v510 = vpop.permute.xlu0 %509
  %511 = vrot.lane.b32.xlu0 %v355, 48
  %v512 = vpop.permute.xlu0 %511
  %513 = vrot.lane.b32.xlu0 %v356, 48
  %v514 = vpop.permute.xlu0 %513
  %515 = vrot.lane.b32.xlu0 %v357, 48
  %v516 = vpop.permute.xlu0 %515
  %517 = vrot.lane.b32.xlu0 %v358, 48
  %v518 = vpop.permute.xlu0 %517
  %v535 = vsel %vm52, %v279, %v376
  %v536 = vsel %vm52, %v280, %v378
  %v537 = vsel %vm52, %v281, %v380
  %v538 = vsel %vm52, %v282, %v382
  %v539 = vsel %vm52, %v283, %v384
  %v540 = vsel %vm52, %v284, %v386
  %v541 = vsel %vm52, %v285, %v388
  %v542 = vsel %vm52, %v286, %v390
  %v543 = vsel %vm52, %v287, %v392
  %v544 = vsel %vm52, %v288, %v394
  %v545 = vsel %vm52, %v289, %v396
  %v546 = vsel %vm52, %v290, %v398
  %v547 = vsel %vm52, %v291, %v400
  %v548 = vsel %vm52, %v292, %v402
  %v549 = vsel %vm52, %v293, %v404
  %v550 = vsel %vm52, %v294, %v406
  %vm551 = vcmask 261120
  %v552 = vsel %vm551, %v535, %v424
  %v553 = vsel %vm551, %v536, %v426
  %v554 = vsel %vm551, %v537, %v428
  %v555 = vsel %vm551, %v538, %v430
  %v556 = vsel %vm551, %v539, %v432
  %v557 = vsel %vm551, %v540, %v434
  %v558 = vsel %vm551, %v541, %v436
  %v559 = vsel %vm551, %v542, %v438
  %v560 = vsel %vm551, %v543, %v440
  %v561 = vsel %vm551, %v544, %v442
  %v562 = vsel %vm551, %v545, %v444
  %v563 = vsel %vm551, %v546, %v446
  %v564 = vsel %vm551, %v547, %v448
  %v565 = vsel %vm551, %v548, %v450
  %v566 = vsel %vm551, %v549, %v452
  %v567 = vsel %vm551, %v550, %v454
  %vm568 = vcmask 392192
  %v569 = vsel %vm568, %v552, %v488
  %v570 = vsel %vm568, %v553, %v490
  %v571 = vsel %vm568, %v554, %v492
  %v572 = vsel %vm568, %v555, %v494
  %v573 = vsel %vm568, %v556, %v496
  %v574 = vsel %vm568, %v557, %v498
  %v575 = vsel %vm568, %v558, %v500
  %v576 = vsel %vm568, %v559, %v502
  %v577 = vsel %vm568, %v560, %v504
  %v578 = vsel %vm568, %v561, %v506
  %v579 = vsel %vm568, %v562, %v508
  %v580 = vsel %vm568, %v563, %v510
  %v581 = vsel %vm568, %v564, %v512
  %v582 = vsel %vm568, %v565, %v514
  %v583 = vsel %vm568, %v566, %v516
  %v584 = vsel %vm568, %v567, %v518
  %v585 = vld [vmem:[%s1] sm:$0xff]
  %v586 = vld [vmem:[%s1 + $0x8] sm:$0xff]
  %v587 = vld [vmem:[%s1 + $0x10] sm:$0xff]
  %v588 = vld [vmem:[%s1 + $0x18] sm:$0xff]
  %v589 = vld [vmem:[%s1 + $0x20] sm:$0xff]
  %v590 = vld [vmem:[%s1 + $0x28] sm:$0xff]
  %v591 = vld [vmem:[%s1 + $0x30] sm:$0xff]
  %v592 = vld [vmem:[%s1 + $0x38] sm:$0xff]
  %vm593 = vcmask 523264
  %v595 = vsel %vm593, %v569, 0
  %v598 = vsel %vm593, %v570, 0
  %v601 = vsel %vm593, %v571, 0
  %v604 = vsel %vm593, %v572, 0
  %v607 = vsel %vm593, %v573, 0
  %v610 = vsel %vm593, %v574, 0
  %v613 = vsel %vm593, %v575, 0
  %v616 = vsel %vm593, %v576, 0
  %v619 = vsel %vm593, %v577, 0
  %v622 = vsel %vm593, %v578, 0
  %v625 = vsel %vm593, %v579, 0
  %v628 = vsel %vm593, %v580, 0
  %v631 = vsel %vm593, %v581, 0
  %v634 = vsel %vm593, %v582, 0
  %v637 = vsel %vm593, %v583, 0
  %v640 = vsel %vm593, %v584, 0
  %642 = vmatprep.subr.mxu0 0.0
  %643 = vmatpush1.msra.mxu0 0.0
  %644 = vmatprep.subr.mxu0 0.0
  %645 = vmatpush1.msra.mxu0 0.0
  %646 = vmatprep.subr.mxu0 0.0
  %647 = vmatpush1.msra.mxu0 0.0
  %648 = vmatprep.subr.mxu0 0.0
  %649 = vmatpush1.msra.mxu0 0.0
  %650 = vmatprep.subr.mxu0 0.0
  %651 = vmatpush1.msra.mxu0 0.0
  %652 = vmatprep.subr.mxu0 0.0
  %653 = vmatpush1.msra.mxu0 0.0
  %654 = vmatprep.subr.mxu0 0.0
  %655 = vmatpush1.msra.mxu0 0.0
  %656 = vmatprep.subr.mxu0 0.0
  %657 = vmatpush1.msra.mxu0 0.0
  %658 = vmatprep.subr.mxu0 0.0
  %659 = vmatpush1.msra.mxu0 %v592
  %660 = vmatprep.subr.mxu0 0.0
  %661 = vmatpush1.msra.mxu0 %v591
  %662 = vmatprep.subr.mxu0 0.0
  %663 = vmatpush1.msra.mxu0 %v590
  %664 = vmatprep.subr.mxu0 0.0
  %665 = vmatpush1.msra.mxu0 %v589
  %666 = vmatprep.subr.mxu0 0.0
  %667 = vmatpush1.msra.mxu0 %v588
  %668 = vmatprep.subr.mxu0 0.0
  %669 = vmatpush1.msra.mxu0 %v587
  %670 = vmatprep.subr.mxu0 0.0
  %671 = vmatpush1.msra.mxu0 %v586
  %672 = vmatprep.subr.mxu0 0.0
  %673 = vmatpush1.msra.mxu0 %v585
  %674 = vmatprep.subr.mxu0 0.0
  %675 = vmatpush2.msra.mxu0 0.0
  %676 = vmatprep.subr.mxu0 0.0
  %677 = vmatpush2.msra.mxu0 0.0
  %678 = vmatprep.subr.mxu0 0.0
  %679 = vmatpush2.msra.mxu0 0.0
  %680 = vmatprep.subr.mxu0 0.0
  %681 = vmatpush2.msra.mxu0 0.0
  %682 = vmatprep.subr.mxu0 0.0
  %683 = vmatpush2.msra.mxu0 0.0
  %684 = vmatprep.subr.mxu0 0.0
  %685 = vmatpush2.msra.mxu0 0.0
  %686 = vmatprep.subr.mxu0 0.0
  %687 = vmatpush2.msra.mxu0 0.0
  %688 = vmatprep.subr.mxu0 0.0
  %689 = vmatpush2.msra.mxu0 0.0
  %690 = vmatprep.subr.mxu0 0.0
  %691 = vmatpush2.msra.mxu0 0.0
  %692 = vmatprep.subr.mxu0 0.0
  %693 = vmatpush2.msra.mxu0 0.0
  %694 = vmatprep.subr.mxu0 0.0
  %695 = vmatpush2.msra.mxu0 0.0
  %696 = vmatprep.subr.mxu0 0.0
  %697 = vmatpush2.msra.mxu0 0.0
  %698 = vmatprep.subr.mxu0 0.0
  %699 = vmatpush2.msra.mxu0 0.0
  %700 = vmatprep.subr.mxu0 0.0
  %701 = vmatpush2.msra.mxu0 0.0
  %702 = vmatprep.subr.mxu0 0.0
  %703 = vmatpush2.msra.mxu0 0.0
  %704 = vmatprep.subr.mxu0 0.0
  %705 = vmatpush2.msra.mxu0 0.0
  %706 = vmatprep.mubr.f32.mxu0 0.0
  %707 = vmatmul.mubr.f32.gmra.mxu0 %v595
  %v708 = vpop.f32.mrf.mxu0
  %v709 = vadd.f32 0.0, %v708
  %v710 = vpop.f32.mrf.mxu0
  %711 = vmatprep.mubr.f32.mxu0 0.0
  %712 = vmatmul.mubr.f32.gmra.mxu0 %v598
  %v713 = vpop.f32.mrf.mxu0
  %v714 = vadd.f32 0.0, %v713
  %v715 = vpop.f32.mrf.mxu0
  %716 = vmatprep.mubr.f32.mxu0 0.0
  %717 = vmatmul.mubr.f32.gmra.mxu0 %v601
  %v718 = vpop.f32.mrf.mxu0
  %v719 = vadd.f32 0.0, %v718
  %v720 = vpop.f32.mrf.mxu0
  %721 = vmatprep.mubr.f32.mxu0 0.0
  %722 = vmatmul.mubr.f32.gmra.mxu0 %v604
  %v723 = vpop.f32.mrf.mxu0
  %v724 = vadd.f32 0.0, %v723
  %v725 = vpop.f32.mrf.mxu0
  %726 = vmatprep.mubr.f32.mxu0 0.0
  %727 = vmatmul.mubr.f32.gmra.mxu0 %v607
  %v728 = vpop.f32.mrf.mxu0
  %v729 = vadd.f32 0.0, %v728
  %v730 = vpop.f32.mrf.mxu0
  %731 = vmatprep.mubr.f32.mxu0 0.0
  %732 = vmatmul.mubr.f32.gmra.mxu0 %v610
  %v733 = vpop.f32.mrf.mxu0
  %v734 = vadd.f32 0.0, %v733
  %v735 = vpop.f32.mrf.mxu0
  %736 = vmatprep.mubr.f32.mxu0 0.0
  %737 = vmatmul.mubr.f32.gmra.mxu0 %v613
  %v738 = vpop.f32.mrf.mxu0
  %v739 = vadd.f32 0.0, %v738
  %v740 = vpop.f32.mrf.mxu0
  %741 = vmatprep.mubr.f32.mxu0 0.0
  %742 = vmatmul.mubr.f32.gmra.mxu0 %v616
  %v743 = vpop.f32.mrf.mxu0
  %v744 = vadd.f32 0.0, %v743
  %v745 = vpop.f32.mrf.mxu0
  %746 = vmatprep.mubr.f32.mxu0 0.0
  %747 = vmatmul.mubr.f32.gmra.mxu0 %v619
  %v748 = vpop.f32.mrf.mxu0
  %v749 = vadd.f32 0.0, %v748
  %v750 = vpop.f32.mrf.mxu0
  %751 = vmatprep.mubr.f32.mxu0 0.0
  %752 = vmatmul.mubr.f32.gmra.mxu0 %v622
  %v753 = vpop.f32.mrf.mxu0
  %v754 = vadd.f32 0.0, %v753
  %v755 = vpop.f32.mrf.mxu0
  %756 = vmatprep.mubr.f32.mxu0 0.0
  %757 = vmatmul.mubr.f32.gmra.mxu0 %v625
  %v758 = vpop.f32.mrf.mxu0
  %v759 = vadd.f32 0.0, %v758
  %v760 = vpop.f32.mrf.mxu0
  %761 = vmatprep.mubr.f32.mxu0 0.0
  %762 = vmatmul.mubr.f32.gmra.mxu0 %v628
  %v763 = vpop.f32.mrf.mxu0
  %v764 = vadd.f32 0.0, %v763
  %v765 = vpop.f32.mrf.mxu0
  %766 = vmatprep.mubr.f32.mxu0 0.0
  %767 = vmatmul.mubr.f32.gmra.mxu0 %v631
  %v768 = vpop.f32.mrf.mxu0
  %v769 = vadd.f32 0.0, %v768
  %v770 = vpop.f32.mrf.mxu0
  %771 = vmatprep.mubr.f32.mxu0 0.0
  %772 = vmatmul.mubr.f32.gmra.mxu0 %v634
  %v773 = vpop.f32.mrf.mxu0
  %v774 = vadd.f32 0.0, %v773
  %v775 = vpop.f32.mrf.mxu0
  %776 = vmatprep.mubr.f32.mxu0 0.0
  %777 = vmatmul.mubr.f32.gmra.mxu0 %v637
  %v778 = vpop.f32.mrf.mxu0
  %v779 = vadd.f32 0.0, %v778
  %v780 = vpop.f32.mrf.mxu0
  %781 = vmatprep.mubr.f32.mxu0 0.0
  %782 = vmatmul.mubr.f32.gmra.mxu0 %v640
  %v783 = vpop.f32.mrf.mxu0
  %v784 = vadd.f32 0.0, %v783
  %v785 = vpop.f32.mrf.mxu0
  %786 = vdwg.mxu0
  %v787 = vmax.f32 %v709, 0.0
  %v788 = vmax.f32 %v714, 0.0
  %v789 = vmax.f32 %v719, 0.0
  %v790 = vmax.f32 %v724, 0.0
  %v791 = vmax.f32 %v729, 0.0
  %v792 = vmax.f32 %v734, 0.0
  %v793 = vmax.f32 %v739, 0.0
  %v794 = vmax.f32 %v744, 0.0
  %v795 = vmax.f32 %v749, 0.0
  %v796 = vmax.f32 %v754, 0.0
  %v797 = vmax.f32 %v759, 0.0
  %v798 = vmax.f32 %v764, 0.0
  %v799 = vmax.f32 %v769, 0.0
  %v800 = vmax.f32 %v774, 0.0
  %v801 = vmax.f32 %v779, 0.0
  %v802 = vmax.f32 %v784, 0.0
  %v803 = vlaneseq
  %v804 = vshrl.u32 %v803, 7
  %v805 = vsub.s32 0, %v804
  %v806 = vrot.slane %v48, %v805
  %v807 = vmul.f32 %v787, %v806
  %v808 = vmul.f32 %v788, %v806
  %v809 = vmul.f32 %v789, %v806
  %v810 = vmul.f32 %v790, %v806
  %v811 = vmul.f32 %v791, %v806
  %v812 = vmul.f32 %v792, %v806
  %v813 = vmul.f32 %v793, %v806
  %v814 = vmul.f32 %v794, %v806
  %v815 = vmul.f32 %v795, %v806
  %v816 = vmul.f32 %v796, %v806
  %v817 = vmul.f32 %v797, %v806
  %v818 = vmul.f32 %v798, %v806
  %v819 = vmul.f32 %v799, %v806
  %v820 = vmul.f32 %v800, %v806
  %v821 = vmul.f32 %v801, %v806
  %v822 = vmul.f32 %v802, %v806
  %v823 = vlaneseq
  %v824 = vshrl.u32 %v823, 7
  %v825 = vsub.s32 1, %v824
  %v826 = vrot.slane %v48, %v825
  %v827 = vadd.f32 %v807, %v826
  %v828 = vadd.f32 %v808, %v826
  %v829 = vadd.f32 %v809, %v826
  %v830 = vadd.f32 %v810, %v826
  %v831 = vadd.f32 %v811, %v826
  %v832 = vadd.f32 %v812, %v826
  %v833 = vadd.f32 %v813, %v826
  %v834 = vadd.f32 %v814, %v826
  %v835 = vadd.f32 %v815, %v826
  %v836 = vadd.f32 %v816, %v826
  %v837 = vadd.f32 %v817, %v826
  %v838 = vadd.f32 %v818, %v826
  %v839 = vadd.f32 %v819, %v826
  %v840 = vadd.f32 %v820, %v826
  %v841 = vadd.f32 %v821, %v826
  %v842 = vadd.f32 %v822, %v826
  %vm843 = vcmp.lt.s32.totalorder %v247, 8
  %vm844 = vcmp.lt.s32.totalorder %v248, 8
  %vm845 = vcmp.lt.s32.totalorder %v249, 8
  %vm846 = vcmp.lt.s32.totalorder %v250, 8
  %vm847 = vcmp.lt.s32.totalorder %v251, 8
  %vm848 = vcmp.lt.s32.totalorder %v252, 8
  %vm849 = vcmp.lt.s32.totalorder %v253, 8
  %vm850 = vcmp.lt.s32.totalorder %v254, 8
  %vm851 = vcmp.lt.s32.totalorder %v255, 8
  %vm852 = vcmp.lt.s32.totalorder %v256, 8
  %vm853 = vcmp.lt.s32.totalorder %v257, 8
  %vm854 = vcmp.lt.s32.totalorder %v258, 8
  %vm855 = vcmp.lt.s32.totalorder %v259, 8
  %vm856 = vcmp.lt.s32.totalorder %v260, 8
  %vm857 = vcmp.lt.s32.totalorder %v261, 8
  %vm858 = vcmp.lt.s32.totalorder %v262, 8
  %v859 = vsel %vm843, %v827, %v842
  %v860 = vsel %vm844, %v828, %v827
  %v861 = vsel %vm845, %v829, %v828
  %v862 = vsel %vm846, %v830, %v829
  %v863 = vsel %vm847, %v831, %v830
  %v864 = vsel %vm848, %v832, %v831
  %v865 = vsel %vm849, %v833, %v832
  %v866 = vsel %vm850, %v834, %v833
  %v867 = vsel %vm851, %v835, %v834
  %v868 = vsel %vm852, %v836, %v835
  %v869 = vsel %vm853, %v837, %v836
  %v870 = vsel %vm854, %v838, %v837
  %v871 = vsel %vm855, %v839, %v838
  %v872 = vsel %vm856, %v840, %v839
  %v873 = vsel %vm857, %v841, %v840
  %v874 = vsel %vm858, %v842, %v841
  %v875 = vmax.f32 %v859, %v827
  %v876 = vmax.f32 %v860, %v828
  %v877 = vmax.f32 %v861, %v829
  %v878 = vmax.f32 %v862, %v830
  %v879 = vmax.f32 %v863, %v831
  %v880 = vmax.f32 %v864, %v832
  %v881 = vmax.f32 %v865, %v833
  %v882 = vmax.f32 %v866, %v834
  %v883 = vmax.f32 %v867, %v835
  %v884 = vmax.f32 %v868, %v836
  %v885 = vmax.f32 %v869, %v837
  %v886 = vmax.f32 %v870, %v838
  %v887 = vmax.f32 %v871, %v839
  %v888 = vmax.f32 %v872, %v840
  %v889 = vmax.f32 %v873, %v841
  %v890 = vmax.f32 %v874, %v842
  %v891 = vsel %vm295, %v890, 0.0
  %v892 = vsel %vm296, %v875, 0.0
  %v893 = vsel %vm297, %v876, 0.0
  %v894 = vsel %vm298, %v877, 0.0
  %v895 = vsel %vm299, %v878, 0.0
  %v896 = vsel %vm300, %v879, 0.0
  %v897 = vsel %vm301, %v880, 0.0
  %v898 = vsel %vm302, %v881, 0.0
  %v899 = vsel %vm303, %v882, 0.0
  %v900 = vsel %vm304, %v883, 0.0
  %v901 = vsel %vm305, %v884, 0.0
  %v902 = vsel %vm306, %v885, 0.0
  %v903 = vsel %vm307, %v886, 0.0
  %v904 = vsel %vm308, %v887, 0.0
  %v905 = vsel %vm309, %v888, 0.0
  %v906 = vsel %vm310, %v889, 0.0
  %v907 = vsel %vm327, %v876, 0.0
  %v908 = vsel %vm328, %v877, 0.0
  %v909 = vsel %vm329, %v878, 0.0
  %v910 = vsel %vm330, %v879, 0.0
  %v911 = vsel %vm331, %v880, 0.0
  %v912 = vsel %vm332, %v881, 0.0
  %v913 = vsel %vm333, %v882, 0.0
  %v914 = vsel %vm334, %v883, 0.0
  %v915 = vsel %vm335, %v884, 0.0
  %v916 = vsel %vm336, %v885, 0.0
  %v917 = vsel %vm337, %v886, 0.0
  %v918 = vsel %vm338, %v887, 0.0
  %v919 = vsel %vm339, %v888, 0.0
  %v920 = vsel %vm340, %v889, 0.0
  %v921 = vsel %vm341, %v890, 0.0
  %v922 = vsel %vm342, %v875, 0.0
  %v923 = vld [vmem:[%s2] sm:$0xff]
  %v924 = vld [vmem:[%s2 + $0x8] sm:$0xff]
  %v925 = vld [vmem:[%s2 + $0x10] sm:$0xff]
  %v926 = vld [vmem:[%s2 + $0x18] sm:$0xff]
  %v927 = vld [vmem:[%s2 + $0x20] sm:$0xff]
  %v928 = vld [vmem:[%s2 + $0x28] sm:$0xff]
  %v929 = vld [vmem:[%s2 + $0x30] sm:$0xff]
  %v930 = vld [vmem:[%s2 + $0x38] sm:$0xff]
  %v931 = vld [vmem:[%s2 + $0x40] sm:$0xff]
  %v932 = vld [vmem:[%s2 + $0x48] sm:$0xff]
  %v933 = vld [vmem:[%s2 + $0x50] sm:$0xff]
  %v934 = vld [vmem:[%s2 + $0x58] sm:$0xff]
  %v935 = vld [vmem:[%s2 + $0x60] sm:$0xff]
  %v936 = vld [vmem:[%s2 + $0x68] sm:$0xff]
  %v937 = vld [vmem:[%s2 + $0x70] sm:$0xff]
  %v938 = vld [vmem:[%s2 + $0x78] sm:$0xff]
  %v939 = vld [vmem:[%s2 + $0x80] sm:$0xff]
  %v940 = vld [vmem:[%s2 + $0x88] sm:$0xff]
  %v941 = vld [vmem:[%s2 + $0x90] sm:$0xff]
  %v942 = vld [vmem:[%s2 + $0x98] sm:$0xff]
  %v943 = vld [vmem:[%s2 + $0xa0] sm:$0xff]
  %v944 = vld [vmem:[%s2 + $0xa8] sm:$0xff]
  %v945 = vld [vmem:[%s2 + $0xb0] sm:$0xff]
  %v946 = vld [vmem:[%s2 + $0xb8] sm:$0xff]
  %v947 = vld [vmem:[%s2 + $0xc0] sm:$0xff]
  %v948 = vld [vmem:[%s2 + $0xc8] sm:$0xff]
  %v949 = vld [vmem:[%s2 + $0xd0] sm:$0xff]
  %v950 = vld [vmem:[%s2 + $0xd8] sm:$0xff]
  %v951 = vld [vmem:[%s2 + $0xe0] sm:$0xff]
  %v952 = vld [vmem:[%s2 + $0xe8] sm:$0xff]
  %v953 = vld [vmem:[%s2 + $0xf0] sm:$0xff]
  %v954 = vld [vmem:[%s2 + $0xf8] sm:$0xff]
  %v955 = vld [vmem:[%s2 + $0x100] sm:$0xff]
  %v956 = vld [vmem:[%s2 + $0x108] sm:$0xff]
  %v957 = vld [vmem:[%s2 + $0x110] sm:$0xff]
  %v958 = vld [vmem:[%s2 + $0x118] sm:$0xff]
  %v959 = vld [vmem:[%s2 + $0x120] sm:$0xff]
  %v960 = vld [vmem:[%s2 + $0x128] sm:$0xff]
  %v961 = vld [vmem:[%s2 + $0x130] sm:$0xff]
  %v962 = vld [vmem:[%s2 + $0x138] sm:$0xff]
  %v963 = vld [vmem:[%s2 + $0x140] sm:$0xff]
  %v964 = vld [vmem:[%s2 + $0x148] sm:$0xff]
  %v965 = vld [vmem:[%s2 + $0x150] sm:$0xff]
  %v966 = vld [vmem:[%s2 + $0x158] sm:$0xff]
  %v967 = vld [vmem:[%s2 + $0x160] sm:$0xff]
  %v968 = vld [vmem:[%s2 + $0x168] sm:$0xff]
  %v969 = vld [vmem:[%s2 + $0x170] sm:$0xff]
  %v970 = vld [vmem:[%s2 + $0x178] sm:$0xff]
  %971 = vmatprep.subr.mxu0 0.0
  %972 = vmatpush1.msra.mxu0 %v938
  %973 = vmatprep.subr.mxu0 0.0
  %974 = vmatpush1.msra.mxu0 %v937
  %975 = vmatprep.subr.mxu0 0.0
  %976 = vmatpush1.msra.mxu0 %v936
  %977 = vmatprep.subr.mxu0 0.0
  %978 = vmatpush1.msra.mxu0 %v935
  %979 = vmatprep.subr.mxu0 0.0
  %980 = vmatpush1.msra.mxu0 %v934
  %981 = vmatprep.subr.mxu0 0.0
  %982 = vmatpush1.msra.mxu0 %v933
  %983 = vmatprep.subr.mxu0 0.0
  %984 = vmatpush1.msra.mxu0 %v932
  %985 = vmatprep.subr.mxu0 0.0
  %986 = vmatpush1.msra.mxu0 %v931
  %987 = vmatprep.subr.mxu0 0.0
  %988 = vmatpush1.msra.mxu0 %v930
  %989 = vmatprep.subr.mxu0 0.0
  %990 = vmatpush1.msra.mxu0 %v929
  %991 = vmatprep.subr.mxu0 0.0
  %992 = vmatpush1.msra.mxu0 %v928
  %993 = vmatprep.subr.mxu0 0.0
  %994 = vmatpush1.msra.mxu0 %v927
  %995 = vmatprep.subr.mxu0 0.0
  %996 = vmatpush1.msra.mxu0 %v926
  %997 = vmatprep.subr.mxu0 0.0
  %998 = vmatpush1.msra.mxu0 %v925
  %999 = vmatprep.subr.mxu0 0.0
  %1000 = vmatpush1.msra.mxu0 %v924
  %1001 = vmatprep.subr.mxu0 0.0
  %1002 = vmatpush1.msra.mxu0 %v923
  %1003 = vmatprep.subr.mxu0 0.0
  %1004 = vmatpush2.msra.mxu0 %v954
  %1005 = vmatprep.subr.mxu0 0.0
  %1006 = vmatpush2.msra.mxu0 %v953
  %1007 = vmatprep.subr.mxu0 0.0
  %1008 = vmatpush2.msra.mxu0 %v952
  %1009 = vmatprep.subr.mxu0 0.0
  %1010 = vmatpush2.msra.mxu0 %v951
  %1011 = vmatprep.subr.mxu0 0.0
  %1012 = vmatpush2.msra.mxu0 %v950
  %1013 = vmatprep.subr.mxu0 0.0
  %1014 = vmatpush2.msra.mxu0 %v949
  %1015 = vmatprep.subr.mxu0 0.0
  %1016 = vmatpush2.msra.mxu0 %v948
  %1017 = vmatprep.subr.mxu0 0.0
  %1018 = vmatpush2.msra.mxu0 %v947
  %1019 = vmatprep.subr.mxu0 0.0
  %1020 = vmatpush2.msra.mxu0 %v946
  %1021 = vmatprep.subr.mxu0 0.0
  %1022 = vmatpush2.msra.mxu0 %v945
  %1023 = vmatprep.subr.mxu0 0.0
  %1024 = vmatpush2.msra.mxu0 %v944
  %1025 = vmatprep.subr.mxu0 0.0
  %1026 = vmatpush2.msra.mxu0 %v943
  %1027 = vmatprep.subr.mxu0 0.0
  %1028 = vmatpush2.msra.mxu0 %v942
  %1029 = vmatprep.subr.mxu0 0.0
  %1030 = vmatpush2.msra.mxu0 %v941
  %1031 = vmatprep.subr.mxu0 0.0
  %1032 = vmatpush2.msra.mxu0 %v940
  %1033 = vmatprep.subr.mxu0 0.0
  %1034 = vmatpush2.msra.mxu0 %v939
  %1035 = vmatprep.mubr.f32.mxu0 %v875
  %1036 = vmatmul.mubr.f32.gmra.mxu0 %v891
  %v1037 = vpop.f32.mrf.mxu0
  %v1038 = vadd.f32 0.0, %v1037
  %v1039 = vpop.f32.mrf.mxu0
  %1040 = vmatprep.mubr.f32.mxu0 %v876
  %1041 = vmatmul.mubr.f32.gmra.mxu0 %v892
  %v1042 = vpop.f32.mrf.mxu0
  %v1043 = vadd.f32 0.0, %v1042
  %v1044 = vpop.f32.mrf.mxu0
  %1045 = vmatprep.mubr.f32.mxu0 %v877
  %1046 = vmatmul.mubr.f32.gmra.mxu0 %v893
  %v1047 = vpop.f32.mrf.mxu0
  %v1048 = vadd.f32 0.0, %v1047
  %v1049 = vpop.f32.mrf.mxu0
  %1050 = vmatprep.mubr.f32.mxu0 %v878
  %1051 = vmatmul.mubr.f32.gmra.mxu0 %v894
  %v1052 = vpop.f32.mrf.mxu0
  %v1053 = vadd.f32 0.0, %v1052
  %v1054 = vpop.f32.mrf.mxu0
  %1055 = vmatprep.mubr.f32.mxu0 %v879
  %1056 = vmatmul.mubr.f32.gmra.mxu0 %v895
  %v1057 = vpop.f32.mrf.mxu0
  %v1058 = vadd.f32 0.0, %v1057
  %v1059 = vpop.f32.mrf.mxu0
  %1060 = vmatprep.mubr.f32.mxu0 %v880
  %1061 = vmatmul.mubr.f32.gmra.mxu0 %v896
  %v1062 = vpop.f32.mrf.mxu0
  %v1063 = vadd.f32 0.0, %v1062
  %v1064 = vpop.f32.mrf.mxu0
  %1065 = vmatprep.mubr.f32.mxu0 %v881
  %1066 = vmatmul.mubr.f32.gmra.mxu0 %v897
  %v1067 = vpop.f32.mrf.mxu0
  %v1068 = vadd.f32 0.0, %v1067
  %v1069 = vpop.f32.mrf.mxu0
  %1070 = vmatprep.mubr.f32.mxu0 %v882
  %1071 = vmatmul.mubr.f32.gmra.mxu0 %v898
  %v1072 = vpop.f32.mrf.mxu0
  %v1073 = vadd.f32 0.0, %v1072
  %v1074 = vpop.f32.mrf.mxu0
  %1075 = vmatprep.mubr.f32.mxu0 %v883
  %1076 = vmatmul.mubr.f32.gmra.mxu0 %v899
  %v1077 = vpop.f32.mrf.mxu0
  %v1078 = vadd.f32 0.0, %v1077
  %v1079 = vpop.f32.mrf.mxu0
  %1080 = vmatprep.mubr.f32.mxu0 %v884
  %1081 = vmatmul.mubr.f32.gmra.mxu0 %v900
  %v1082 = vpop.f32.mrf.mxu0
  %v1083 = vadd.f32 0.0, %v1082
  %v1084 = vpop.f32.mrf.mxu0
  %1085 = vmatprep.mubr.f32.mxu0 %v885
  %1086 = vmatmul.mubr.f32.gmra.mxu0 %v901
  %v1087 = vpop.f32.mrf.mxu0
  %v1088 = vadd.f32 0.0, %v1087
  %v1089 = vpop.f32.mrf.mxu0
  %1090 = vmatprep.mubr.f32.mxu0 %v886
  %1091 = vmatmul.mubr.f32.gmra.mxu0 %v902
  %v1092 = vpop.f32.mrf.mxu0
  %v1093 = vadd.f32 0.0, %v1092
  %v1094 = vpop.f32.mrf.mxu0
  %1095 = vmatprep.mubr.f32.mxu0 %v887
  %1096 = vmatmul.mubr.f32.gmra.mxu0 %v903
  %v1097 = vpop.f32.mrf.mxu0
  %v1098 = vadd.f32 0.0, %v1097
  %v1099 = vpop.f32.mrf.mxu0
  %1100 = vmatprep.mubr.f32.mxu0 %v888
  %1101 = vmatmul.mubr.f32.gmra.mxu0 %v904
  %v1102 = vpop.f32.mrf.mxu0
  %v1103 = vadd.f32 0.0, %v1102
  %v1104 = vpop.f32.mrf.mxu0
  %1105 = vmatprep.mubr.f32.mxu0 %v889
  %1106 = vmatmul.mubr.f32.gmra.mxu0 %v905
  %v1107 = vpop.f32.mrf.mxu0
  %v1108 = vadd.f32 0.0, %v1107
  %v1109 = vpop.f32.mrf.mxu0
  %1110 = vmatprep.mubr.f32.mxu0 %v890
  %1111 = vmatmul.mubr.f32.gmra.mxu0 %v906
  %v1112 = vpop.f32.mrf.mxu0
  %v1113 = vadd.f32 0.0, %v1112
  %v1114 = vpop.f32.mrf.mxu0
  %1115 = vdwg.mxu0
  %1116 = vmatprep.subr.mxu0 0.0
  %1117 = vmatpush1.msra.mxu0 %v970
  %1118 = vmatprep.subr.mxu0 0.0
  %1119 = vmatpush1.msra.mxu0 %v969
  %1120 = vmatprep.subr.mxu0 0.0
  %1121 = vmatpush1.msra.mxu0 %v968
  %1122 = vmatprep.subr.mxu0 0.0
  %1123 = vmatpush1.msra.mxu0 %v967
  %1124 = vmatprep.subr.mxu0 0.0
  %1125 = vmatpush1.msra.mxu0 %v966
  %1126 = vmatprep.subr.mxu0 0.0
  %1127 = vmatpush1.msra.mxu0 %v965
  %1128 = vmatprep.subr.mxu0 0.0
  %1129 = vmatpush1.msra.mxu0 %v964
  %1130 = vmatprep.subr.mxu0 0.0
  %1131 = vmatpush1.msra.mxu0 %v963
  %1132 = vmatprep.subr.mxu0 0.0
  %1133 = vmatpush1.msra.mxu0 %v962
  %1134 = vmatprep.subr.mxu0 0.0
  %1135 = vmatpush1.msra.mxu0 %v961
  %1136 = vmatprep.subr.mxu0 0.0
  %1137 = vmatpush1.msra.mxu0 %v960
  %1138 = vmatprep.subr.mxu0 0.0
  %1139 = vmatpush1.msra.mxu0 %v959
  %1140 = vmatprep.subr.mxu0 0.0
  %1141 = vmatpush1.msra.mxu0 %v958
  %1142 = vmatprep.subr.mxu0 0.0
  %1143 = vmatpush1.msra.mxu0 %v957
  %1144 = vmatprep.subr.mxu0 0.0
  %1145 = vmatpush1.msra.mxu0 %v956
  %1146 = vmatprep.subr.mxu0 0.0
  %1147 = vmatpush1.msra.mxu0 %v955
  %1148 = vmatprep.subr.mxu0 0.0
  %1149 = vmatpush2.msra.mxu0 0.0
  %1150 = vmatprep.subr.mxu0 0.0
  %1151 = vmatpush2.msra.mxu0 0.0
  %1152 = vmatprep.subr.mxu0 0.0
  %1153 = vmatpush2.msra.mxu0 0.0
  %1154 = vmatprep.subr.mxu0 0.0
  %1155 = vmatpush2.msra.mxu0 0.0
  %1156 = vmatprep.subr.mxu0 0.0
  %1157 = vmatpush2.msra.mxu0 0.0
  %1158 = vmatprep.subr.mxu0 0.0
  %1159 = vmatpush2.msra.mxu0 0.0
  %1160 = vmatprep.subr.mxu0 0.0
  %1161 = vmatpush2.msra.mxu0 0.0
  %1162 = vmatprep.subr.mxu0 0.0
  %1163 = vmatpush2.msra.mxu0 0.0
  %1164 = vmatprep.subr.mxu0 0.0
  %1165 = vmatpush2.msra.mxu0 0.0
  %1166 = vmatprep.subr.mxu0 0.0
  %1167 = vmatpush2.msra.mxu0 0.0
  %1168 = vmatprep.subr.mxu0 0.0
  %1169 = vmatpush2.msra.mxu0 0.0
  %1170 = vmatprep.subr.mxu0 0.0
  %1171 = vmatpush2.msra.mxu0 0.0
  %1172 = vmatprep.subr.mxu0 0.0
  %1173 = vmatpush2.msra.mxu0 0.0
  %1174 = vmatprep.subr.mxu0 0.0
  %1175 = vmatpush2.msra.mxu0 0.0
  %1176 = vmatprep.subr.mxu0 0.0
  %1177 = vmatpush2.msra.mxu0 0.0
  %1178 = vmatprep.subr.mxu0 0.0
  %1179 = vmatpush2.msra.mxu0 0.0
  %1180 = vmatprep.mubr.f32.mxu0 0.0
  %1181 = vmatmul.mubr.f32.gmra.mxu0 %v907
  %v1182 = vpop.f32.mrf.mxu0
  %v1183 = vadd.f32 %v1038, %v1182
  %v1184 = vpop.f32.mrf.mxu0
  %1185 = vmatprep.mubr.f32.mxu0 0.0
  %1186 = vmatmul.mubr.f32.gmra.mxu0 %v908
  %v1187 = vpop.f32.mrf.mxu0
  %v1188 = vadd.f32 %v1043, %v1187
  %v1189 = vpop.f32.mrf.mxu0
  %1190 = vmatprep.mubr.f32.mxu0 0.0
  %1191 = vmatmul.mubr.f32.gmra.mxu0 %v909
  %v1192 = vpop.f32.mrf.mxu0
  %v1193 = vadd.f32 %v1048, %v1192
  %v1194 = vpop.f32.mrf.mxu0
  %1195 = vmatprep.mubr.f32.mxu0 0.0
  %1196 = vmatmul.mubr.f32.gmra.mxu0 %v910
  %v1197 = vpop.f32.mrf.mxu0
  %v1198 = vadd.f32 %v1053, %v1197
  %v1199 = vpop.f32.mrf.mxu0
  %1200 = vmatprep.mubr.f32.mxu0 0.0
  %1201 = vmatmul.mubr.f32.gmra.mxu0 %v911
  %v1202 = vpop.f32.mrf.mxu0
  %v1203 = vadd.f32 %v1058, %v1202
  %v1204 = vpop.f32.mrf.mxu0
  %1205 = vmatprep.mubr.f32.mxu0 0.0
  %1206 = vmatmul.mubr.f32.gmra.mxu0 %v912
  %v1207 = vpop.f32.mrf.mxu0
  %v1208 = vadd.f32 %v1063, %v1207
  %v1209 = vpop.f32.mrf.mxu0
  %1210 = vmatprep.mubr.f32.mxu0 0.0
  %1211 = vmatmul.mubr.f32.gmra.mxu0 %v913
  %v1212 = vpop.f32.mrf.mxu0
  %v1213 = vadd.f32 %v1068, %v1212
  %v1214 = vpop.f32.mrf.mxu0
  %1215 = vmatprep.mubr.f32.mxu0 0.0
  %1216 = vmatmul.mubr.f32.gmra.mxu0 %v914
  %v1217 = vpop.f32.mrf.mxu0
  %v1218 = vadd.f32 %v1073, %v1217
  %v1219 = vpop.f32.mrf.mxu0
  %1220 = vmatprep.mubr.f32.mxu0 0.0
  %1221 = vmatmul.mubr.f32.gmra.mxu0 %v915
  %v1222 = vpop.f32.mrf.mxu0
  %v1223 = vadd.f32 %v1078, %v1222
  %v1224 = vpop.f32.mrf.mxu0
  %1225 = vmatprep.mubr.f32.mxu0 0.0
  %1226 = vmatmul.mubr.f32.gmra.mxu0 %v916
  %v1227 = vpop.f32.mrf.mxu0
  %v1228 = vadd.f32 %v1083, %v1227
  %v1229 = vpop.f32.mrf.mxu0
  %1230 = vmatprep.mubr.f32.mxu0 0.0
  %1231 = vmatmul.mubr.f32.gmra.mxu0 %v917
  %v1232 = vpop.f32.mrf.mxu0
  %v1233 = vadd.f32 %v1088, %v1232
  %v1234 = vpop.f32.mrf.mxu0
  %1235 = vmatprep.mubr.f32.mxu0 0.0
  %1236 = vmatmul.mubr.f32.gmra.mxu0 %v918
  %v1237 = vpop.f32.mrf.mxu0
  %v1238 = vadd.f32 %v1093, %v1237
  %v1239 = vpop.f32.mrf.mxu0
  %1240 = vmatprep.mubr.f32.mxu0 0.0
  %1241 = vmatmul.mubr.f32.gmra.mxu0 %v919
  %v1242 = vpop.f32.mrf.mxu0
  %v1243 = vadd.f32 %v1098, %v1242
  %v1244 = vpop.f32.mrf.mxu0
  %1245 = vmatprep.mubr.f32.mxu0 0.0
  %1246 = vmatmul.mubr.f32.gmra.mxu0 %v920
  %v1247 = vpop.f32.mrf.mxu0
  %v1248 = vadd.f32 %v1103, %v1247
  %v1249 = vpop.f32.mrf.mxu0
  %1250 = vmatprep.mubr.f32.mxu0 0.0
  %1251 = vmatmul.mubr.f32.gmra.mxu0 %v921
  %v1252 = vpop.f32.mrf.mxu0
  %v1253 = vadd.f32 %v1108, %v1252
  %v1254 = vpop.f32.mrf.mxu0
  %1255 = vmatprep.mubr.f32.mxu0 0.0
  %1256 = vmatmul.mubr.f32.gmra.mxu0 %v922
  %v1257 = vpop.f32.mrf.mxu0
  %v1258 = vadd.f32 %v1113, %v1257
  %v1259 = vpop.f32.mrf.mxu0
  %1260 = vdwg.mxu0
  %v1261 = vmax.f32 %v1183, 0.0
  %v1262 = vmax.f32 %v1188, 0.0
  %v1263 = vmax.f32 %v1193, 0.0
  %v1264 = vmax.f32 %v1198, 0.0
  %v1265 = vmax.f32 %v1203, 0.0
  %v1266 = vmax.f32 %v1208, 0.0
  %v1267 = vmax.f32 %v1213, 0.0
  %v1268 = vmax.f32 %v1218, 0.0
  %v1269 = vmax.f32 %v1223, 0.0
  %v1270 = vmax.f32 %v1228, 0.0
  %v1271 = vmax.f32 %v1233, 0.0
  %v1272 = vmax.f32 %v1238, 0.0
  %v1273 = vmax.f32 %v1243, 0.0
  %v1274 = vmax.f32 %v1248, 0.0
  %v1275 = vmax.f32 %v1253, 0.0
  %v1276 = vmax.f32 %v1258, 0.0
  %v1277 = vlaneseq
  %v1278 = vshrl.u32 %v1277, 7
  %v1279 = vsub.s32 2, %v1278
  %v1280 = vrot.slane %v48, %v1279
  %v1281 = vmul.f32 %v1261, %v1280
  %v1282 = vmul.f32 %v1262, %v1280
  %v1283 = vmul.f32 %v1263, %v1280
  %v1284 = vmul.f32 %v1264, %v1280
  %v1285 = vmul.f32 %v1265, %v1280
  %v1286 = vmul.f32 %v1266, %v1280
  %v1287 = vmul.f32 %v1267, %v1280
  %v1288 = vmul.f32 %v1268, %v1280
  %v1289 = vmul.f32 %v1269, %v1280
  %v1290 = vmul.f32 %v1270, %v1280
  %v1291 = vmul.f32 %v1271, %v1280
  %v1292 = vmul.f32 %v1272, %v1280
  %v1293 = vmul.f32 %v1273, %v1280
  %v1294 = vmul.f32 %v1274, %v1280
  %v1295 = vmul.f32 %v1275, %v1280
  %v1296 = vmul.f32 %v1276, %v1280
  %1298 = vrot.lane.b32.xlu0 %v1280, 96
  %v1299 = vpop.permute.xlu0 %1298
  %v1301 = vadd.f32 %v1281, %v1299
  %v1302 = vadd.f32 %v1282, %v1299
  %v1303 = vadd.f32 %v1283, %v1299
  %v1304 = vadd.f32 %v1284, %v1299
  %v1305 = vadd.f32 %v1285, %v1299
  %v1306 = vadd.f32 %v1286, %v1299
  %v1307 = vadd.f32 %v1287, %v1299
  %v1308 = vadd.f32 %v1288, %v1299
  %v1309 = vadd.f32 %v1289, %v1299
  %v1310 = vadd.f32 %v1290, %v1299
  %v1311 = vadd.f32 %v1291, %v1299
  %v1312 = vadd.f32 %v1292, %v1299
  %v1313 = vadd.f32 %v1293, %v1299
  %v1314 = vadd.f32 %v1294, %v1299
  %v1315 = vadd.f32 %v1295, %v1299
  %v1316 = vadd.f32 %v1296, %v1299
  %v1317 = vsel %vm295, %v1316, 0.0
  %v1318 = vsel %vm296, %v1301, 0.0
  %v1319 = vsel %vm297, %v1302, 0.0
  %v1320 = vsel %vm298, %v1303, 0.0
  %v1321 = vsel %vm299, %v1304, 0.0
  %v1322 = vsel %vm300, %v1305, 0.0
  %v1323 = vsel %vm301, %v1306, 0.0
  %v1324 = vsel %vm302, %v1307, 0.0
  %v1325 = vsel %vm303, %v1308, 0.0
  %v1326 = vsel %vm304, %v1309, 0.0
  %v1327 = vsel %vm305, %v1310, 0.0
  %v1328 = vsel %vm306, %v1311, 0.0
  %v1329 = vsel %vm307, %v1312, 0.0
  %v1330 = vsel %vm308, %v1313, 0.0
  %v1331 = vsel %vm309, %v1314, 0.0
  %v1332 = vsel %vm310, %v1315, 0.0
  %v1333 = vsel %vm327, %v1302, 0.0
  %v1334 = vsel %vm328, %v1303, 0.0
  %v1335 = vsel %vm329, %v1304, 0.0
  %v1336 = vsel %vm330, %v1305, 0.0
  %v1337 = vsel %vm331, %v1306, 0.0
  %v1338 = vsel %vm332, %v1307, 0.0
  %v1339 = vsel %vm333, %v1308, 0.0
  %v1340 = vsel %vm334, %v1309, 0.0
  %v1341 = vsel %vm335, %v1310, 0.0
  %v1342 = vsel %vm336, %v1311, 0.0
  %v1343 = vsel %vm337, %v1312, 0.0
  %v1344 = vsel %vm338, %v1313, 0.0
  %v1345 = vsel %vm339, %v1314, 0.0
  %v1346 = vsel %vm340, %v1315, 0.0
  %v1347 = vsel %vm341, %v1316, 0.0
  %v1348 = vsel %vm342, %v1301, 0.0
  %1365 = vrot.lane.b32.xlu0 %v1301, 32
  %v1366 = vpop.permute.xlu0 %1365
  %1367 = vrot.lane.b32.xlu0 %v1302, 32
  %v1368 = vpop.permute.xlu0 %1367
  %1369 = vrot.lane.b32.xlu0 %v1303, 32
  %v1370 = vpop.permute.xlu0 %1369
  %1371 = vrot.lane.b32.xlu0 %v1304, 32
  %v1372 = vpop.permute.xlu0 %1371
  %1373 = vrot.lane.b32.xlu0 %v1305, 32
  %v1374 = vpop.permute.xlu0 %1373
  %1375 = vrot.lane.b32.xlu0 %v1306, 32
  %v1376 = vpop.permute.xlu0 %1375
  %1377 = vrot.lane.b32.xlu0 %v1307, 32
  %v1378 = vpop.permute.xlu0 %1377
  %1379 = vrot.lane.b32.xlu0 %v1308, 32
  %v1380 = vpop.permute.xlu0 %1379
  %1381 = vrot.lane.b32.xlu0 %v1309, 32
  %v1382 = vpop.permute.xlu0 %1381
  %1383 = vrot.lane.b32.xlu0 %v1310, 32
  %v1384 = vpop.permute.xlu0 %1383
  %1385 = vrot.lane.b32.xlu0 %v1311, 32
  %v1386 = vpop.permute.xlu0 %1385
  %1387 = vrot.lane.b32.xlu0 %v1312, 32
  %v1388 = vpop.permute.xlu0 %1387
  %1389 = vrot.lane.b32.xlu0 %v1313, 32
  %v1390 = vpop.permute.xlu0 %1389
  %1391 = vrot.lane.b32.xlu0 %v1314, 32
  %v1392 = vpop.permute.xlu0 %1391
  %1393 = vrot.lane.b32.xlu0 %v1315, 32
  %v1394 = vpop.permute.xlu0 %1393
  %1395 = vrot.lane.b32.xlu0 %v1316, 32
  %v1396 = vpop.permute.xlu0 %1395
  %1429 = vrot.lane.b32.xlu0 %v1333, 64
  %v1430 = vpop.permute.xlu0 %1429
  %1431 = vrot.lane.b32.xlu0 %v1334, 64
  %v1432 = vpop.permute.xlu0 %1431
  %1433 = vrot.lane.b32.xlu0 %v1335, 64
  %v1434 = vpop.permute.xlu0 %1433
  %1435 = vrot.lane.b32.xlu0 %v1336, 64
  %v1436 = vpop.permute.xlu0 %1435
  %1437 = vrot.lane.b32.xlu0 %v1337, 64
  %v1438 = vpop.permute.xlu0 %1437
  %1439 = vrot.lane.b32.xlu0 %v1338, 64
  %v1440 = vpop.permute.xlu0 %1439
  %1441 = vrot.lane.b32.xlu0 %v1339, 64
  %v1442 = vpop.permute.xlu0 %1441
  %1443 = vrot.lane.b32.xlu0 %v1340, 64
  %v1444 = vpop.permute.xlu0 %1443
  %1445 = vrot.lane.b32.xlu0 %v1341, 64
  %v1446 = vpop.permute.xlu0 %1445
  %1447 = vrot.lane.b32.xlu0 %v1342, 64
  %v1448 = vpop.permute.xlu0 %1447
  %1449 = vrot.lane.b32.xlu0 %v1343, 64
  %v1450 = vpop.permute.xlu0 %1449
  %1451 = vrot.lane.b32.xlu0 %v1344, 64
  %v1452 = vpop.permute.xlu0 %1451
  %1453 = vrot.lane.b32.xlu0 %v1345, 64
  %v1454 = vpop.permute.xlu0 %1453
  %1455 = vrot.lane.b32.xlu0 %v1346, 64
  %v1456 = vpop.permute.xlu0 %1455
  %1457 = vrot.lane.b32.xlu0 %v1347, 64
  %v1458 = vpop.permute.xlu0 %1457
  %1459 = vrot.lane.b32.xlu0 %v1348, 64
  %v1460 = vpop.permute.xlu0 %1459
  %v1477 = vsel %vm551, %v1317, %v1366
  %v1478 = vsel %vm551, %v1318, %v1368
  %v1479 = vsel %vm551, %v1319, %v1370
  %v1480 = vsel %vm551, %v1320, %v1372
  %v1481 = vsel %vm551, %v1321, %v1374
  %v1482 = vsel %vm551, %v1322, %v1376
  %v1483 = vsel %vm551, %v1323, %v1378
  %v1484 = vsel %vm551, %v1324, %v1380
  %v1485 = vsel %vm551, %v1325, %v1382
  %v1486 = vsel %vm551, %v1326, %v1384
  %v1487 = vsel %vm551, %v1327, %v1386
  %v1488 = vsel %vm551, %v1328, %v1388
  %v1489 = vsel %vm551, %v1329, %v1390
  %v1490 = vsel %vm551, %v1330, %v1392
  %v1491 = vsel %vm551, %v1331, %v1394
  %v1492 = vsel %vm551, %v1332, %v1396
  %v1493 = vsel %vm593, %v1477, %v1430
  %v1494 = vsel %vm593, %v1478, %v1432
  %v1495 = vsel %vm593, %v1479, %v1434
  %v1496 = vsel %vm593, %v1480, %v1436
  %v1497 = vsel %vm593, %v1481, %v1438
  %v1498 = vsel %vm593, %v1482, %v1440
  %v1499 = vsel %vm593, %v1483, %v1442
  %v1500 = vsel %vm593, %v1484, %v1444
  %v1501 = vsel %vm593, %v1485, %v1446
  %v1502 = vsel %vm593, %v1486, %v1448
  %v1503 = vsel %vm593, %v1487, %v1450
  %v1504 = vsel %vm593, %v1488, %v1452
  %v1505 = vsel %vm593, %v1489, %v1454
  %v1506 = vsel %vm593, %v1490, %v1456
  %v1507 = vsel %vm593, %v1491, %v1458
  %v1508 = vsel %vm593, %v1492, %v1460
  %v1509 = vld [vmem:[%s3] sm:$0xff]
  %v1510 = vld [vmem:[%s3 + $0x8] sm:$0xff]
  %v1511 = vld [vmem:[%s3 + $0x10] sm:$0xff]
  %v1512 = vld [vmem:[%s3 + $0x18] sm:$0xff]
  %v1513 = vld [vmem:[%s3 + $0x20] sm:$0xff]
  %v1514 = vld [vmem:[%s3 + $0x28] sm:$0xff]
  %v1515 = vld [vmem:[%s3 + $0x30] sm:$0xff]
  %v1516 = vld [vmem:[%s3 + $0x38] sm:$0xff]
  %v1517 = vld [vmem:[%s3 + $0x40] sm:$0xff]
  %v1518 = vld [vmem:[%s3 + $0x48] sm:$0xff]
  %v1519 = vld [vmem:[%s3 + $0x50] sm:$0xff]
  %v1520 = vld [vmem:[%s3 + $0x58] sm:$0xff]
  %vm1521 = vcmask 785408
  %v1523 = vsel %vm1521, %v1493, 0
  %v1526 = vsel %vm1521, %v1494, 0
  %v1529 = vsel %vm1521, %v1495, 0
  %v1532 = vsel %vm1521, %v1496, 0
  %v1535 = vsel %vm1521, %v1497, 0
  %v1538 = vsel %vm1521, %v1498, 0
  %v1541 = vsel %vm1521, %v1499, 0
  %v1544 = vsel %vm1521, %v1500, 0
  %v1547 = vsel %vm1521, %v1501, 0
  %v1550 = vsel %vm1521, %v1502, 0
  %v1553 = vsel %vm1521, %v1503, 0
  %v1556 = vsel %vm1521, %v1504, 0
  %v1559 = vsel %vm1521, %v1505, 0
  %v1562 = vsel %vm1521, %v1506, 0
  %v1565 = vsel %vm1521, %v1507, 0
  %v1568 = vsel %vm1521, %v1508, 0
  %1570 = vmatprep.subr.mxu0 0.0
  %1571 = vmatpush1.msra.mxu0 0.0
  %1572 = vmatprep.subr.mxu0 0.0
  %1573 = vmatpush1.msra.mxu0 0.0
  %1574 = vmatprep.subr.mxu0 0.0
  %1575 = vmatpush1.msra.mxu0 0.0
  %1576 = vmatprep.subr.mxu0 0.0
  %1577 = vmatpush1.msra.mxu0 0.0
  %1578 = vmatprep.subr.mxu0 0.0
  %1579 = vmatpush1.msra.mxu0 %v1520
  %1580 = vmatprep.subr.mxu0 0.0
  %1581 = vmatpush1.msra.mxu0 %v1519
  %1582 = vmatprep.subr.mxu0 0.0
  %1583 = vmatpush1.msra.mxu0 %v1518
  %1584 = vmatprep.subr.mxu0 0.0
  %1585 = vmatpush1.msra.mxu0 %v1517
  %1586 = vmatprep.subr.mxu0 0.0
  %1587 = vmatpush1.msra.mxu0 %v1516
  %1588 = vmatprep.subr.mxu0 0.0
  %1589 = vmatpush1.msra.mxu0 %v1515
  %1590 = vmatprep.subr.mxu0 0.0
  %1591 = vmatpush1.msra.mxu0 %v1514
  %1592 = vmatprep.subr.mxu0 0.0
  %1593 = vmatpush1.msra.mxu0 %v1513
  %1594 = vmatprep.subr.mxu0 0.0
  %1595 = vmatpush1.msra.mxu0 %v1512
  %1596 = vmatprep.subr.mxu0 0.0
  %1597 = vmatpush1.msra.mxu0 %v1511
  %1598 = vmatprep.subr.mxu0 0.0
  %1599 = vmatpush1.msra.mxu0 %v1510
  %1600 = vmatprep.subr.mxu0 0.0
  %1601 = vmatpush1.msra.mxu0 %v1509
  %1602 = vmatprep.subr.mxu0 0.0
  %1603 = vmatpush2.msra.mxu0 0.0
  %1604 = vmatprep.subr.mxu0 0.0
  %1605 = vmatpush2.msra.mxu0 0.0
  %1606 = vmatprep.subr.mxu0 0.0
  %1607 = vmatpush2.msra.mxu0 0.0
  %1608 = vmatprep.subr.mxu0 0.0
  %1609 = vmatpush2.msra.mxu0 0.0
  %1610 = vmatprep.subr.mxu0 0.0
  %1611 = vmatpush2.msra.mxu0 0.0
  %1612 = vmatprep.subr.mxu0 0.0
  %1613 = vmatpush2.msra.mxu0 0.0
  %1614 = vmatprep.subr.mxu0 0.0
  %1615 = vmatpush2.msra.mxu0 0.0
  %1616 = vmatprep.subr.mxu0 0.0
  %1617 = vmatpush2.msra.mxu0 0.0
  %1618 = vmatprep.subr.mxu0 0.0
  %1619 = vmatpush2.msra.mxu0 0.0
  %1620 = vmatprep.subr.mxu0 0.0
  %1621 = vmatpush2.msra.mxu0 0.0
  %1622 = vmatprep.subr.mxu0 0.0
  %1623 = vmatpush2.msra.mxu0 0.0
  %1624 = vmatprep.subr.mxu0 0.0
  %1625 = vmatpush2.msra.mxu0 0.0
  %1626 = vmatprep.subr.mxu0 0.0
  %1627 = vmatpush2.msra.mxu0 0.0
  %1628 = vmatprep.subr.mxu0 0.0
  %1629 = vmatpush2.msra.mxu0 0.0
  %1630 = vmatprep.subr.mxu0 0.0
  %1631 = vmatpush2.msra.mxu0 0.0
  %1632 = vmatprep.subr.mxu0 0.0
  %1633 = vmatpush2.msra.mxu0 0.0
  %1634 = vmatprep.mubr.f32.mxu0 0.0
  %1635 = vmatmul.mubr.f32.gmra.mxu0 %v1523
  %v1636 = vpop.f32.mrf.mxu0
  %v1637 = vadd.f32 %v168, %v1636
  %v1638 = vpop.f32.mrf.mxu0
  %1639 = vmatprep.mubr.f32.mxu0 0.0
  %1640 = vmatmul.mubr.f32.gmra.mxu0 %v1526
  %v1641 = vpop.f32.mrf.mxu0
  %v1642 = vadd.f32 %v173, %v1641
  %v1643 = vpop.f32.mrf.mxu0
  %1644 = vmatprep.mubr.f32.mxu0 0.0
  %1645 = vmatmul.mubr.f32.gmra.mxu0 %v1529
  %v1646 = vpop.f32.mrf.mxu0
  %v1647 = vadd.f32 %v178, %v1646
  %v1648 = vpop.f32.mrf.mxu0
  %1649 = vmatprep.mubr.f32.mxu0 0.0
  %1650 = vmatmul.mubr.f32.gmra.mxu0 %v1532
  %v1651 = vpop.f32.mrf.mxu0
  %v1652 = vadd.f32 %v183, %v1651
  %v1653 = vpop.f32.mrf.mxu0
  %1654 = vmatprep.mubr.f32.mxu0 0.0
  %1655 = vmatmul.mubr.f32.gmra.mxu0 %v1535
  %v1656 = vpop.f32.mrf.mxu0
  %v1657 = vadd.f32 %v188, %v1656
  %v1658 = vpop.f32.mrf.mxu0
  %1659 = vmatprep.mubr.f32.mxu0 0.0
  %1660 = vmatmul.mubr.f32.gmra.mxu0 %v1538
  %v1661 = vpop.f32.mrf.mxu0
  %v1662 = vadd.f32 %v193, %v1661
  %v1663 = vpop.f32.mrf.mxu0
  %1664 = vmatprep.mubr.f32.mxu0 0.0
  %1665 = vmatmul.mubr.f32.gmra.mxu0 %v1541
  %v1666 = vpop.f32.mrf.mxu0
  %v1667 = vadd.f32 %v198, %v1666
  %v1668 = vpop.f32.mrf.mxu0
  %1669 = vmatprep.mubr.f32.mxu0 0.0
  %1670 = vmatmul.mubr.f32.gmra.mxu0 %v1544
  %v1671 = vpop.f32.mrf.mxu0
  %v1672 = vadd.f32 %v203, %v1671
  %v1673 = vpop.f32.mrf.mxu0
  %1674 = vmatprep.mubr.f32.mxu0 0.0
  %1675 = vmatmul.mubr.f32.gmra.mxu0 %v1547
  %v1676 = vpop.f32.mrf.mxu0
  %v1677 = vadd.f32 %v208, %v1676
  %v1678 = vpop.f32.mrf.mxu0
  %1679 = vmatprep.mubr.f32.mxu0 0.0
  %1680 = vmatmul.mubr.f32.gmra.mxu0 %v1550
  %v1681 = vpop.f32.mrf.mxu0
  %v1682 = vadd.f32 %v213, %v1681
  %v1683 = vpop.f32.mrf.mxu0
  %1684 = vmatprep.mubr.f32.mxu0 0.0
  %1685 = vmatmul.mubr.f32.gmra.mxu0 %v1553
  %v1686 = vpop.f32.mrf.mxu0
  %v1687 = vadd.f32 %v218, %v1686
  %v1688 = vpop.f32.mrf.mxu0
  %1689 = vmatprep.mubr.f32.mxu0 0.0
  %1690 = vmatmul.mubr.f32.gmra.mxu0 %v1556
  %v1691 = vpop.f32.mrf.mxu0
  %v1692 = vadd.f32 %v223, %v1691
  %v1693 = vpop.f32.mrf.mxu0
  %1694 = vmatprep.mubr.f32.mxu0 0.0
  %1695 = vmatmul.mubr.f32.gmra.mxu0 %v1559
  %v1696 = vpop.f32.mrf.mxu0
  %v1697 = vadd.f32 %v228, %v1696
  %v1698 = vpop.f32.mrf.mxu0
  %1699 = vmatprep.mubr.f32.mxu0 0.0
  %1700 = vmatmul.mubr.f32.gmra.mxu0 %v1562
  %v1701 = vpop.f32.mrf.mxu0
  %v1702 = vadd.f32 %v233, %v1701
  %v1703 = vpop.f32.mrf.mxu0
  %1704 = vmatprep.mubr.f32.mxu0 0.0
  %1705 = vmatmul.mubr.f32.gmra.mxu0 %v1565
  %v1706 = vpop.f32.mrf.mxu0
  %v1707 = vadd.f32 %v238, %v1706
  %v1708 = vpop.f32.mrf.mxu0
  %1709 = vmatprep.mubr.f32.mxu0 0.0
  %1710 = vmatmul.mubr.f32.gmra.mxu0 %v1568
  %v1711 = vpop.f32.mrf.mxu0
  %v1712 = vadd.f32 %v243, %v1711
  %v1713 = vpop.f32.mrf.mxu0
  %1714 = vdwg.mxu0
  %1715 = vrot.lane.b32.xlu0 %v1280, 64
  %v1716 = vpop.permute.xlu0 %1715
  %v1718 = vadd.f32 %v1637, %v1716
  %v1719 = vadd.f32 %v1642, %v1716
  %v1720 = vadd.f32 %v1647, %v1716
  %v1721 = vadd.f32 %v1652, %v1716
  %v1722 = vadd.f32 %v1657, %v1716
  %v1723 = vadd.f32 %v1662, %v1716
  %v1724 = vadd.f32 %v1667, %v1716
  %v1725 = vadd.f32 %v1672, %v1716
  %v1726 = vadd.f32 %v1677, %v1716
  %v1727 = vadd.f32 %v1682, %v1716
  %v1728 = vadd.f32 %v1687, %v1716
  %v1729 = vadd.f32 %v1692, %v1716
  %v1730 = vadd.f32 %v1697, %v1716
  %v1731 = vadd.f32 %v1702, %v1716
  %v1732 = vadd.f32 %v1707, %v1716
  %v1733 = vadd.f32 %v1712, %v1716
  %v1734 = vld [vmem:[%s5] sm:$0xff]
  %v1735 = vld [vmem:[%s5 + $0x8] sm:$0xff]
  %v1736 = vld [vmem:[%s5 + $0x10] sm:$0xff]
  %v1737 = vld [vmem:[%s5 + $0x18] sm:$0xff]
  %v1738 = vlaneseq
  %v1739 = vshrl.u32 %v1738, 7
  %v1740 = vsub.s32 3, %v1739
  %v1741 = vrot.slane %v48, %v1740
  %v1743 = vsel %vm551, %v1718, 0
  %v1746 = vsel %vm551, %v1719, 0
  %v1749 = vsel %vm551, %v1720, 0
  %v1752 = vsel %vm551, %v1721, 0
  %v1755 = vsel %vm551, %v1722, 0
  %v1758 = vsel %vm551, %v1723, 0
  %v1761 = vsel %vm551, %v1724, 0
  %v1764 = vsel %vm551, %v1725, 0
  %v1767 = vsel %vm551, %v1726, 0
  %v1770 = vsel %vm551, %v1727, 0
  %v1773 = vsel %vm551, %v1728, 0
  %v1776 = vsel %vm551, %v1729, 0
  %v1779 = vsel %vm551, %v1730, 0
  %v1782 = vsel %vm551, %v1731, 0
  %v1785 = vsel %vm551, %v1732, 0
  %v1788 = vsel %vm551, %v1733, 0
  %1790 = vmatprep.subr.mxu0 0.0
  %1791 = vmatpush1.msra.mxu0 0.0
  %1792 = vmatprep.subr.mxu0 0.0
  %1793 = vmatpush1.msra.mxu0 0.0
  %1794 = vmatprep.subr.mxu0 0.0
  %1795 = vmatpush1.msra.mxu0 0.0
  %1796 = vmatprep.subr.mxu0 0.0
  %1797 = vmatpush1.msra.mxu0 0.0
  %1798 = vmatprep.subr.mxu0 0.0
  %1799 = vmatpush1.msra.mxu0 0.0
  %1800 = vmatprep.subr.mxu0 0.0
  %1801 = vmatpush1.msra.mxu0 0.0
  %1802 = vmatprep.subr.mxu0 0.0
  %1803 = vmatpush1.msra.mxu0 0.0
  %1804 = vmatprep.subr.mxu0 0.0
  %1805 = vmatpush1.msra.mxu0 0.0
  %1806 = vmatprep.subr.mxu0 0.0
  %1807 = vmatpush1.msra.mxu0 0.0
  %1808 = vmatprep.subr.mxu0 0.0
  %1809 = vmatpush1.msra.mxu0 0.0
  %1810 = vmatprep.subr.mxu0 0.0
  %1811 = vmatpush1.msra.mxu0 0.0
  %1812 = vmatprep.subr.mxu0 0.0
  %1813 = vmatpush1.msra.mxu0 0.0
  %1814 = vmatprep.subr.mxu0 0.0
  %1815 = vmatpush1.msra.mxu0 %v1737
  %1816 = vmatprep.subr.mxu0 0.0
  %1817 = vmatpush1.msra.mxu0 %v1736
  %1818 = vmatprep.subr.mxu0 0.0
  %1819 = vmatpush1.msra.mxu0 %v1735
  %1820 = vmatprep.subr.mxu0 0.0
  %1821 = vmatpush1.msra.mxu0 %v1734
  %1822 = vmatprep.subr.mxu0 0.0
  %1823 = vmatpush2.msra.mxu0 0.0
  %1824 = vmatprep.subr.mxu0 0.0
  %1825 = vmatpush2.msra.mxu0 0.0
  %1826 = vmatprep.subr.mxu0 0.0
  %1827 = vmatpush2.msra.mxu0 0.0
  %1828 = vmatprep.subr.mxu0 0.0
  %1829 = vmatpush2.msra.mxu0 0.0
  %1830 = vmatprep.subr.mxu0 0.0
  %1831 = vmatpush2.msra.mxu0 0.0
  %1832 = vmatprep.subr.mxu0 0.0
  %1833 = vmatpush2.msra.mxu0 0.0
  %1834 = vmatprep.subr.mxu0 0.0
  %1835 = vmatpush2.msra.mxu0 0.0
  %1836 = vmatprep.subr.mxu0 0.0
  %1837 = vmatpush2.msra.mxu0 0.0
  %1838 = vmatprep.subr.mxu0 0.0
  %1839 = vmatpush2.msra.mxu0 0.0
  %1840 = vmatprep.subr.mxu0 0.0
  %1841 = vmatpush2.msra.mxu0 0.0
  %1842 = vmatprep.subr.mxu0 0.0
  %1843 = vmatpush2.msra.mxu0 0.0
  %1844 = vmatprep.subr.mxu0 0.0
  %1845 = vmatpush2.msra.mxu0 0.0
  %1846 = vmatprep.subr.mxu0 0.0
  %1847 = vmatpush2.msra.mxu0 0.0
  %1848 = vmatprep.subr.mxu0 0.0
  %1849 = vmatpush2.msra.mxu0 0.0
  %1850 = vmatprep.subr.mxu0 0.0
  %1851 = vmatpush2.msra.mxu0 0.0
  %1852 = vmatprep.subr.mxu0 0.0
  %1853 = vmatpush2.msra.mxu0 0.0
  %1854 = vmatprep.mubr.f32.mxu0 0.0
  %1855 = vmatmul.mubr.f32.gmra.mxu0 %v1743
  %v1856 = vpop.f32.mrf.mxu0
  %v1857 = vadd.f32 %v1741, %v1856
  %v1858 = vpop.f32.mrf.mxu0
  %1859 = vmatprep.mubr.f32.mxu0 0.0
  %1860 = vmatmul.mubr.f32.gmra.mxu0 %v1746
  %v1861 = vpop.f32.mrf.mxu0
  %v1862 = vadd.f32 %v1741, %v1861
  %v1863 = vpop.f32.mrf.mxu0
  %1864 = vmatprep.mubr.f32.mxu0 0.0
  %1865 = vmatmul.mubr.f32.gmra.mxu0 %v1749
  %v1866 = vpop.f32.mrf.mxu0
  %v1867 = vadd.f32 %v1741, %v1866
  %v1868 = vpop.f32.mrf.mxu0
  %1869 = vmatprep.mubr.f32.mxu0 0.0
  %1870 = vmatmul.mubr.f32.gmra.mxu0 %v1752
  %v1871 = vpop.f32.mrf.mxu0
  %v1872 = vadd.f32 %v1741, %v1871
  %v1873 = vpop.f32.mrf.mxu0
  %1874 = vmatprep.mubr.f32.mxu0 0.0
  %1875 = vmatmul.mubr.f32.gmra.mxu0 %v1755
  %v1876 = vpop.f32.mrf.mxu0
  %v1877 = vadd.f32 %v1741, %v1876
  %v1878 = vpop.f32.mrf.mxu0
  %1879 = vmatprep.mubr.f32.mxu0 0.0
  %1880 = vmatmul.mubr.f32.gmra.mxu0 %v1758
  %v1881 = vpop.f32.mrf.mxu0
  %v1882 = vadd.f32 %v1741, %v1881
  %v1883 = vpop.f32.mrf.mxu0
  %1884 = vmatprep.mubr.f32.mxu0 0.0
  %1885 = vmatmul.mubr.f32.gmra.mxu0 %v1761
  %v1886 = vpop.f32.mrf.mxu0
  %v1887 = vadd.f32 %v1741, %v1886
  %v1888 = vpop.f32.mrf.mxu0
  %1889 = vmatprep.mubr.f32.mxu0 0.0
  %1890 = vmatmul.mubr.f32.gmra.mxu0 %v1764
  %v1891 = vpop.f32.mrf.mxu0
  %v1892 = vadd.f32 %v1741, %v1891
  %v1893 = vpop.f32.mrf.mxu0
  %1894 = vmatprep.mubr.f32.mxu0 0.0
  %1895 = vmatmul.mubr.f32.gmra.mxu0 %v1767
  %v1896 = vpop.f32.mrf.mxu0
  %v1897 = vadd.f32 %v1741, %v1896
  %v1898 = vpop.f32.mrf.mxu0
  %1899 = vmatprep.mubr.f32.mxu0 0.0
  %1900 = vmatmul.mubr.f32.gmra.mxu0 %v1770
  %v1901 = vpop.f32.mrf.mxu0
  %v1902 = vadd.f32 %v1741, %v1901
  %v1903 = vpop.f32.mrf.mxu0
  %1904 = vmatprep.mubr.f32.mxu0 0.0
  %1905 = vmatmul.mubr.f32.gmra.mxu0 %v1773
  %v1906 = vpop.f32.mrf.mxu0
  %v1907 = vadd.f32 %v1741, %v1906
  %v1908 = vpop.f32.mrf.mxu0
  %1909 = vmatprep.mubr.f32.mxu0 0.0
  %1910 = vmatmul.mubr.f32.gmra.mxu0 %v1776
  %v1911 = vpop.f32.mrf.mxu0
  %v1912 = vadd.f32 %v1741, %v1911
  %v1913 = vpop.f32.mrf.mxu0
  %1914 = vmatprep.mubr.f32.mxu0 0.0
  %1915 = vmatmul.mubr.f32.gmra.mxu0 %v1779
  %v1916 = vpop.f32.mrf.mxu0
  %v1917 = vadd.f32 %v1741, %v1916
  %v1918 = vpop.f32.mrf.mxu0
  %1919 = vmatprep.mubr.f32.mxu0 0.0
  %1920 = vmatmul.mubr.f32.gmra.mxu0 %v1782
  %v1921 = vpop.f32.mrf.mxu0
  %v1922 = vadd.f32 %v1741, %v1921
  %v1923 = vpop.f32.mrf.mxu0
  %1924 = vmatprep.mubr.f32.mxu0 0.0
  %1925 = vmatmul.mubr.f32.gmra.mxu0 %v1785
  %v1926 = vpop.f32.mrf.mxu0
  %v1927 = vadd.f32 %v1741, %v1926
  %v1928 = vpop.f32.mrf.mxu0
  %1929 = vmatprep.mubr.f32.mxu0 0.0
  %1930 = vmatmul.mubr.f32.gmra.mxu0 %v1788
  %v1931 = vpop.f32.mrf.mxu0
  %v1932 = vadd.f32 %v1741, %v1931
  %v1933 = vpop.f32.mrf.mxu0
  %1934 = vdwg.mxu0
  %v1935 = vxor.u32 %v1857, 2147483648
  %v1936 = vxor.u32 %v1862, 2147483648
  %v1937 = vxor.u32 %v1867, 2147483648
  %v1938 = vxor.u32 %v1872, 2147483648
  %v1939 = vxor.u32 %v1877, 2147483648
  %v1940 = vxor.u32 %v1882, 2147483648
  %v1941 = vxor.u32 %v1887, 2147483648
  %v1942 = vxor.u32 %v1892, 2147483648
  %v1943 = vxor.u32 %v1897, 2147483648
  %v1944 = vxor.u32 %v1902, 2147483648
  %v1945 = vxor.u32 %v1907, 2147483648
  %v1946 = vxor.u32 %v1912, 2147483648
  %v1947 = vxor.u32 %v1917, 2147483648
  %v1948 = vxor.u32 %v1922, 2147483648
  %v1949 = vxor.u32 %v1927, 2147483648
  %v1950 = vxor.u32 %v1932, 2147483648
  %v1951 = vmul.f32 %v1935, 1.442695
  %v1952 = vpow.pop %v1951
  %v1953 = vmul.f32 %v1936, 1.442695
  %v1954 = vpow.pop %v1953
  %v1955 = vmul.f32 %v1937, 1.442695
  %v1956 = vpow.pop %v1955
  %v1957 = vmul.f32 %v1938, 1.442695
  %v1958 = vpow.pop %v1957
  %v1959 = vmul.f32 %v1939, 1.442695
  %v1960 = vpow.pop %v1959
  %v1961 = vmul.f32 %v1940, 1.442695
  %v1962 = vpow.pop %v1961
  %v1963 = vmul.f32 %v1941, 1.442695
  %v1964 = vpow.pop %v1963
  %v1965 = vmul.f32 %v1942, 1.442695
  %v1966 = vpow.pop %v1965
  %v1967 = vmul.f32 %v1943, 1.442695
  %v1968 = vpow.pop %v1967
  %v1969 = vmul.f32 %v1944, 1.442695
  %v1970 = vpow.pop %v1969
  %v1971 = vmul.f32 %v1945, 1.442695
  %v1972 = vpow.pop %v1971
  %v1973 = vmul.f32 %v1946, 1.442695
  %v1974 = vpow.pop %v1973
  %v1975 = vmul.f32 %v1947, 1.442695
  %v1976 = vpow.pop %v1975
  %v1977 = vmul.f32 %v1948, 1.442695
  %v1978 = vpow.pop %v1977
  %v1979 = vmul.f32 %v1949, 1.442695
  %v1980 = vpow.pop %v1979
  %v1981 = vmul.f32 %v1950, 1.442695
  %v1982 = vpow.pop %v1981
  %v1983 = vadd.f32 %v1952, 1.0
  %v1984 = vadd.f32 %v1954, 1.0
  %v1985 = vadd.f32 %v1956, 1.0
  %v1986 = vadd.f32 %v1958, 1.0
  %v1987 = vadd.f32 %v1960, 1.0
  %v1988 = vadd.f32 %v1962, 1.0
  %v1989 = vadd.f32 %v1964, 1.0
  %v1990 = vadd.f32 %v1966, 1.0
  %v1991 = vadd.f32 %v1968, 1.0
  %v1992 = vadd.f32 %v1970, 1.0
  %v1993 = vadd.f32 %v1972, 1.0
  %v1994 = vadd.f32 %v1974, 1.0
  %v1995 = vadd.f32 %v1976, 1.0
  %v1996 = vadd.f32 %v1978, 1.0
  %v1997 = vadd.f32 %v1980, 1.0
  %v1998 = vadd.f32 %v1982, 1.0
  %v1999 = vrcp.pop %v1983
  %v2000 = vmul.f32 1.0, %v1999
  %v2001 = vrcp.pop %v1984
  %v2002 = vmul.f32 1.0, %v2001
  %v2003 = vrcp.pop %v1985
  %v2004 = vmul.f32 1.0, %v2003
  %v2005 = vrcp.pop %v1986
  %v2006 = vmul.f32 1.0, %v2005
  %v2007 = vrcp.pop %v1987
  %v2008 = vmul.f32 1.0, %v2007
  %v2009 = vrcp.pop %v1988
  %v2010 = vmul.f32 1.0, %v2009
  %v2011 = vrcp.pop %v1989
  %v2012 = vmul.f32 1.0, %v2011
  %v2013 = vrcp.pop %v1990
  %v2014 = vmul.f32 1.0, %v2013
  %v2015 = vrcp.pop %v1991
  %v2016 = vmul.f32 1.0, %v2015
  %v2017 = vrcp.pop %v1992
  %v2018 = vmul.f32 1.0, %v2017
  %v2019 = vrcp.pop %v1993
  %v2020 = vmul.f32 1.0, %v2019
  %v2021 = vrcp.pop %v1994
  %v2022 = vmul.f32 1.0, %v2021
  %v2023 = vrcp.pop %v1995
  %v2024 = vmul.f32 1.0, %v2023
  %v2025 = vrcp.pop %v1996
  %v2026 = vmul.f32 1.0, %v2025
  %v2027 = vrcp.pop %v1997
  %v2028 = vmul.f32 1.0, %v2027
  %v2029 = vrcp.pop %v1998
  %v2030 = vmul.f32 1.0, %v2029
  %v2031 = vmax.f32 %v1857, 0.0
  %v2032 = vmax.f32 %v1862, 0.0
  %v2033 = vmax.f32 %v1867, 0.0
  %v2034 = vmax.f32 %v1872, 0.0
  %v2035 = vmax.f32 %v1877, 0.0
  %v2036 = vmax.f32 %v1882, 0.0
  %v2037 = vmax.f32 %v1887, 0.0
  %v2038 = vmax.f32 %v1892, 0.0
  %v2039 = vmax.f32 %v1897, 0.0
  %v2040 = vmax.f32 %v1902, 0.0
  %v2041 = vmax.f32 %v1907, 0.0
  %v2042 = vmax.f32 %v1912, 0.0
  %v2043 = vmax.f32 %v1917, 0.0
  %v2044 = vmax.f32 %v1922, 0.0
  %v2045 = vmax.f32 %v1927, 0.0
  %v2046 = vmax.f32 %v1932, 0.0
  %2063 = vrot.lane.b32.xlu0 %v2031, 32
  %v2064 = vpop.permute.xlu0 %2063
  %2065 = vrot.lane.b32.xlu0 %v2032, 32
  %v2066 = vpop.permute.xlu0 %2065
  %2067 = vrot.lane.b32.xlu0 %v2033, 32
  %v2068 = vpop.permute.xlu0 %2067
  %2069 = vrot.lane.b32.xlu0 %v2034, 32
  %v2070 = vpop.permute.xlu0 %2069
  %2071 = vrot.lane.b32.xlu0 %v2035, 32
  %v2072 = vpop.permute.xlu0 %2071
  %2073 = vrot.lane.b32.xlu0 %v2036, 32
  %v2074 = vpop.permute.xlu0 %2073
  %2075 = vrot.lane.b32.xlu0 %v2037, 32
  %v2076 = vpop.permute.xlu0 %2075
  %2077 = vrot.lane.b32.xlu0 %v2038, 32
  %v2078 = vpop.permute.xlu0 %2077
  %2079 = vrot.lane.b32.xlu0 %v2039, 32
  %v2080 = vpop.permute.xlu0 %2079
  %2081 = vrot.lane.b32.xlu0 %v2040, 32
  %v2082 = vpop.permute.xlu0 %2081
  %2083 = vrot.lane.b32.xlu0 %v2041, 32
  %v2084 = vpop.permute.xlu0 %2083
  %2085 = vrot.lane.b32.xlu0 %v2042, 32
  %v2086 = vpop.permute.xlu0 %2085
  %2087 = vrot.lane.b32.xlu0 %v2043, 32
  %v2088 = vpop.permute.xlu0 %2087
  %2089 = vrot.lane.b32.xlu0 %v2044, 32
  %v2090 = vpop.permute.xlu0 %2089
  %2091 = vrot.lane.b32.xlu0 %v2045, 32
  %v2092 = vpop.permute.xlu0 %2091
  %2093 = vrot.lane.b32.xlu0 %v2046, 32
  %v2094 = vpop.permute.xlu0 %2093
  %v2111 = vmul.f32 %v2000, %v2064
  %v2112 = vmul.f32 %v2002, %v2066
  %v2113 = vmul.f32 %v2004, %v2068
  %v2114 = vmul.f32 %v2006, %v2070
  %v2115 = vmul.f32 %v2008, %v2072
  %v2116 = vmul.f32 %v2010, %v2074
  %v2117 = vmul.f32 %v2012, %v2076
  %v2118 = vmul.f32 %v2014, %v2078
  %v2119 = vmul.f32 %v2016, %v2080
  %v2120 = vmul.f32 %v2018, %v2082
  %v2121 = vmul.f32 %v2020, %v2084
  %v2122 = vmul.f32 %v2022, %v2086
  %v2123 = vmul.f32 %v2024, %v2088
  %v2124 = vmul.f32 %v2026, %v2090
  %v2125 = vmul.f32 %v2028, %v2092
  %v2126 = vmul.f32 %v2030, %v2094
  %v2127 = vsub.f32 1.0, %v2000
  %v2128 = vsub.f32 1.0, %v2002
  %v2129 = vsub.f32 1.0, %v2004
  %v2130 = vsub.f32 1.0, %v2006
  %v2131 = vsub.f32 1.0, %v2008
  %v2132 = vsub.f32 1.0, %v2010
  %v2133 = vsub.f32 1.0, %v2012
  %v2134 = vsub.f32 1.0, %v2014
  %v2135 = vsub.f32 1.0, %v2016
  %v2136 = vsub.f32 1.0, %v2018
  %v2137 = vsub.f32 1.0, %v2020
  %v2138 = vsub.f32 1.0, %v2022
  %v2139 = vsub.f32 1.0, %v2024
  %v2140 = vsub.f32 1.0, %v2026
  %v2141 = vsub.f32 1.0, %v2028
  %v2142 = vsub.f32 1.0, %v2030
  %2143 = vrot.lane.b32.xlu0 %v1718, 32
  %v2144 = vpop.permute.xlu0 %2143
  %2145 = vrot.lane.b32.xlu0 %v1719, 32
  %v2146 = vpop.permute.xlu0 %2145
  %2147 = vrot.lane.b32.xlu0 %v1720, 32
  %v2148 = vpop.permute.xlu0 %2147
  %2149 = vrot.lane.b32.xlu0 %v1721, 32
  %v2150 = vpop.permute.xlu0 %2149
  %2151 = vrot.lane.b32.xlu0 %v1722, 32
  %v2152 = vpop.permute.xlu0 %2151
  %2153 = vrot.lane.b32.xlu0 %v1723, 32
  %v2154 = vpop.permute.xlu0 %2153
  %2155 = vrot.lane.b32.xlu0 %v1724, 32
  %v2156 = vpop.permute.xlu0 %2155
  %2157 = vrot.lane.b32.xlu0 %v1725, 32
  %v2158 = vpop.permute.xlu0 %2157
  %2159 = vrot.lane.b32.xlu0 %v1726, 32
  %v2160 = vpop.permute.xlu0 %2159
  %2161 = vrot.lane.b32.xlu0 %v1727, 32
  %v2162 = vpop.permute.xlu0 %2161
  %2163 = vrot.lane.b32.xlu0 %v1728, 32
  %v2164 = vpop.permute.xlu0 %2163
  %2165 = vrot.lane.b32.xlu0 %v1729, 32
  %v2166 = vpop.permute.xlu0 %2165
  %2167 = vrot.lane.b32.xlu0 %v1730, 32
  %v2168 = vpop.permute.xlu0 %2167
  %2169 = vrot.lane.b32.xlu0 %v1731, 32
  %v2170 = vpop.permute.xlu0 %2169
  %2171 = vrot.lane.b32.xlu0 %v1732, 32
  %v2172 = vpop.permute.xlu0 %2171
  %2173 = vrot.lane.b32.xlu0 %v1733, 32
  %v2174 = vpop.permute.xlu0 %2173
  %v2191 = vmul.f32 %v2127, %v2144
  %v2192 = vmul.f32 %v2128, %v2146
  %v2193 = vmul.f32 %v2129, %v2148
  %v2194 = vmul.f32 %v2130, %v2150
  %v2195 = vmul.f32 %v2131, %v2152
  %v2196 = vmul.f32 %v2132, %v2154
  %v2197 = vmul.f32 %v2133, %v2156
  %v2198 = vmul.f32 %v2134, %v2158
  %v2199 = vmul.f32 %v2135, %v2160
  %v2200 = vmul.f32 %v2136, %v2162
  %v2201 = vmul.f32 %v2137, %v2164
  %v2202 = vmul.f32 %v2138, %v2166
  %v2203 = vmul.f32 %v2139, %v2168
  %v2204 = vmul.f32 %v2140, %v2170
  %v2205 = vmul.f32 %v2141, %v2172
  %v2206 = vmul.f32 %v2142, %v2174
  %v2207 = vadd.f32 %v2111, %v2191
  %v2208 = vadd.f32 %v2112, %v2192
  %v2209 = vadd.f32 %v2113, %v2193
  %v2210 = vadd.f32 %v2114, %v2194
  %v2211 = vadd.f32 %v2115, %v2195
  %v2212 = vadd.f32 %v2116, %v2196
  %v2213 = vadd.f32 %v2117, %v2197
  %v2214 = vadd.f32 %v2118, %v2198
  %v2215 = vadd.f32 %v2119, %v2199
  %v2216 = vadd.f32 %v2120, %v2200
  %v2217 = vadd.f32 %v2121, %v2201
  %v2218 = vadd.f32 %v2122, %v2202
  %v2219 = vadd.f32 %v2123, %v2203
  %v2220 = vadd.f32 %v2124, %v2204
  %v2221 = vadd.f32 %v2125, %v2205
  %v2222 = vadd.f32 %v2126, %v2206
  %s2223 = scalar_lea.vmem %s5, 32
  %v2224 = vld [vmem:[%s2223] sm:$0xff]
  %v2225 = vld [vmem:[%s2223 + $0x8] sm:$0xff]
  %v2226 = vld [vmem:[%s2223 + $0x10] sm:$0xff]
  %v2227 = vld [vmem:[%s2223 + $0x18] sm:$0xff]
  %2244 = vrot.lane.b32.xlu0 %v2207, 96
  %v2245 = vpop.permute.xlu0 %2244
  %2246 = vrot.lane.b32.xlu0 %v2208, 96
  %v2247 = vpop.permute.xlu0 %2246
  %2248 = vrot.lane.b32.xlu0 %v2209, 96
  %v2249 = vpop.permute.xlu0 %2248
  %2250 = vrot.lane.b32.xlu0 %v2210, 96
  %v2251 = vpop.permute.xlu0 %2250
  %2252 = vrot.lane.b32.xlu0 %v2211, 96
  %v2253 = vpop.permute.xlu0 %2252
  %2254 = vrot.lane.b32.xlu0 %v2212, 96
  %v2255 = vpop.permute.xlu0 %2254
  %2256 = vrot.lane.b32.xlu0 %v2213, 96
  %v2257 = vpop.permute.xlu0 %2256
  %2258 = vrot.lane.b32.xlu0 %v2214, 96
  %v2259 = vpop.permute.xlu0 %2258
  %2260 = vrot.lane.b32.xlu0 %v2215, 96
  %v2261 = vpop.permute.xlu0 %2260
  %2262 = vrot.lane.b32.xlu0 %v2216, 96
  %v2263 = vpop.permute.xlu0 %2262
  %2264 = vrot.lane.b32.xlu0 %v2217, 96
  %v2265 = vpop.permute.xlu0 %2264
  %2266 = vrot.lane.b32.xlu0 %v2218, 96
  %v2267 = vpop.permute.xlu0 %2266
  %2268 = vrot.lane.b32.xlu0 %v2219, 96
  %v2269 = vpop.permute.xlu0 %2268
  %2270 = vrot.lane.b32.xlu0 %v2220, 96
  %v2271 = vpop.permute.xlu0 %2270
  %2272 = vrot.lane.b32.xlu0 %v2221, 96
  %v2273 = vpop.permute.xlu0 %2272
  %2274 = vrot.lane.b32.xlu0 %v2222, 96
  %v2275 = vpop.permute.xlu0 %2274
  %2277 = vrot.lane.b32.xlu0 %v1741, 64
  %v2278 = vpop.permute.xlu0 %2277
  %v2280 = vsel %vm551, %v2245, 0
  %v2282 = vsel %vm551, %v2247, 0
  %v2284 = vsel %vm551, %v2249, 0
  %v2286 = vsel %vm551, %v2251, 0
  %v2288 = vsel %vm551, %v2253, 0
  %v2290 = vsel %vm551, %v2255, 0
  %v2292 = vsel %vm551, %v2257, 0
  %v2294 = vsel %vm551, %v2259, 0
  %v2296 = vsel %vm551, %v2261, 0
  %v2298 = vsel %vm551, %v2263, 0
  %v2300 = vsel %vm551, %v2265, 0
  %v2302 = vsel %vm551, %v2267, 0
  %v2304 = vsel %vm551, %v2269, 0
  %v2306 = vsel %vm551, %v2271, 0
  %v2308 = vsel %vm551, %v2273, 0
  %v2310 = vsel %vm551, %v2275, 0
  %2312 = vmatprep.subr.mxu0 0.0
  %2313 = vmatpush1.msra.mxu0 0.0
  %2314 = vmatprep.subr.mxu0 0.0
  %2315 = vmatpush1.msra.mxu0 0.0
  %2316 = vmatprep.subr.mxu0 0.0
  %2317 = vmatpush1.msra.mxu0 0.0
  %2318 = vmatprep.subr.mxu0 0.0
  %2319 = vmatpush1.msra.mxu0 0.0
  %2320 = vmatprep.subr.mxu0 0.0
  %2321 = vmatpush1.msra.mxu0 0.0
  %2322 = vmatprep.subr.mxu0 0.0
  %2323 = vmatpush1.msra.mxu0 0.0
  %2324 = vmatprep.subr.mxu0 0.0
  %2325 = vmatpush1.msra.mxu0 0.0
  %2326 = vmatprep.subr.mxu0 0.0
  %2327 = vmatpush1.msra.mxu0 0.0
  %2328 = vmatprep.subr.mxu0 0.0
  %2329 = vmatpush1.msra.mxu0 0.0
  %2330 = vmatprep.subr.mxu0 0.0
  %2331 = vmatpush1.msra.mxu0 0.0
  %2332 = vmatprep.subr.mxu0 0.0
  %2333 = vmatpush1.msra.mxu0 0.0
  %2334 = vmatprep.subr.mxu0 0.0
  %2335 = vmatpush1.msra.mxu0 0.0
  %2336 = vmatprep.subr.mxu0 0.0
  %2337 = vmatpush1.msra.mxu0 %v2227
  %2338 = vmatprep.subr.mxu0 0.0
  %2339 = vmatpush1.msra.mxu0 %v2226
  %2340 = vmatprep.subr.mxu0 0.0
  %2341 = vmatpush1.msra.mxu0 %v2225
  %2342 = vmatprep.subr.mxu0 0.0
  %2343 = vmatpush1.msra.mxu0 %v2224
  %2344 = vmatprep.subr.mxu0 0.0
  %2345 = vmatpush2.msra.mxu0 0.0
  %2346 = vmatprep.subr.mxu0 0.0
  %2347 = vmatpush2.msra.mxu0 0.0
  %2348 = vmatprep.subr.mxu0 0.0
  %2349 = vmatpush2.msra.mxu0 0.0
  %2350 = vmatprep.subr.mxu0 0.0
  %2351 = vmatpush2.msra.mxu0 0.0
  %2352 = vmatprep.subr.mxu0 0.0
  %2353 = vmatpush2.msra.mxu0 0.0
  %2354 = vmatprep.subr.mxu0 0.0
  %2355 = vmatpush2.msra.mxu0 0.0
  %2356 = vmatprep.subr.mxu0 0.0
  %2357 = vmatpush2.msra.mxu0 0.0
  %2358 = vmatprep.subr.mxu0 0.0
  %2359 = vmatpush2.msra.mxu0 0.0
  %2360 = vmatprep.subr.mxu0 0.0
  %2361 = vmatpush2.msra.mxu0 0.0
  %2362 = vmatprep.subr.mxu0 0.0
  %2363 = vmatpush2.msra.mxu0 0.0
  %2364 = vmatprep.subr.mxu0 0.0
  %2365 = vmatpush2.msra.mxu0 0.0
  %2366 = vmatprep.subr.mxu0 0.0
  %2367 = vmatpush2.msra.mxu0 0.0
  %2368 = vmatprep.subr.mxu0 0.0
  %2369 = vmatpush2.msra.mxu0 0.0
  %2370 = vmatprep.subr.mxu0 0.0
  %2371 = vmatpush2.msra.mxu0 0.0
  %2372 = vmatprep.subr.mxu0 0.0
  %2373 = vmatpush2.msra.mxu0 0.0
  %2374 = vmatprep.subr.mxu0 0.0
  %2375 = vmatpush2.msra.mxu0 0.0
  %2376 = vmatprep.mubr.f32.mxu0 0.0
  %2377 = vmatmul.mubr.f32.gmra.mxu0 %v2280
  %v2378 = vpop.f32.mrf.mxu0
  %v2379 = vadd.f32 %v2278, %v2378
  %v2380 = vpop.f32.mrf.mxu0
  %2381 = vmatprep.mubr.f32.mxu0 0.0
  %2382 = vmatmul.mubr.f32.gmra.mxu0 %v2282
  %v2383 = vpop.f32.mrf.mxu0
  %v2384 = vadd.f32 %v2278, %v2383
  %v2385 = vpop.f32.mrf.mxu0
  %2386 = vmatprep.mubr.f32.mxu0 0.0
  %2387 = vmatmul.mubr.f32.gmra.mxu0 %v2284
  %v2388 = vpop.f32.mrf.mxu0
  %v2389 = vadd.f32 %v2278, %v2388
  %v2390 = vpop.f32.mrf.mxu0
  %2391 = vmatprep.mubr.f32.mxu0 0.0
  %2392 = vmatmul.mubr.f32.gmra.mxu0 %v2286
  %v2393 = vpop.f32.mrf.mxu0
  %v2394 = vadd.f32 %v2278, %v2393
  %v2395 = vpop.f32.mrf.mxu0
  %2396 = vmatprep.mubr.f32.mxu0 0.0
  %2397 = vmatmul.mubr.f32.gmra.mxu0 %v2288
  %v2398 = vpop.f32.mrf.mxu0
  %v2399 = vadd.f32 %v2278, %v2398
  %v2400 = vpop.f32.mrf.mxu0
  %2401 = vmatprep.mubr.f32.mxu0 0.0
  %2402 = vmatmul.mubr.f32.gmra.mxu0 %v2290
  %v2403 = vpop.f32.mrf.mxu0
  %v2404 = vadd.f32 %v2278, %v2403
  %v2405 = vpop.f32.mrf.mxu0
  %2406 = vmatprep.mubr.f32.mxu0 0.0
  %2407 = vmatmul.mubr.f32.gmra.mxu0 %v2292
  %v2408 = vpop.f32.mrf.mxu0
  %v2409 = vadd.f32 %v2278, %v2408
  %v2410 = vpop.f32.mrf.mxu0
  %2411 = vmatprep.mubr.f32.mxu0 0.0
  %2412 = vmatmul.mubr.f32.gmra.mxu0 %v2294
  %v2413 = vpop.f32.mrf.mxu0
  %v2414 = vadd.f32 %v2278, %v2413
  %v2415 = vpop.f32.mrf.mxu0
  %2416 = vmatprep.mubr.f32.mxu0 0.0
  %2417 = vmatmul.mubr.f32.gmra.mxu0 %v2296
  %v2418 = vpop.f32.mrf.mxu0
  %v2419 = vadd.f32 %v2278, %v2418
  %v2420 = vpop.f32.mrf.mxu0
  %2421 = vmatprep.mubr.f32.mxu0 0.0
  %2422 = vmatmul.mubr.f32.gmra.mxu0 %v2298
  %v2423 = vpop.f32.mrf.mxu0
  %v2424 = vadd.f32 %v2278, %v2423
  %v2425 = vpop.f32.mrf.mxu0
  %2426 = vmatprep.mubr.f32.mxu0 0.0
  %2427 = vmatmul.mubr.f32.gmra.mxu0 %v2300
  %v2428 = vpop.f32.mrf.mxu0
  %v2429 = vadd.f32 %v2278, %v2428
  %v2430 = vpop.f32.mrf.mxu0
  %2431 = vmatprep.mubr.f32.mxu0 0.0
  %2432 = vmatmul.mubr.f32.gmra.mxu0 %v2302
  %v2433 = vpop.f32.mrf.mxu0
  %v2434 = vadd.f32 %v2278, %v2433
  %v2435 = vpop.f32.mrf.mxu0
  %2436 = vmatprep.mubr.f32.mxu0 0.0
  %2437 = vmatmul.mubr.f32.gmra.mxu0 %v2304
  %v2438 = vpop.f32.mrf.mxu0
  %v2439 = vadd.f32 %v2278, %v2438
  %v2440 = vpop.f32.mrf.mxu0
  %2441 = vmatprep.mubr.f32.mxu0 0.0
  %2442 = vmatmul.mubr.f32.gmra.mxu0 %v2306
  %v2443 = vpop.f32.mrf.mxu0
  %v2444 = vadd.f32 %v2278, %v2443
  %v2445 = vpop.f32.mrf.mxu0
  %2446 = vmatprep.mubr.f32.mxu0 0.0
  %2447 = vmatmul.mubr.f32.gmra.mxu0 %v2308
  %v2448 = vpop.f32.mrf.mxu0
  %v2449 = vadd.f32 %v2278, %v2448
  %v2450 = vpop.f32.mrf.mxu0
  %2451 = vmatprep.mubr.f32.mxu0 0.0
  %2452 = vmatmul.mubr.f32.gmra.mxu0 %v2310
  %v2453 = vpop.f32.mrf.mxu0
  %v2454 = vadd.f32 %v2278, %v2453
  %v2455 = vpop.f32.mrf.mxu0
  %2456 = vdwg.mxu0
  %v2457 = vxor.u32 %v2379, 2147483648
  %v2458 = vxor.u32 %v2384, 2147483648
  %v2459 = vxor.u32 %v2389, 2147483648
  %v2460 = vxor.u32 %v2394, 2147483648
  %v2461 = vxor.u32 %v2399, 2147483648
  %v2462 = vxor.u32 %v2404, 2147483648
  %v2463 = vxor.u32 %v2409, 2147483648
  %v2464 = vxor.u32 %v2414, 2147483648
  %v2465 = vxor.u32 %v2419, 2147483648
  %v2466 = vxor.u32 %v2424, 2147483648
  %v2467 = vxor.u32 %v2429, 2147483648
  %v2468 = vxor.u32 %v2434, 2147483648
  %v2469 = vxor.u32 %v2439, 2147483648
  %v2470 = vxor.u32 %v2444, 2147483648
  %v2471 = vxor.u32 %v2449, 2147483648
  %v2472 = vxor.u32 %v2454, 2147483648
  %v2473 = vmul.f32 %v2457, 1.442695
  %v2474 = vpow.pop %v2473
  %v2475 = vmul.f32 %v2458, 1.442695
  %v2476 = vpow.pop %v2475
  %v2477 = vmul.f32 %v2459, 1.442695
  %v2478 = vpow.pop %v2477
  %v2479 = vmul.f32 %v2460, 1.442695
  %v2480 = vpow.pop %v2479
  %v2481 = vmul.f32 %v2461, 1.442695
  %v2482 = vpow.pop %v2481
  %v2483 = vmul.f32 %v2462, 1.442695
  %v2484 = vpow.pop %v2483
  %v2485 = vmul.f32 %v2463, 1.442695
  %v2486 = vpow.pop %v2485
  %v2487 = vmul.f32 %v2464, 1.442695
  %v2488 = vpow.pop %v2487
  %v2489 = vmul.f32 %v2465, 1.442695
  %v2490 = vpow.pop %v2489
  %v2491 = vmul.f32 %v2466, 1.442695
  %v2492 = vpow.pop %v2491
  %v2493 = vmul.f32 %v2467, 1.442695
  %v2494 = vpow.pop %v2493
  %v2495 = vmul.f32 %v2468, 1.442695
  %v2496 = vpow.pop %v2495
  %v2497 = vmul.f32 %v2469, 1.442695
  %v2498 = vpow.pop %v2497
  %v2499 = vmul.f32 %v2470, 1.442695
  %v2500 = vpow.pop %v2499
  %v2501 = vmul.f32 %v2471, 1.442695
  %v2502 = vpow.pop %v2501
  %v2503 = vmul.f32 %v2472, 1.442695
  %v2504 = vpow.pop %v2503
  %v2505 = vadd.f32 %v2474, 1.0
  %v2506 = vadd.f32 %v2476, 1.0
  %v2507 = vadd.f32 %v2478, 1.0
  %v2508 = vadd.f32 %v2480, 1.0
  %v2509 = vadd.f32 %v2482, 1.0
  %v2510 = vadd.f32 %v2484, 1.0
  %v2511 = vadd.f32 %v2486, 1.0
  %v2512 = vadd.f32 %v2488, 1.0
  %v2513 = vadd.f32 %v2490, 1.0
  %v2514 = vadd.f32 %v2492, 1.0
  %v2515 = vadd.f32 %v2494, 1.0
  %v2516 = vadd.f32 %v2496, 1.0
  %v2517 = vadd.f32 %v2498, 1.0
  %v2518 = vadd.f32 %v2500, 1.0
  %v2519 = vadd.f32 %v2502, 1.0
  %v2520 = vadd.f32 %v2504, 1.0
  %v2521 = vrcp.pop %v2505
  %v2522 = vmul.f32 1.0, %v2521
  %v2523 = vrcp.pop %v2506
  %v2524 = vmul.f32 1.0, %v2523
  %v2525 = vrcp.pop %v2507
  %v2526 = vmul.f32 1.0, %v2525
  %v2527 = vrcp.pop %v2508
  %v2528 = vmul.f32 1.0, %v2527
  %v2529 = vrcp.pop %v2509
  %v2530 = vmul.f32 1.0, %v2529
  %v2531 = vrcp.pop %v2510
  %v2532 = vmul.f32 1.0, %v2531
  %v2533 = vrcp.pop %v2511
  %v2534 = vmul.f32 1.0, %v2533
  %v2535 = vrcp.pop %v2512
  %v2536 = vmul.f32 1.0, %v2535
  %v2537 = vrcp.pop %v2513
  %v2538 = vmul.f32 1.0, %v2537
  %v2539 = vrcp.pop %v2514
  %v2540 = vmul.f32 1.0, %v2539
  %v2541 = vrcp.pop %v2515
  %v2542 = vmul.f32 1.0, %v2541
  %v2543 = vrcp.pop %v2516
  %v2544 = vmul.f32 1.0, %v2543
  %v2545 = vrcp.pop %v2517
  %v2546 = vmul.f32 1.0, %v2545
  %v2547 = vrcp.pop %v2518
  %v2548 = vmul.f32 1.0, %v2547
  %v2549 = vrcp.pop %v2519
  %v2550 = vmul.f32 1.0, %v2549
  %v2551 = vrcp.pop %v2520
  %v2552 = vmul.f32 1.0, %v2551
  %v2553 = vmax.f32 %v2379, 0.0
  %v2554 = vmax.f32 %v2384, 0.0
  %v2555 = vmax.f32 %v2389, 0.0
  %v2556 = vmax.f32 %v2394, 0.0
  %v2557 = vmax.f32 %v2399, 0.0
  %v2558 = vmax.f32 %v2404, 0.0
  %v2559 = vmax.f32 %v2409, 0.0
  %v2560 = vmax.f32 %v2414, 0.0
  %v2561 = vmax.f32 %v2419, 0.0
  %v2562 = vmax.f32 %v2424, 0.0
  %v2563 = vmax.f32 %v2429, 0.0
  %v2564 = vmax.f32 %v2434, 0.0
  %v2565 = vmax.f32 %v2439, 0.0
  %v2566 = vmax.f32 %v2444, 0.0
  %v2567 = vmax.f32 %v2449, 0.0
  %v2568 = vmax.f32 %v2454, 0.0
  %2585 = vrot.lane.b32.xlu0 %v2553, 32
  %v2586 = vpop.permute.xlu0 %2585
  %2587 = vrot.lane.b32.xlu0 %v2554, 32
  %v2588 = vpop.permute.xlu0 %2587
  %2589 = vrot.lane.b32.xlu0 %v2555, 32
  %v2590 = vpop.permute.xlu0 %2589
  %2591 = vrot.lane.b32.xlu0 %v2556, 32
  %v2592 = vpop.permute.xlu0 %2591
  %2593 = vrot.lane.b32.xlu0 %v2557, 32
  %v2594 = vpop.permute.xlu0 %2593
  %2595 = vrot.lane.b32.xlu0 %v2558, 32
  %v2596 = vpop.permute.xlu0 %2595
  %2597 = vrot.lane.b32.xlu0 %v2559, 32
  %v2598 = vpop.permute.xlu0 %2597
  %2599 = vrot.lane.b32.xlu0 %v2560, 32
  %v2600 = vpop.permute.xlu0 %2599
  %2601 = vrot.lane.b32.xlu0 %v2561, 32
  %v2602 = vpop.permute.xlu0 %2601
  %2603 = vrot.lane.b32.xlu0 %v2562, 32
  %v2604 = vpop.permute.xlu0 %2603
  %2605 = vrot.lane.b32.xlu0 %v2563, 32
  %v2606 = vpop.permute.xlu0 %2605
  %2607 = vrot.lane.b32.xlu0 %v2564, 32
  %v2608 = vpop.permute.xlu0 %2607
  %2609 = vrot.lane.b32.xlu0 %v2565, 32
  %v2610 = vpop.permute.xlu0 %2609
  %2611 = vrot.lane.b32.xlu0 %v2566, 32
  %v2612 = vpop.permute.xlu0 %2611
  %2613 = vrot.lane.b32.xlu0 %v2567, 32
  %v2614 = vpop.permute.xlu0 %2613
  %2615 = vrot.lane.b32.xlu0 %v2568, 32
  %v2616 = vpop.permute.xlu0 %2615
  %v2633 = vmul.f32 %v2522, %v2586
  %v2634 = vmul.f32 %v2524, %v2588
  %v2635 = vmul.f32 %v2526, %v2590
  %v2636 = vmul.f32 %v2528, %v2592
  %v2637 = vmul.f32 %v2530, %v2594
  %v2638 = vmul.f32 %v2532, %v2596
  %v2639 = vmul.f32 %v2534, %v2598
  %v2640 = vmul.f32 %v2536, %v2600
  %v2641 = vmul.f32 %v2538, %v2602
  %v2642 = vmul.f32 %v2540, %v2604
  %v2643 = vmul.f32 %v2542, %v2606
  %v2644 = vmul.f32 %v2544, %v2608
  %v2645 = vmul.f32 %v2546, %v2610
  %v2646 = vmul.f32 %v2548, %v2612
  %v2647 = vmul.f32 %v2550, %v2614
  %v2648 = vmul.f32 %v2552, %v2616
  %v2649 = vsub.f32 1.0, %v2522
  %v2650 = vsub.f32 1.0, %v2524
  %v2651 = vsub.f32 1.0, %v2526
  %v2652 = vsub.f32 1.0, %v2528
  %v2653 = vsub.f32 1.0, %v2530
  %v2654 = vsub.f32 1.0, %v2532
  %v2655 = vsub.f32 1.0, %v2534
  %v2656 = vsub.f32 1.0, %v2536
  %v2657 = vsub.f32 1.0, %v2538
  %v2658 = vsub.f32 1.0, %v2540
  %v2659 = vsub.f32 1.0, %v2542
  %v2660 = vsub.f32 1.0, %v2544
  %v2661 = vsub.f32 1.0, %v2546
  %v2662 = vsub.f32 1.0, %v2548
  %v2663 = vsub.f32 1.0, %v2550
  %v2664 = vsub.f32 1.0, %v2552
  %v2665 = vmul.f32 %v2649, %v2207
  %v2666 = vmul.f32 %v2650, %v2208
  %v2667 = vmul.f32 %v2651, %v2209
  %v2668 = vmul.f32 %v2652, %v2210
  %v2669 = vmul.f32 %v2653, %v2211
  %v2670 = vmul.f32 %v2654, %v2212
  %v2671 = vmul.f32 %v2655, %v2213
  %v2672 = vmul.f32 %v2656, %v2214
  %v2673 = vmul.f32 %v2657, %v2215
  %v2674 = vmul.f32 %v2658, %v2216
  %v2675 = vmul.f32 %v2659, %v2217
  %v2676 = vmul.f32 %v2660, %v2218
  %v2677 = vmul.f32 %v2661, %v2219
  %v2678 = vmul.f32 %v2662, %v2220
  %v2679 = vmul.f32 %v2663, %v2221
  %v2680 = vmul.f32 %v2664, %v2222
  %v2681 = vadd.f32 %v2633, %v2665
  %v2682 = vadd.f32 %v2634, %v2666
  %v2683 = vadd.f32 %v2635, %v2667
  %v2684 = vadd.f32 %v2636, %v2668
  %v2685 = vadd.f32 %v2637, %v2669
  %v2686 = vadd.f32 %v2638, %v2670
  %v2687 = vadd.f32 %v2639, %v2671
  %v2688 = vadd.f32 %v2640, %v2672
  %v2689 = vadd.f32 %v2641, %v2673
  %v2690 = vadd.f32 %v2642, %v2674
  %v2691 = vadd.f32 %v2643, %v2675
  %v2692 = vadd.f32 %v2644, %v2676
  %v2693 = vadd.f32 %v2645, %v2677
  %v2694 = vadd.f32 %v2646, %v2678
  %v2695 = vadd.f32 %v2647, %v2679
  %v2696 = vadd.f32 %v2648, %v2680
  %v2697 = vld [vmem:[%s6] sm:$0xff]
  %v2698 = vld [vmem:[%s6 + $0x8] sm:$0xff]
  %v2699 = vld [vmem:[%s6 + $0x10] sm:$0xff]
  %v2700 = vld [vmem:[%s6 + $0x18] sm:$0xff]
  %v2701 = vld [vmem:[%s6 + $0x20] sm:$0xff]
  %v2702 = vld [vmem:[%s6 + $0x28] sm:$0xff]
  %v2703 = vld [vmem:[%s6 + $0x30] sm:$0xff]
  %v2704 = vld [vmem:[%s6 + $0x38] sm:$0xff]
  %v2705 = vlaneseq
  %v2706 = vshrl.u32 %v2705, 7
  %v2707 = vsub.s32 4, %v2706
  %v2708 = vrot.slane %v48, %v2707
  %v2709 = vlaneseq
  %v2710 = vshrl.u32 %v2709, 7
  %v2711 = vsub.s32 4, %v2710
  %v2712 = vrot.slane %v49, %v2711
  %2729 = vrot.lane.b32.xlu0 %v2681, 96
  %v2730 = vpop.permute.xlu0 %2729
  %2731 = vrot.lane.b32.xlu0 %v2682, 96
  %v2732 = vpop.permute.xlu0 %2731
  %2733 = vrot.lane.b32.xlu0 %v2683, 96
  %v2734 = vpop.permute.xlu0 %2733
  %2735 = vrot.lane.b32.xlu0 %v2684, 96
  %v2736 = vpop.permute.xlu0 %2735
  %2737 = vrot.lane.b32.xlu0 %v2685, 96
  %v2738 = vpop.permute.xlu0 %2737
  %2739 = vrot.lane.b32.xlu0 %v2686, 96
  %v2740 = vpop.permute.xlu0 %2739
  %2741 = vrot.lane.b32.xlu0 %v2687, 96
  %v2742 = vpop.permute.xlu0 %2741
  %2743 = vrot.lane.b32.xlu0 %v2688, 96
  %v2744 = vpop.permute.xlu0 %2743
  %2745 = vrot.lane.b32.xlu0 %v2689, 96
  %v2746 = vpop.permute.xlu0 %2745
  %2747 = vrot.lane.b32.xlu0 %v2690, 96
  %v2748 = vpop.permute.xlu0 %2747
  %2749 = vrot.lane.b32.xlu0 %v2691, 96
  %v2750 = vpop.permute.xlu0 %2749
  %2751 = vrot.lane.b32.xlu0 %v2692, 96
  %v2752 = vpop.permute.xlu0 %2751
  %2753 = vrot.lane.b32.xlu0 %v2693, 96
  %v2754 = vpop.permute.xlu0 %2753
  %2755 = vrot.lane.b32.xlu0 %v2694, 96
  %v2756 = vpop.permute.xlu0 %2755
  %2757 = vrot.lane.b32.xlu0 %v2695, 96
  %v2758 = vpop.permute.xlu0 %2757
  %2759 = vrot.lane.b32.xlu0 %v2696, 96
  %v2760 = vpop.permute.xlu0 %2759
  %v2761 = vsel %vm551, %v2730, 0
  %v2763 = vsel %vm551, %v2732, 0
  %v2765 = vsel %vm551, %v2734, 0
  %v2767 = vsel %vm551, %v2736, 0
  %v2769 = vsel %vm551, %v2738, 0
  %v2771 = vsel %vm551, %v2740, 0
  %v2773 = vsel %vm551, %v2742, 0
  %v2775 = vsel %vm551, %v2744, 0
  %v2777 = vsel %vm551, %v2746, 0
  %v2779 = vsel %vm551, %v2748, 0
  %v2781 = vsel %vm551, %v2750, 0
  %v2783 = vsel %vm551, %v2752, 0
  %v2785 = vsel %vm551, %v2754, 0
  %v2787 = vsel %vm551, %v2756, 0
  %v2789 = vsel %vm551, %v2758, 0
  %v2791 = vsel %vm551, %v2760, 0
  %2793 = vmatprep.subr.mxu0 0.0
  %2794 = vmatpush1.msra.mxu0 0.0
  %2795 = vmatprep.subr.mxu0 0.0
  %2796 = vmatpush1.msra.mxu0 0.0
  %2797 = vmatprep.subr.mxu0 0.0
  %2798 = vmatpush1.msra.mxu0 0.0
  %2799 = vmatprep.subr.mxu0 0.0
  %2800 = vmatpush1.msra.mxu0 0.0
  %2801 = vmatprep.subr.mxu0 0.0
  %2802 = vmatpush1.msra.mxu0 0.0
  %2803 = vmatprep.subr.mxu0 0.0
  %2804 = vmatpush1.msra.mxu0 0.0
  %2805 = vmatprep.subr.mxu0 0.0
  %2806 = vmatpush1.msra.mxu0 0.0
  %2807 = vmatprep.subr.mxu0 0.0
  %2808 = vmatpush1.msra.mxu0 0.0
  %2809 = vmatprep.subr.mxu0 0.0
  %2810 = vmatpush1.msra.mxu0 0.0
  %2811 = vmatprep.subr.mxu0 0.0
  %2812 = vmatpush1.msra.mxu0 0.0
  %2813 = vmatprep.subr.mxu0 0.0
  %2814 = vmatpush1.msra.mxu0 0.0
  %2815 = vmatprep.subr.mxu0 0.0
  %2816 = vmatpush1.msra.mxu0 0.0
  %2817 = vmatprep.subr.mxu0 %v2704
  %2818 = vmatpush1.msra.mxu0 %v2703
  %2819 = vmatprep.subr.mxu0 %v2702
  %2820 = vmatpush1.msra.mxu0 %v2701
  %2821 = vmatprep.subr.mxu0 %v2700
  %2822 = vmatpush1.msra.mxu0 %v2699
  %2823 = vmatprep.subr.mxu0 %v2698
  %2824 = vmatpush1.msra.mxu0 %v2697
  %2825 = vmatprep.subr.mxu0 0.0
  %2826 = vmatpush2.msra.mxu0 0.0
  %2827 = vmatprep.subr.mxu0 0.0
  %2828 = vmatpush2.msra.mxu0 0.0
  %2829 = vmatprep.subr.mxu0 0.0
  %2830 = vmatpush2.msra.mxu0 0.0
  %2831 = vmatprep.subr.mxu0 0.0
  %2832 = vmatpush2.msra.mxu0 0.0
  %2833 = vmatprep.subr.mxu0 0.0
  %2834 = vmatpush2.msra.mxu0 0.0
  %2835 = vmatprep.subr.mxu0 0.0
  %2836 = vmatpush2.msra.mxu0 0.0
  %2837 = vmatprep.subr.mxu0 0.0
  %2838 = vmatpush2.msra.mxu0 0.0
  %2839 = vmatprep.subr.mxu0 0.0
  %2840 = vmatpush2.msra.mxu0 0.0
  %2841 = vmatprep.subr.mxu0 0.0
  %2842 = vmatpush2.msra.mxu0 0.0
  %2843 = vmatprep.subr.mxu0 0.0
  %2844 = vmatpush2.msra.mxu0 0.0
  %2845 = vmatprep.subr.mxu0 0.0
  %2846 = vmatpush2.msra.mxu0 0.0
  %2847 = vmatprep.subr.mxu0 0.0
  %2848 = vmatpush2.msra.mxu0 0.0
  %2849 = vmatprep.subr.mxu0 0.0
  %2850 = vmatpush2.msra.mxu0 0.0
  %2851 = vmatprep.subr.mxu0 0.0
  %2852 = vmatpush2.msra.mxu0 0.0
  %2853 = vmatprep.subr.mxu0 0.0
  %2854 = vmatpush2.msra.mxu0 0.0
  %2855 = vmatprep.subr.mxu0 0.0
  %2856 = vmatpush2.msra.mxu0 0.0
  %2857 = vmatprep.mubr.f32.mxu0 0.0
  %2858 = vmatmul.mubr.f32.gmra.mxu0 %v2761
  %v2859 = vpop.f32.mrf.mxu0
  %v2860 = vadd.f32 %v2708, %v2859
  %v2861 = vpop.f32.mrf.mxu0
  %v2862 = vadd.f32 %v2712, %v2861
  %2863 = vmatprep.mubr.f32.mxu0 0.0
  %2864 = vmatmul.mubr.f32.gmra.mxu0 %v2763
  %v2865 = vpop.f32.mrf.mxu0
  %v2866 = vadd.f32 %v2708, %v2865
  %v2867 = vpop.f32.mrf.mxu0
  %v2868 = vadd.f32 %v2712, %v2867
  %2869 = vmatprep.mubr.f32.mxu0 0.0
  %2870 = vmatmul.mubr.f32.gmra.mxu0 %v2765
  %v2871 = vpop.f32.mrf.mxu0
  %v2872 = vadd.f32 %v2708, %v2871
  %v2873 = vpop.f32.mrf.mxu0
  %v2874 = vadd.f32 %v2712, %v2873
  %2875 = vmatprep.mubr.f32.mxu0 0.0
  %2876 = vmatmul.mubr.f32.gmra.mxu0 %v2767
  %v2877 = vpop.f32.mrf.mxu0
  %v2878 = vadd.f32 %v2708, %v2877
  %v2879 = vpop.f32.mrf.mxu0
  %v2880 = vadd.f32 %v2712, %v2879
  %2881 = vmatprep.mubr.f32.mxu0 0.0
  %2882 = vmatmul.mubr.f32.gmra.mxu0 %v2769
  %v2883 = vpop.f32.mrf.mxu0
  %v2884 = vadd.f32 %v2708, %v2883
  %v2885 = vpop.f32.mrf.mxu0
  %v2886 = vadd.f32 %v2712, %v2885
  %2887 = vmatprep.mubr.f32.mxu0 0.0
  %2888 = vmatmul.mubr.f32.gmra.mxu0 %v2771
  %v2889 = vpop.f32.mrf.mxu0
  %v2890 = vadd.f32 %v2708, %v2889
  %v2891 = vpop.f32.mrf.mxu0
  %v2892 = vadd.f32 %v2712, %v2891
  %2893 = vmatprep.mubr.f32.mxu0 0.0
  %2894 = vmatmul.mubr.f32.gmra.mxu0 %v2773
  %v2895 = vpop.f32.mrf.mxu0
  %v2896 = vadd.f32 %v2708, %v2895
  %v2897 = vpop.f32.mrf.mxu0
  %v2898 = vadd.f32 %v2712, %v2897
  %2899 = vmatprep.mubr.f32.mxu0 0.0
  %2900 = vmatmul.mubr.f32.gmra.mxu0 %v2775
  %v2901 = vpop.f32.mrf.mxu0
  %v2902 = vadd.f32 %v2708, %v2901
  %v2903 = vpop.f32.mrf.mxu0
  %v2904 = vadd.f32 %v2712, %v2903
  %2905 = vmatprep.mubr.f32.mxu0 0.0
  %2906 = vmatmul.mubr.f32.gmra.mxu0 %v2777
  %v2907 = vpop.f32.mrf.mxu0
  %v2908 = vadd.f32 %v2708, %v2907
  %v2909 = vpop.f32.mrf.mxu0
  %v2910 = vadd.f32 %v2712, %v2909
  %2911 = vmatprep.mubr.f32.mxu0 0.0
  %2912 = vmatmul.mubr.f32.gmra.mxu0 %v2779
  %v2913 = vpop.f32.mrf.mxu0
  %v2914 = vadd.f32 %v2708, %v2913
  %v2915 = vpop.f32.mrf.mxu0
  %v2916 = vadd.f32 %v2712, %v2915
  %2917 = vmatprep.mubr.f32.mxu0 0.0
  %2918 = vmatmul.mubr.f32.gmra.mxu0 %v2781
  %v2919 = vpop.f32.mrf.mxu0
  %v2920 = vadd.f32 %v2708, %v2919
  %v2921 = vpop.f32.mrf.mxu0
  %v2922 = vadd.f32 %v2712, %v2921
  %2923 = vmatprep.mubr.f32.mxu0 0.0
  %2924 = vmatmul.mubr.f32.gmra.mxu0 %v2783
  %v2925 = vpop.f32.mrf.mxu0
  %v2926 = vadd.f32 %v2708, %v2925
  %v2927 = vpop.f32.mrf.mxu0
  %v2928 = vadd.f32 %v2712, %v2927
  %2929 = vmatprep.mubr.f32.mxu0 0.0
  %2930 = vmatmul.mubr.f32.gmra.mxu0 %v2785
  %v2931 = vpop.f32.mrf.mxu0
  %v2932 = vadd.f32 %v2708, %v2931
  %v2933 = vpop.f32.mrf.mxu0
  %v2934 = vadd.f32 %v2712, %v2933
  %2935 = vmatprep.mubr.f32.mxu0 0.0
  %2936 = vmatmul.mubr.f32.gmra.mxu0 %v2787
  %v2937 = vpop.f32.mrf.mxu0
  %v2938 = vadd.f32 %v2708, %v2937
  %v2939 = vpop.f32.mrf.mxu0
  %v2940 = vadd.f32 %v2712, %v2939
  %2941 = vmatprep.mubr.f32.mxu0 0.0
  %2942 = vmatmul.mubr.f32.gmra.mxu0 %v2789
  %v2943 = vpop.f32.mrf.mxu0
  %v2944 = vadd.f32 %v2708, %v2943
  %v2945 = vpop.f32.mrf.mxu0
  %v2946 = vadd.f32 %v2712, %v2945
  %2947 = vmatprep.mubr.f32.mxu0 0.0
  %2948 = vmatmul.mubr.f32.gmra.mxu0 %v2791
  %v2949 = vpop.f32.mrf.mxu0
  %v2950 = vadd.f32 %v2708, %v2949
  %v2951 = vpop.f32.mrf.mxu0
  %v2952 = vadd.f32 %v2712, %v2951
  %2953 = vdwg.mxu0
  %2954 = vst [vmem:[#allocation2] sm:$0xff] %v2860
  %2955 = vst.msk [vmem:[#allocation2 + $0x8] sm:$0xff] %vm593, %v2862
  %2956 = vst [vmem:[#allocation2 + $0x10] sm:$0xff] %v2866
  %2957 = vst.msk [vmem:[#allocation2 + $0x18] sm:$0xff] %vm593, %v2868
  %2958 = vst [vmem:[#allocation2 + $0x20] sm:$0xff] %v2872
  %2959 = vst.msk [vmem:[#allocation2 + $0x28] sm:$0xff] %vm593, %v2874
  %2960 = vst [vmem:[#allocation2 + $0x30] sm:$0xff] %v2878
  %2961 = vst.msk [vmem:[#allocation2 + $0x38] sm:$0xff] %vm593, %v2880
  %2962 = vst [vmem:[#allocation2 + $0x40] sm:$0xff] %v2884
  %2963 = vst.msk [vmem:[#allocation2 + $0x48] sm:$0xff] %vm593, %v2886
  %2964 = vst [vmem:[#allocation2 + $0x50] sm:$0xff] %v2890
  %2965 = vst.msk [vmem:[#allocation2 + $0x58] sm:$0xff] %vm593, %v2892
  %2966 = vst [vmem:[#allocation2 + $0x60] sm:$0xff] %v2896
  %2967 = vst.msk [vmem:[#allocation2 + $0x68] sm:$0xff] %vm593, %v2898
  %2968 = vst [vmem:[#allocation2 + $0x70] sm:$0xff] %v2902
  %2969 = vst.msk [vmem:[#allocation2 + $0x78] sm:$0xff] %vm593, %v2904
  %2970 = vst [vmem:[#allocation2 + $0x80] sm:$0xff] %v2908
  %2971 = vst.msk [vmem:[#allocation2 + $0x88] sm:$0xff] %vm593, %v2910
  %2972 = vst [vmem:[#allocation2 + $0x90] sm:$0xff] %v2914
  %2973 = vst.msk [vmem:[#allocation2 + $0x98] sm:$0xff] %vm593, %v2916
  %2974 = vst [vmem:[#allocation2 + $0xa0] sm:$0xff] %v2920
  %2975 = vst.msk [vmem:[#allocation2 + $0xa8] sm:$0xff] %vm593, %v2922
  %2976 = vst [vmem:[#allocation2 + $0xb0] sm:$0xff] %v2926
  %2977 = vst.msk [vmem:[#allocation2 + $0xb8] sm:$0xff] %vm593, %v2928
  %2978 = vst [vmem:[#allocation2 + $0xc0] sm:$0xff] %v2932
  %2979 = vst.msk [vmem:[#allocation2 + $0xc8] sm:$0xff] %vm593, %v2934
  %2980 = vst [vmem:[#allocation2 + $0xd0] sm:$0xff] %v2938
  %2981 = vst.msk [vmem:[#allocation2 + $0xd8] sm:$0xff] %vm593, %v2940
  %2982 = vst [vmem:[#allocation2 + $0xe0] sm:$0xff] %v2944
  %2983 = vst.msk [vmem:[#allocation2 + $0xe8] sm:$0xff] %vm593, %v2946
  %2984 = vst [vmem:[#allocation2 + $0xf0] sm:$0xff] %v2950
  %2985 = vst.msk [vmem:[#allocation2 + $0xf8] sm:$0xff] %vm593, %v2952
  %v2986 = vld [vmem:[%s7] sm:$0xff]
  %v2987 = vld [vmem:[%s7 + $0x8] sm:$0xff]
  %v2988 = vld [vmem:[%s7 + $0x10] sm:$0xff]
  %v2989 = vld [vmem:[%s7 + $0x18] sm:$0xff]
  %v2990 = vld [vmem:[%s7 + $0x20] sm:$0xff]
  %v2991 = vld [vmem:[%s7 + $0x28] sm:$0xff]
  %v2992 = vld [vmem:[%s7 + $0x30] sm:$0xff]
  %v2993 = vld [vmem:[%s7 + $0x38] sm:$0xff]
  %v2994 = vld [vmem:[%s7 + $0x40] sm:$0xff]
  %v2995 = vld [vmem:[%s7 + $0x48] sm:$0xff]
  %v2996 = vld [vmem:[%s7 + $0x50] sm:$0xff]
  %v2997 = vld [vmem:[%s7 + $0x58] sm:$0xff]
  %v2998 = vld [vmem:[%s7 + $0x60] sm:$0xff]
  %v2999 = vld [vmem:[%s7 + $0x68] sm:$0xff]
  %v3000 = vld [vmem:[%s7 + $0x70] sm:$0xff]
  %v3001 = vld [vmem:[%s7 + $0x78] sm:$0xff]
  %vm3002 = vcmp.gt.f32.partialorder %v48, 0.5
  %vm3003 = vcmp.gt.f32.partialorder %v49, 0.5
  %v3004 = vld [vmem:[#allocation2] sm:$0xff]
  %v3005 = vld [vmem:[#allocation2 + $0x8] sm:$0xff]
  %v3006 = vld [vmem:[#allocation2 + $0xf0] sm:$0xff]
  %v3007 = vld [vmem:[#allocation2 + $0xf8] sm:$0xff]
  %v3008 = vsel %vm3002, 1, 0
  %v3009 = vsel %vm3003, 1, 0
  %v3010 = vlaneseq
  %v3011 = vshrl.u32 %v3010, 7
  %v3012 = vsub.s32 5, %v3011
  %v3013 = vrot.slane %v3008, %v3012
  %v3014 = vlaneseq
  %v3015 = vshrl.u32 %v3014, 7
  %v3016 = vsub.s32 5, %v3015
  %v3017 = vrot.slane %v3009, %v3016
  %vm3018 = vcmp.eq.s32.totalorder %v3013, 1
  %vm3019 = vcmp.eq.s32.totalorder %v3017, 1
  %v3020 = vsel %vm3018, %v3004, %v3006
  %v3021 = vsel %vm3019, %v3005, %v3007
  %v3023 = vsel %vm593, 0.0, 0
  %3025 = vmatprep.subr.mxu0 0.0
  %3026 = vmatpush1.msra.mxu0 0.0
  %3027 = vmatprep.subr.mxu0 0.0
  %3028 = vmatpush1.msra.mxu0 0.0
  %3029 = vmatprep.subr.mxu0 0.0
  %3030 = vmatpush1.msra.mxu0 0.0
  %3031 = vmatprep.subr.mxu0 0.0
  %3032 = vmatpush1.msra.mxu0 0.0
  %3033 = vmatprep.subr.mxu0 0.0
  %3034 = vmatpush1.msra.mxu0 0.0
  %3035 = vmatprep.subr.mxu0 0.0
  %3036 = vmatpush1.msra.mxu0 0.0
  %3037 = vmatprep.subr.mxu0 0.0
  %3038 = vmatpush1.msra.mxu0 0.0
  %3039 = vmatprep.subr.mxu0 0.0
  %3040 = vmatpush1.msra.mxu0 0.0
  %3041 = vmatprep.subr.mxu0 %v3001
  %3042 = vmatpush1.msra.mxu0 %v3000
  %3043 = vmatprep.subr.mxu0 %v2999
  %3044 = vmatpush1.msra.mxu0 %v2998
  %3045 = vmatprep.subr.mxu0 %v2997
  %3046 = vmatpush1.msra.mxu0 %v2996
  %3047 = vmatprep.subr.mxu0 %v2995
  %3048 = vmatpush1.msra.mxu0 %v2994
  %3049 = vmatprep.subr.mxu0 %v2993
  %3050 = vmatpush1.msra.mxu0 %v2992
  %3051 = vmatprep.subr.mxu0 %v2991
  %3052 = vmatpush1.msra.mxu0 %v2990
  %3053 = vmatprep.subr.mxu0 %v2989
  %3054 = vmatpush1.msra.mxu0 %v2988
  %3055 = vmatprep.subr.mxu0 %v2987
  %3056 = vmatpush1.msra.mxu0 %v2986
  %3057 = vmatprep.subr.mxu0 0.0
  %3058 = vmatpush2.msra.mxu0 0.0
  %3059 = vmatprep.subr.mxu0 0.0
  %3060 = vmatpush2.msra.mxu0 0.0
  %3061 = vmatprep.subr.mxu0 0.0
  %3062 = vmatpush2.msra.mxu0 0.0
  %3063 = vmatprep.subr.mxu0 0.0
  %3064 = vmatpush2.msra.mxu0 0.0
  %3065 = vmatprep.subr.mxu0 0.0
  %3066 = vmatpush2.msra.mxu0 0.0
  %3067 = vmatprep.subr.mxu0 0.0
  %3068 = vmatpush2.msra.mxu0 0.0
  %3069 = vmatprep.subr.mxu0 0.0
  %3070 = vmatpush2.msra.mxu0 0.0
  %3071 = vmatprep.subr.mxu0 0.0
  %3072 = vmatpush2.msra.mxu0 0.0
  %3073 = vmatprep.subr.mxu0 0.0
  %3074 = vmatpush2.msra.mxu0 0.0
  %3075 = vmatprep.subr.mxu0 0.0
  %3076 = vmatpush2.msra.mxu0 0.0
  %3077 = vmatprep.subr.mxu0 0.0
  %3078 = vmatpush2.msra.mxu0 0.0
  %3079 = vmatprep.subr.mxu0 0.0
  %3080 = vmatpush2.msra.mxu0 0.0
  %3081 = vmatprep.subr.mxu0 0.0
  %3082 = vmatpush2.msra.mxu0 0.0
  %3083 = vmatprep.subr.mxu0 0.0
  %3084 = vmatpush2.msra.mxu0 0.0
  %3085 = vmatprep.subr.mxu0 0.0
  %3086 = vmatpush2.msra.mxu0 0.0
  %3087 = vmatprep.subr.mxu0 0.0
  %3088 = vmatpush2.msra.mxu0 0.0
  %3089 = vmatprep.mubr.f32.mxu0 0.0
  %3090 = vmatmul.mubr.f32.gmra.mxu0 %v3023
  %v3091 = vpop.f32.mrf.mxu0
  %v3092 = vadd.f32 0.0, %v3091
  %v3093 = vpop.f32.mrf.mxu0
  %v3094 = vadd.f32 0.0, %v3093
  %3095 = vdwg.mxu0
  %v3096 = vadd.f32 %v3020, %v3092
  %v3097 = vxor.u32 %v3096, 2147483648
  %v3098 = vmul.f32 %v3097, 1.442695
  %v3099 = vpow.pop %v3098
  %v3100 = vadd.f32 %v3099, 1.0
  %v3101 = vrcp.pop %v3100
  %v3102 = vmul.f32 1.0, %v3101
  %v3103 = vlaneseq
  %v3104 = vshrl.u32 %v3103, 7
  %v3105 = vsub.s32 2, %v3104
  %v3106 = vrot.slane %v49, %v3105
  %3108 = vrot.lane.b32.xlu0 %v1280, 32
  %v3109 = vpop.permute.xlu0 %3108
  %3110 = vrot.lane.b32.xlu0 %v3106, 32
  %v3111 = vpop.permute.xlu0 %3110
  %v3112 = vsel %vm551, %v3109, %v3111
  %v3114 = vadd.f32 %v3094, %v3112
  %v3115 = vmul.f32 %v3102, %v3114
  %v3116 = vadd.f32 %v3021, %v3115
  %v3117 = vtanh.pop %v3116
  %v3118 = vsub.f32 1.0, %v3102
  %3120 = vrot.lane.b32.xlu0 %v3117, 64
  %v3121 = vpop.permute.xlu0 %3120
  %v3123 = vmul.f32 %v3118, %v3121
  %v3124 = vmul.f32 %v3102, 0.0
  %v3125 = vadd.f32 %v3123, %v3124
  %3127 = vrot.lane.b32.xlu0 %v3125, 64
  %v3128 = vpop.permute.xlu0 %3127
  %3130 = vst.msk [vmem:[%s9] sm:$0xff] %vm593, %v3128
  %v3131 = vld [vmem:[#allocation2 + $0x10] sm:$0xff]
  %v3132 = vld [vmem:[#allocation2 + $0x18] sm:$0xff]
  %v3133 = vld [vmem:[#allocation2 + $0xe0] sm:$0xff]
  %v3134 = vld [vmem:[#allocation2 + $0xe8] sm:$0xff]
  %v3135 = vsel %vm3018, %v3131, %v3133
  %v3136 = vsel %vm3019, %v3132, %v3134
  %v3137 = vsel %vm593, %v3128, 0
  %3139 = vmatprep.subr.mxu0 0.0
  %3140 = vmatpush1.msra.mxu0 0.0
  %3141 = vmatprep.subr.mxu0 0.0
  %3142 = vmatpush1.msra.mxu0 0.0
  %3143 = vmatprep.subr.mxu0 0.0
  %3144 = vmatpush1.msra.mxu0 0.0
  %3145 = vmatprep.subr.mxu0 0.0
  %3146 = vmatpush1.msra.mxu0 0.0
  %3147 = vmatprep.subr.mxu0 0.0
  %3148 = vmatpush1.msra.mxu0 0.0
  %3149 = vmatprep.subr.mxu0 0.0
  %3150 = vmatpush1.msra.mxu0 0.0
  %3151 = vmatprep.subr.mxu0 0.0
  %3152 = vmatpush1.msra.mxu0 0.0
  %3153 = vmatprep.subr.mxu0 0.0
  %3154 = vmatpush1.msra.mxu0 0.0
  %3155 = vmatprep.subr.mxu0 %v3001
  %3156 = vmatpush1.msra.mxu0 %v3000
  %3157 = vmatprep.subr.mxu0 %v2999
  %3158 = vmatpush1.msra.mxu0 %v2998
  %3159 = vmatprep.subr.mxu0 %v2997
  %3160 = vmatpush1.msra.mxu0 %v2996
  %3161 = vmatprep.subr.mxu0 %v2995
  %3162 = vmatpush1.msra.mxu0 %v2994
  %3163 = vmatprep.subr.mxu0 %v2993
  %3164 = vmatpush1.msra.mxu0 %v2992
  %3165 = vmatprep.subr.mxu0 %v2991
  %3166 = vmatpush1.msra.mxu0 %v2990
  %3167 = vmatprep.subr.mxu0 %v2989
  %3168 = vmatpush1.msra.mxu0 %v2988
  %3169 = vmatprep.subr.mxu0 %v2987
  %3170 = vmatpush1.msra.mxu0 %v2986
  %3171 = vmatprep.subr.mxu0 0.0
  %3172 = vmatpush2.msra.mxu0 0.0
  %3173 = vmatprep.subr.mxu0 0.0
  %3174 = vmatpush2.msra.mxu0 0.0
  %3175 = vmatprep.subr.mxu0 0.0
  %3176 = vmatpush2.msra.mxu0 0.0
  %3177 = vmatprep.subr.mxu0 0.0
  %3178 = vmatpush2.msra.mxu0 0.0
  %3179 = vmatprep.subr.mxu0 0.0
  %3180 = vmatpush2.msra.mxu0 0.0
  %3181 = vmatprep.subr.mxu0 0.0
  %3182 = vmatpush2.msra.mxu0 0.0
  %3183 = vmatprep.subr.mxu0 0.0
  %3184 = vmatpush2.msra.mxu0 0.0
  %3185 = vmatprep.subr.mxu0 0.0
  %3186 = vmatpush2.msra.mxu0 0.0
  %3187 = vmatprep.subr.mxu0 0.0
  %3188 = vmatpush2.msra.mxu0 0.0
  %3189 = vmatprep.subr.mxu0 0.0
  %3190 = vmatpush2.msra.mxu0 0.0
  %3191 = vmatprep.subr.mxu0 0.0
  %3192 = vmatpush2.msra.mxu0 0.0
  %3193 = vmatprep.subr.mxu0 0.0
  %3194 = vmatpush2.msra.mxu0 0.0
  %3195 = vmatprep.subr.mxu0 0.0
  %3196 = vmatpush2.msra.mxu0 0.0
  %3197 = vmatprep.subr.mxu0 0.0
  %3198 = vmatpush2.msra.mxu0 0.0
  %3199 = vmatprep.subr.mxu0 0.0
  %3200 = vmatpush2.msra.mxu0 0.0
  %3201 = vmatprep.subr.mxu0 0.0
  %3202 = vmatpush2.msra.mxu0 0.0
  %3203 = vmatprep.mubr.f32.mxu0 0.0
  %3204 = vmatmul.mubr.f32.gmra.mxu0 %v3137
  %v3205 = vpop.f32.mrf.mxu0
  %v3206 = vadd.f32 0.0, %v3205
  %v3207 = vpop.f32.mrf.mxu0
  %v3208 = vadd.f32 0.0, %v3207
  %3209 = vdwg.mxu0
  %v3210 = vadd.f32 %v3135, %v3206
  %v3211 = vxor.u32 %v3210, 2147483648
  %v3212 = vmul.f32 %v3211, 1.442695
  %v3213 = vpow.pop %v3212
  %v3214 = vadd.f32 %v3213, 1.0
  %v3215 = vrcp.pop %v3214
  %v3216 = vmul.f32 1.0, %v3215
  %v3217 = vadd.f32 %v3208, %v3112
  %v3218 = vmul.f32 %v3216, %v3217
  %v3219 = vadd.f32 %v3136, %v3218
  %v3220 = vtanh.pop %v3219
  %v3221 = vsub.f32 1.0, %v3216
  %3223 = vrot.lane.b32.xlu0 %v3220, 64
  %v3224 = vpop.permute.xlu0 %3223
  %v3226 = vmul.f32 %v3221, %v3224
  %v3227 = vmul.f32 %v3216, %v3125
  %v3228 = vadd.f32 %v3226, %v3227
  %3230 = vrot.lane.b32.xlu0 %v3228, 64
  %v3231 = vpop.permute.xlu0 %3230
  %3233 = vst.msk [vmem:[%s9 + $0x8] sm:$0xff] %vm593, %v3231
  %v3234 = vld [vmem:[#allocation2 + $0x20] sm:$0xff]
  %v3235 = vld [vmem:[#allocation2 + $0x28] sm:$0xff]
  %v3236 = vld [vmem:[#allocation2 + $0xd0] sm:$0xff]
  %v3237 = vld [vmem:[#allocation2 + $0xd8] sm:$0xff]
  %v3238 = vsel %vm3018, %v3234, %v3236
  %v3239 = vsel %vm3019, %v3235, %v3237
  %v3240 = vsel %vm593, %v3231, 0
  %3242 = vmatprep.subr.mxu0 0.0
  %3243 = vmatpush1.msra.mxu0 0.0
  %3244 = vmatprep.subr.mxu0 0.0
  %3245 = vmatpush1.msra.mxu0 0.0
  %3246 = vmatprep.subr.mxu0 0.0
  %3247 = vmatpush1.msra.mxu0 0.0
  %3248 = vmatprep.subr.mxu0 0.0
  %3249 = vmatpush1.msra.mxu0 0.0
  %3250 = vmatprep.subr.mxu0 0.0
  %3251 = vmatpush1.msra.mxu0 0.0
  %3252 = vmatprep.subr.mxu0 0.0
  %3253 = vmatpush1.msra.mxu0 0.0
  %3254 = vmatprep.subr.mxu0 0.0
  %3255 = vmatpush1.msra.mxu0 0.0
  %3256 = vmatprep.subr.mxu0 0.0
  %3257 = vmatpush1.msra.mxu0 0.0
  %3258 = vmatprep.subr.mxu0 %v3001
  %3259 = vmatpush1.msra.mxu0 %v3000
  %3260 = vmatprep.subr.mxu0 %v2999
  %3261 = vmatpush1.msra.mxu0 %v2998
  %3262 = vmatprep.subr.mxu0 %v2997
  %3263 = vmatpush1.msra.mxu0 %v2996
  %3264 = vmatprep.subr.mxu0 %v2995
  %3265 = vmatpush1.msra.mxu0 %v2994
  %3266 = vmatprep.subr.mxu0 %v2993
  %3267 = vmatpush1.msra.mxu0 %v2992
  %3268 = vmatprep.subr.mxu0 %v2991
  %3269 = vmatpush1.msra.mxu0 %v2990
  %3270 = vmatprep.subr.mxu0 %v2989
  %3271 = vmatpush1.msra.mxu0 %v2988
  %3272 = vmatprep.subr.mxu0 %v2987
  %3273 = vmatpush1.msra.mxu0 %v2986
  %3274 = vmatprep.subr.mxu0 0.0
  %3275 = vmatpush2.msra.mxu0 0.0
  %3276 = vmatprep.subr.mxu0 0.0
  %3277 = vmatpush2.msra.mxu0 0.0
  %3278 = vmatprep.subr.mxu0 0.0
  %3279 = vmatpush2.msra.mxu0 0.0
  %3280 = vmatprep.subr.mxu0 0.0
  %3281 = vmatpush2.msra.mxu0 0.0
  %3282 = vmatprep.subr.mxu0 0.0
  %3283 = vmatpush2.msra.mxu0 0.0
  %3284 = vmatprep.subr.mxu0 0.0
  %3285 = vmatpush2.msra.mxu0 0.0
  %3286 = vmatprep.subr.mxu0 0.0
  %3287 = vmatpush2.msra.mxu0 0.0
  %3288 = vmatprep.subr.mxu0 0.0
  %3289 = vmatpush2.msra.mxu0 0.0
  %3290 = vmatprep.subr.mxu0 0.0
  %3291 = vmatpush2.msra.mxu0 0.0
  %3292 = vmatprep.subr.mxu0 0.0
  %3293 = vmatpush2.msra.mxu0 0.0
  %3294 = vmatprep.subr.mxu0 0.0
  %3295 = vmatpush2.msra.mxu0 0.0
  %3296 = vmatprep.subr.mxu0 0.0
  %3297 = vmatpush2.msra.mxu0 0.0
  %3298 = vmatprep.subr.mxu0 0.0
  %3299 = vmatpush2.msra.mxu0 0.0
  %3300 = vmatprep.subr.mxu0 0.0
  %3301 = vmatpush2.msra.mxu0 0.0
  %3302 = vmatprep.subr.mxu0 0.0
  %3303 = vmatpush2.msra.mxu0 0.0
  %3304 = vmatprep.subr.mxu0 0.0
  %3305 = vmatpush2.msra.mxu0 0.0
  %3306 = vmatprep.mubr.f32.mxu0 0.0
  %3307 = vmatmul.mubr.f32.gmra.mxu0 %v3240
  %v3308 = vpop.f32.mrf.mxu0
  %v3309 = vadd.f32 0.0, %v3308
  %v3310 = vpop.f32.mrf.mxu0
  %v3311 = vadd.f32 0.0, %v3310
  %3312 = vdwg.mxu0
  %v3313 = vadd.f32 %v3238, %v3309
  %v3314 = vxor.u32 %v3313, 2147483648
  %v3315 = vmul.f32 %v3314, 1.442695
  %v3316 = vpow.pop %v3315
  %v3317 = vadd.f32 %v3316, 1.0
  %v3318 = vrcp.pop %v3317
  %v3319 = vmul.f32 1.0, %v3318
  %v3320 = vadd.f32 %v3311, %v3112
  %v3321 = vmul.f32 %v3319, %v3320
  %v3322 = vadd.f32 %v3239, %v3321
  %v3323 = vtanh.pop %v3322
  %v3324 = vsub.f32 1.0, %v3319
  %3326 = vrot.lane.b32.xlu0 %v3323, 64
  %v3327 = vpop.permute.xlu0 %3326
  %v3329 = vmul.f32 %v3324, %v3327
  %v3330 = vmul.f32 %v3319, %v3228
  %v3331 = vadd.f32 %v3329, %v3330
  %3333 = vrot.lane.b32.xlu0 %v3331, 64
  %v3334 = vpop.permute.xlu0 %3333
  %3336 = vst.msk [vmem:[%s9 + $0x10] sm:$0xff] %vm593, %v3334
  %v3337 = vld [vmem:[#allocation2 + $0x30] sm:$0xff]
  %v3338 = vld [vmem:[#allocation2 + $0x38] sm:$0xff]
  %v3339 = vld [vmem:[#allocation2 + $0xc0] sm:$0xff]
  %v3340 = vld [vmem:[#allocation2 + $0xc8] sm:$0xff]
  %v3341 = vsel %vm3018, %v3337, %v3339
  %v3342 = vsel %vm3019, %v3338, %v3340
  %v3343 = vsel %vm593, %v3334, 0
  %3345 = vmatprep.subr.mxu0 0.0
  %3346 = vmatpush1.msra.mxu0 0.0
  %3347 = vmatprep.subr.mxu0 0.0
  %3348 = vmatpush1.msra.mxu0 0.0
  %3349 = vmatprep.subr.mxu0 0.0
  %3350 = vmatpush1.msra.mxu0 0.0
  %3351 = vmatprep.subr.mxu0 0.0
  %3352 = vmatpush1.msra.mxu0 0.0
  %3353 = vmatprep.subr.mxu0 0.0
  %3354 = vmatpush1.msra.mxu0 0.0
  %3355 = vmatprep.subr.mxu0 0.0
  %3356 = vmatpush1.msra.mxu0 0.0
  %3357 = vmatprep.subr.mxu0 0.0
  %3358 = vmatpush1.msra.mxu0 0.0
  %3359 = vmatprep.subr.mxu0 0.0
  %3360 = vmatpush1.msra.mxu0 0.0
  %3361 = vmatprep.subr.mxu0 %v3001
  %3362 = vmatpush1.msra.mxu0 %v3000
  %3363 = vmatprep.subr.mxu0 %v2999
  %3364 = vmatpush1.msra.mxu0 %v2998
  %3365 = vmatprep.subr.mxu0 %v2997
  %3366 = vmatpush1.msra.mxu0 %v2996
  %3367 = vmatprep.subr.mxu0 %v2995
  %3368 = vmatpush1.msra.mxu0 %v2994
  %3369 = vmatprep.subr.mxu0 %v2993
  %3370 = vmatpush1.msra.mxu0 %v2992
  %3371 = vmatprep.subr.mxu0 %v2991
  %3372 = vmatpush1.msra.mxu0 %v2990
  %3373 = vmatprep.subr.mxu0 %v2989
  %3374 = vmatpush1.msra.mxu0 %v2988
  %3375 = vmatprep.subr.mxu0 %v2987
  %3376 = vmatpush1.msra.mxu0 %v2986
  %3377 = vmatprep.subr.mxu0 0.0
  %3378 = vmatpush2.msra.mxu0 0.0
  %3379 = vmatprep.subr.mxu0 0.0
  %3380 = vmatpush2.msra.mxu0 0.0
  %3381 = vmatprep.subr.mxu0 0.0
  %3382 = vmatpush2.msra.mxu0 0.0
  %3383 = vmatprep.subr.mxu0 0.0
  %3384 = vmatpush2.msra.mxu0 0.0
  %3385 = vmatprep.subr.mxu0 0.0
  %3386 = vmatpush2.msra.mxu0 0.0
  %3387 = vmatprep.subr.mxu0 0.0
  %3388 = vmatpush2.msra.mxu0 0.0
  %3389 = vmatprep.subr.mxu0 0.0
  %3390 = vmatpush2.msra.mxu0 0.0
  %3391 = vmatprep.subr.mxu0 0.0
  %3392 = vmatpush2.msra.mxu0 0.0
  %3393 = vmatprep.subr.mxu0 0.0
  %3394 = vmatpush2.msra.mxu0 0.0
  %3395 = vmatprep.subr.mxu0 0.0
  %3396 = vmatpush2.msra.mxu0 0.0
  %3397 = vmatprep.subr.mxu0 0.0
  %3398 = vmatpush2.msra.mxu0 0.0
  %3399 = vmatprep.subr.mxu0 0.0
  %3400 = vmatpush2.msra.mxu0 0.0
  %3401 = vmatprep.subr.mxu0 0.0
  %3402 = vmatpush2.msra.mxu0 0.0
  %3403 = vmatprep.subr.mxu0 0.0
  %3404 = vmatpush2.msra.mxu0 0.0
  %3405 = vmatprep.subr.mxu0 0.0
  %3406 = vmatpush2.msra.mxu0 0.0
  %3407 = vmatprep.subr.mxu0 0.0
  %3408 = vmatpush2.msra.mxu0 0.0
  %3409 = vmatprep.mubr.f32.mxu0 0.0
  %3410 = vmatmul.mubr.f32.gmra.mxu0 %v3343
  %v3411 = vpop.f32.mrf.mxu0
  %v3412 = vadd.f32 0.0, %v3411
  %v3413 = vpop.f32.mrf.mxu0
  %v3414 = vadd.f32 0.0, %v3413
  %3415 = vdwg.mxu0
  %v3416 = vadd.f32 %v3341, %v3412
  %v3417 = vxor.u32 %v3416, 2147483648
  %v3418 = vmul.f32 %v3417, 1.442695
  %v3419 = vpow.pop %v3418
  %v3420 = vadd.f32 %v3419, 1.0
  %v3421 = vrcp.pop %v3420
  %v3422 = vmul.f32 1.0, %v3421
  %v3423 = vadd.f32 %v3414, %v3112
  %v3424 = vmul.f32 %v3422, %v3423
  %v3425 = vadd.f32 %v3342, %v3424
  %v3426 = vtanh.pop %v3425
  %v3427 = vsub.f32 1.0, %v3422
  %3429 = vrot.lane.b32.xlu0 %v3426, 64
  %v3430 = vpop.permute.xlu0 %3429
  %v3432 = vmul.f32 %v3427, %v3430
  %v3433 = vmul.f32 %v3422, %v3331
  %v3434 = vadd.f32 %v3432, %v3433
  %3436 = vrot.lane.b32.xlu0 %v3434, 64
  %v3437 = vpop.permute.xlu0 %3436
  %3439 = vst.msk [vmem:[%s9 + $0x18] sm:$0xff] %vm593, %v3437
  %v3440 = vld [vmem:[#allocation2 + $0x40] sm:$0xff]
  %v3441 = vld [vmem:[#allocation2 + $0x48] sm:$0xff]
  %v3442 = vld [vmem:[#allocation2 + $0xb0] sm:$0xff]
  %v3443 = vld [vmem:[#allocation2 + $0xb8] sm:$0xff]
  %v3444 = vsel %vm3018, %v3440, %v3442
  %v3445 = vsel %vm3019, %v3441, %v3443
  %v3446 = vsel %vm593, %v3437, 0
  %3448 = vmatprep.subr.mxu0 0.0
  %3449 = vmatpush1.msra.mxu0 0.0
  %3450 = vmatprep.subr.mxu0 0.0
  %3451 = vmatpush1.msra.mxu0 0.0
  %3452 = vmatprep.subr.mxu0 0.0
  %3453 = vmatpush1.msra.mxu0 0.0
  %3454 = vmatprep.subr.mxu0 0.0
  %3455 = vmatpush1.msra.mxu0 0.0
  %3456 = vmatprep.subr.mxu0 0.0
  %3457 = vmatpush1.msra.mxu0 0.0
  %3458 = vmatprep.subr.mxu0 0.0
  %3459 = vmatpush1.msra.mxu0 0.0
  %3460 = vmatprep.subr.mxu0 0.0
  %3461 = vmatpush1.msra.mxu0 0.0
  %3462 = vmatprep.subr.mxu0 0.0
  %3463 = vmatpush1.msra.mxu0 0.0
  %3464 = vmatprep.subr.mxu0 %v3001
  %3465 = vmatpush1.msra.mxu0 %v3000
  %3466 = vmatprep.subr.mxu0 %v2999
  %3467 = vmatpush1.msra.mxu0 %v2998
  %3468 = vmatprep.subr.mxu0 %v2997
  %3469 = vmatpush1.msra.mxu0 %v2996
  %3470 = vmatprep.subr.mxu0 %v2995
  %3471 = vmatpush1.msra.mxu0 %v2994
  %3472 = vmatprep.subr.mxu0 %v2993
  %3473 = vmatpush1.msra.mxu0 %v2992
  %3474 = vmatprep.subr.mxu0 %v2991
  %3475 = vmatpush1.msra.mxu0 %v2990
  %3476 = vmatprep.subr.mxu0 %v2989
  %3477 = vmatpush1.msra.mxu0 %v2988
  %3478 = vmatprep.subr.mxu0 %v2987
  %3479 = vmatpush1.msra.mxu0 %v2986
  %3480 = vmatprep.subr.mxu0 0.0
  %3481 = vmatpush2.msra.mxu0 0.0
  %3482 = vmatprep.subr.mxu0 0.0
  %3483 = vmatpush2.msra.mxu0 0.0
  %3484 = vmatprep.subr.mxu0 0.0
  %3485 = vmatpush2.msra.mxu0 0.0
  %3486 = vmatprep.subr.mxu0 0.0
  %3487 = vmatpush2.msra.mxu0 0.0
  %3488 = vmatprep.subr.mxu0 0.0
  %3489 = vmatpush2.msra.mxu0 0.0
  %3490 = vmatprep.subr.mxu0 0.0
  %3491 = vmatpush2.msra.mxu0 0.0
  %3492 = vmatprep.subr.mxu0 0.0
  %3493 = vmatpush2.msra.mxu0 0.0
  %3494 = vmatprep.subr.mxu0 0.0
  %3495 = vmatpush2.msra.mxu0 0.0
  %3496 = vmatprep.subr.mxu0 0.0
  %3497 = vmatpush2.msra.mxu0 0.0
  %3498 = vmatprep.subr.mxu0 0.0
  %3499 = vmatpush2.msra.mxu0 0.0
  %3500 = vmatprep.subr.mxu0 0.0
  %3501 = vmatpush2.msra.mxu0 0.0
  %3502 = vmatprep.subr.mxu0 0.0
  %3503 = vmatpush2.msra.mxu0 0.0
  %3504 = vmatprep.subr.mxu0 0.0
  %3505 = vmatpush2.msra.mxu0 0.0
  %3506 = vmatprep.subr.mxu0 0.0
  %3507 = vmatpush2.msra.mxu0 0.0
  %3508 = vmatprep.subr.mxu0 0.0
  %3509 = vmatpush2.msra.mxu0 0.0
  %3510 = vmatprep.subr.mxu0 0.0
  %3511 = vmatpush2.msra.mxu0 0.0
  %3512 = vmatprep.mubr.f32.mxu0 0.0
  %3513 = vmatmul.mubr.f32.gmra.mxu0 %v3446
  %v3514 = vpop.f32.mrf.mxu0
  %v3515 = vadd.f32 0.0, %v3514
  %v3516 = vpop.f32.mrf.mxu0
  %v3517 = vadd.f32 0.0, %v3516
  %3518 = vdwg.mxu0
  %v3519 = vadd.f32 %v3444, %v3515
  %v3520 = vxor.u32 %v3519, 2147483648
  %v3521 = vmul.f32 %v3520, 1.442695
  %v3522 = vpow.pop %v3521
  %v3523 = vadd.f32 %v3522, 1.0
  %v3524 = vrcp.pop %v3523
  %v3525 = vmul.f32 1.0, %v3524
  %v3526 = vadd.f32 %v3517, %v3112
  %v3527 = vmul.f32 %v3525, %v3526
  %v3528 = vadd.f32 %v3445, %v3527
  %v3529 = vtanh.pop %v3528
  %v3530 = vsub.f32 1.0, %v3525
  %3532 = vrot.lane.b32.xlu0 %v3529, 64
  %v3533 = vpop.permute.xlu0 %3532
  %v3535 = vmul.f32 %v3530, %v3533
  %v3536 = vmul.f32 %v3525, %v3434
  %v3537 = vadd.f32 %v3535, %v3536
  %3539 = vrot.lane.b32.xlu0 %v3537, 64
  %v3540 = vpop.permute.xlu0 %3539
  %3542 = vst.msk [vmem:[%s9 + $0x20] sm:$0xff] %vm593, %v3540
  %v3543 = vld [vmem:[#allocation2 + $0x50] sm:$0xff]
  %v3544 = vld [vmem:[#allocation2 + $0x58] sm:$0xff]
  %v3545 = vld [vmem:[#allocation2 + $0xa0] sm:$0xff]
  %v3546 = vld [vmem:[#allocation2 + $0xa8] sm:$0xff]
  %v3547 = vsel %vm3018, %v3543, %v3545
  %v3548 = vsel %vm3019, %v3544, %v3546
  %v3549 = vsel %vm593, %v3540, 0
  %3551 = vmatprep.subr.mxu0 0.0
  %3552 = vmatpush1.msra.mxu0 0.0
  %3553 = vmatprep.subr.mxu0 0.0
  %3554 = vmatpush1.msra.mxu0 0.0
  %3555 = vmatprep.subr.mxu0 0.0
  %3556 = vmatpush1.msra.mxu0 0.0
  %3557 = vmatprep.subr.mxu0 0.0
  %3558 = vmatpush1.msra.mxu0 0.0
  %3559 = vmatprep.subr.mxu0 0.0
  %3560 = vmatpush1.msra.mxu0 0.0
  %3561 = vmatprep.subr.mxu0 0.0
  %3562 = vmatpush1.msra.mxu0 0.0
  %3563 = vmatprep.subr.mxu0 0.0
  %3564 = vmatpush1.msra.mxu0 0.0
  %3565 = vmatprep.subr.mxu0 0.0
  %3566 = vmatpush1.msra.mxu0 0.0
  %3567 = vmatprep.subr.mxu0 %v3001
  %3568 = vmatpush1.msra.mxu0 %v3000
  %3569 = vmatprep.subr.mxu0 %v2999
  %3570 = vmatpush1.msra.mxu0 %v2998
  %3571 = vmatprep.subr.mxu0 %v2997
  %3572 = vmatpush1.msra.mxu0 %v2996
  %3573 = vmatprep.subr.mxu0 %v2995
  %3574 = vmatpush1.msra.mxu0 %v2994
  %3575 = vmatprep.subr.mxu0 %v2993
  %3576 = vmatpush1.msra.mxu0 %v2992
  %3577 = vmatprep.subr.mxu0 %v2991
  %3578 = vmatpush1.msra.mxu0 %v2990
  %3579 = vmatprep.subr.mxu0 %v2989
  %3580 = vmatpush1.msra.mxu0 %v2988
  %3581 = vmatprep.subr.mxu0 %v2987
  %3582 = vmatpush1.msra.mxu0 %v2986
  %3583 = vmatprep.subr.mxu0 0.0
  %3584 = vmatpush2.msra.mxu0 0.0
  %3585 = vmatprep.subr.mxu0 0.0
  %3586 = vmatpush2.msra.mxu0 0.0
  %3587 = vmatprep.subr.mxu0 0.0
  %3588 = vmatpush2.msra.mxu0 0.0
  %3589 = vmatprep.subr.mxu0 0.0
  %3590 = vmatpush2.msra.mxu0 0.0
  %3591 = vmatprep.subr.mxu0 0.0
  %3592 = vmatpush2.msra.mxu0 0.0
  %3593 = vmatprep.subr.mxu0 0.0
  %3594 = vmatpush2.msra.mxu0 0.0
  %3595 = vmatprep.subr.mxu0 0.0
  %3596 = vmatpush2.msra.mxu0 0.0
  %3597 = vmatprep.subr.mxu0 0.0
  %3598 = vmatpush2.msra.mxu0 0.0
  %3599 = vmatprep.subr.mxu0 0.0
  %3600 = vmatpush2.msra.mxu0 0.0
  %3601 = vmatprep.subr.mxu0 0.0
  %3602 = vmatpush2.msra.mxu0 0.0
  %3603 = vmatprep.subr.mxu0 0.0
  %3604 = vmatpush2.msra.mxu0 0.0
  %3605 = vmatprep.subr.mxu0 0.0
  %3606 = vmatpush2.msra.mxu0 0.0
  %3607 = vmatprep.subr.mxu0 0.0
  %3608 = vmatpush2.msra.mxu0 0.0
  %3609 = vmatprep.subr.mxu0 0.0
  %3610 = vmatpush2.msra.mxu0 0.0
  %3611 = vmatprep.subr.mxu0 0.0
  %3612 = vmatpush2.msra.mxu0 0.0
  %3613 = vmatprep.subr.mxu0 0.0
  %3614 = vmatpush2.msra.mxu0 0.0
  %3615 = vmatprep.mubr.f32.mxu0 0.0
  %3616 = vmatmul.mubr.f32.gmra.mxu0 %v3549
  %v3617 = vpop.f32.mrf.mxu0
  %v3618 = vadd.f32 0.0, %v3617
  %v3619 = vpop.f32.mrf.mxu0
  %v3620 = vadd.f32 0.0, %v3619
  %3621 = vdwg.mxu0
  %v3622 = vadd.f32 %v3547, %v3618
  %v3623 = vxor.u32 %v3622, 2147483648
  %v3624 = vmul.f32 %v3623, 1.442695
  %v3625 = vpow.pop %v3624
  %v3626 = vadd.f32 %v3625, 1.0
  %v3627 = vrcp.pop %v3626
  %v3628 = vmul.f32 1.0, %v3627
  %v3629 = vadd.f32 %v3620, %v3112
  %v3630 = vmul.f32 %v3628, %v3629
  %v3631 = vadd.f32 %v3548, %v3630
  %v3632 = vtanh.pop %v3631
  %v3633 = vsub.f32 1.0, %v3628
  %3635 = vrot.lane.b32.xlu0 %v3632, 64
  %v3636 = vpop.permute.xlu0 %3635
  %v3638 = vmul.f32 %v3633, %v3636
  %v3639 = vmul.f32 %v3628, %v3537
  %v3640 = vadd.f32 %v3638, %v3639
  %3642 = vrot.lane.b32.xlu0 %v3640, 64
  %v3643 = vpop.permute.xlu0 %3642
  %3645 = vst.msk [vmem:[%s9 + $0x28] sm:$0xff] %vm593, %v3643
  %v3646 = vld [vmem:[#allocation2 + $0x60] sm:$0xff]
  %v3647 = vld [vmem:[#allocation2 + $0x68] sm:$0xff]
  %v3648 = vld [vmem:[#allocation2 + $0x90] sm:$0xff]
  %v3649 = vld [vmem:[#allocation2 + $0x98] sm:$0xff]
  %v3650 = vsel %vm3018, %v3646, %v3648
  %v3651 = vsel %vm3019, %v3647, %v3649
  %v3652 = vsel %vm593, %v3643, 0
  %3654 = vmatprep.subr.mxu0 0.0
  %3655 = vmatpush1.msra.mxu0 0.0
  %3656 = vmatprep.subr.mxu0 0.0
  %3657 = vmatpush1.msra.mxu0 0.0
  %3658 = vmatprep.subr.mxu0 0.0
  %3659 = vmatpush1.msra.mxu0 0.0
  %3660 = vmatprep.subr.mxu0 0.0
  %3661 = vmatpush1.msra.mxu0 0.0
  %3662 = vmatprep.subr.mxu0 0.0
  %3663 = vmatpush1.msra.mxu0 0.0
  %3664 = vmatprep.subr.mxu0 0.0
  %3665 = vmatpush1.msra.mxu0 0.0
  %3666 = vmatprep.subr.mxu0 0.0
  %3667 = vmatpush1.msra.mxu0 0.0
  %3668 = vmatprep.subr.mxu0 0.0
  %3669 = vmatpush1.msra.mxu0 0.0
  %3670 = vmatprep.subr.mxu0 %v3001
  %3671 = vmatpush1.msra.mxu0 %v3000
  %3672 = vmatprep.subr.mxu0 %v2999
  %3673 = vmatpush1.msra.mxu0 %v2998
  %3674 = vmatprep.subr.mxu0 %v2997
  %3675 = vmatpush1.msra.mxu0 %v2996
  %3676 = vmatprep.subr.mxu0 %v2995
  %3677 = vmatpush1.msra.mxu0 %v2994
  %3678 = vmatprep.subr.mxu0 %v2993
  %3679 = vmatpush1.msra.mxu0 %v2992
  %3680 = vmatprep.subr.mxu0 %v2991
  %3681 = vmatpush1.msra.mxu0 %v2990
  %3682 = vmatprep.subr.mxu0 %v2989
  %3683 = vmatpush1.msra.mxu0 %v2988
  %3684 = vmatprep.subr.mxu0 %v2987
  %3685 = vmatpush1.msra.mxu0 %v2986
  %3686 = vmatprep.subr.mxu0 0.0
  %3687 = vmatpush2.msra.mxu0 0.0
  %3688 = vmatprep.subr.mxu0 0.0
  %3689 = vmatpush2.msra.mxu0 0.0
  %3690 = vmatprep.subr.mxu0 0.0
  %3691 = vmatpush2.msra.mxu0 0.0
  %3692 = vmatprep.subr.mxu0 0.0
  %3693 = vmatpush2.msra.mxu0 0.0
  %3694 = vmatprep.subr.mxu0 0.0
  %3695 = vmatpush2.msra.mxu0 0.0
  %3696 = vmatprep.subr.mxu0 0.0
  %3697 = vmatpush2.msra.mxu0 0.0
  %3698 = vmatprep.subr.mxu0 0.0
  %3699 = vmatpush2.msra.mxu0 0.0
  %3700 = vmatprep.subr.mxu0 0.0
  %3701 = vmatpush2.msra.mxu0 0.0
  %3702 = vmatprep.subr.mxu0 0.0
  %3703 = vmatpush2.msra.mxu0 0.0
  %3704 = vmatprep.subr.mxu0 0.0
  %3705 = vmatpush2.msra.mxu0 0.0
  %3706 = vmatprep.subr.mxu0 0.0
  %3707 = vmatpush2.msra.mxu0 0.0
  %3708 = vmatprep.subr.mxu0 0.0
  %3709 = vmatpush2.msra.mxu0 0.0
  %3710 = vmatprep.subr.mxu0 0.0
  %3711 = vmatpush2.msra.mxu0 0.0
  %3712 = vmatprep.subr.mxu0 0.0
  %3713 = vmatpush2.msra.mxu0 0.0
  %3714 = vmatprep.subr.mxu0 0.0
  %3715 = vmatpush2.msra.mxu0 0.0
  %3716 = vmatprep.subr.mxu0 0.0
  %3717 = vmatpush2.msra.mxu0 0.0
  %3718 = vmatprep.mubr.f32.mxu0 0.0
  %3719 = vmatmul.mubr.f32.gmra.mxu0 %v3652
  %v3720 = vpop.f32.mrf.mxu0
  %v3721 = vadd.f32 0.0, %v3720
  %v3722 = vpop.f32.mrf.mxu0
  %v3723 = vadd.f32 0.0, %v3722
  %3724 = vdwg.mxu0
  %v3725 = vadd.f32 %v3650, %v3721
  %v3726 = vxor.u32 %v3725, 2147483648
  %v3727 = vmul.f32 %v3726, 1.442695
  %v3728 = vpow.pop %v3727
  %v3729 = vadd.f32 %v3728, 1.0
  %v3730 = vrcp.pop %v3729
  %v3731 = vmul.f32 1.0, %v3730
  %v3732 = vadd.f32 %v3723, %v3112
  %v3733 = vmul.f32 %v3731, %v3732
  %v3734 = vadd.f32 %v3651, %v3733
  %v3735 = vtanh.pop %v3734
  %v3736 = vsub.f32 1.0, %v3731
  %3738 = vrot.lane.b32.xlu0 %v3735, 64
  %v3739 = vpop.permute.xlu0 %3738
  %v3741 = vmul.f32 %v3736, %v3739
  %v3742 = vmul.f32 %v3731, %v3640
  %v3743 = vadd.f32 %v3741, %v3742
  %3745 = vrot.lane.b32.xlu0 %v3743, 64
  %v3746 = vpop.permute.xlu0 %3745
  %3748 = vst.msk [vmem:[%s9 + $0x30] sm:$0xff] %vm593, %v3746
  %v3749 = vld [vmem:[#allocation2 + $0x70] sm:$0xff]
  %v3750 = vld [vmem:[#allocation2 + $0x78] sm:$0xff]
  %v3751 = vld [vmem:[#allocation2 + $0x80] sm:$0xff]
  %v3752 = vld [vmem:[#allocation2 + $0x88] sm:$0xff]
  %v3753 = vsel %vm3018, %v3749, %v3751
  %v3754 = vsel %vm3019, %v3750, %v3752
  %v3755 = vsel %vm593, %v3746, 0
  %3757 = vmatprep.subr.mxu0 0.0
  %3758 = vmatpush1.msra.mxu0 0.0
  %3759 = vmatprep.subr.mxu0 0.0
  %3760 = vmatpush1.msra.mxu0 0.0
  %3761 = vmatprep.subr.mxu0 0.0
  %3762 = vmatpush1.msra.mxu0 0.0
  %3763 = vmatprep.subr.mxu0 0.0
  %3764 = vmatpush1.msra.mxu0 0.0
  %3765 = vmatprep.subr.mxu0 0.0
  %3766 = vmatpush1.msra.mxu0 0.0
  %3767 = vmatprep.subr.mxu0 0.0
  %3768 = vmatpush1.msra.mxu0 0.0
  %3769 = vmatprep.subr.mxu0 0.0
  %3770 = vmatpush1.msra.mxu0 0.0
  %3771 = vmatprep.subr.mxu0 0.0
  %3772 = vmatpush1.msra.mxu0 0.0
  %3773 = vmatprep.subr.mxu0 %v3001
  %3774 = vmatpush1.msra.mxu0 %v3000
  %3775 = vmatprep.subr.mxu0 %v2999
  %3776 = vmatpush1.msra.mxu0 %v2998
  %3777 = vmatprep.subr.mxu0 %v2997
  %3778 = vmatpush1.msra.mxu0 %v2996
  %3779 = vmatprep.subr.mxu0 %v2995
  %3780 = vmatpush1.msra.mxu0 %v2994
  %3781 = vmatprep.subr.mxu0 %v2993
  %3782 = vmatpush1.msra.mxu0 %v2992
  %3783 = vmatprep.subr.mxu0 %v2991
  %3784 = vmatpush1.msra.mxu0 %v2990
  %3785 = vmatprep.subr.mxu0 %v2989
  %3786 = vmatpush1.msra.mxu0 %v2988
  %3787 = vmatprep.subr.mxu0 %v2987
  %3788 = vmatpush1.msra.mxu0 %v2986
  %3789 = vmatprep.subr.mxu0 0.0
  %3790 = vmatpush2.msra.mxu0 0.0
  %3791 = vmatprep.subr.mxu0 0.0
  %3792 = vmatpush2.msra.mxu0 0.0
  %3793 = vmatprep.subr.mxu0 0.0
  %3794 = vmatpush2.msra.mxu0 0.0
  %3795 = vmatprep.subr.mxu0 0.0
  %3796 = vmatpush2.msra.mxu0 0.0
  %3797 = vmatprep.subr.mxu0 0.0
  %3798 = vmatpush2.msra.mxu0 0.0
  %3799 = vmatprep.subr.mxu0 0.0
  %3800 = vmatpush2.msra.mxu0 0.0
  %3801 = vmatprep.subr.mxu0 0.0
  %3802 = vmatpush2.msra.mxu0 0.0
  %3803 = vmatprep.subr.mxu0 0.0
  %3804 = vmatpush2.msra.mxu0 0.0
  %3805 = vmatprep.subr.mxu0 0.0
  %3806 = vmatpush2.msra.mxu0 0.0
  %3807 = vmatprep.subr.mxu0 0.0
  %3808 = vmatpush2.msra.mxu0 0.0
  %3809 = vmatprep.subr.mxu0 0.0
  %3810 = vmatpush2.msra.mxu0 0.0
  %3811 = vmatprep.subr.mxu0 0.0
  %3812 = vmatpush2.msra.mxu0 0.0
  %3813 = vmatprep.subr.mxu0 0.0
  %3814 = vmatpush2.msra.mxu0 0.0
  %3815 = vmatprep.subr.mxu0 0.0
  %3816 = vmatpush2.msra.mxu0 0.0
  %3817 = vmatprep.subr.mxu0 0.0
  %3818 = vmatpush2.msra.mxu0 0.0
  %3819 = vmatprep.subr.mxu0 0.0
  %3820 = vmatpush2.msra.mxu0 0.0
  %3821 = vmatprep.mubr.f32.mxu0 0.0
  %3822 = vmatmul.mubr.f32.gmra.mxu0 %v3755
  %v3823 = vpop.f32.mrf.mxu0
  %v3824 = vadd.f32 0.0, %v3823
  %v3825 = vpop.f32.mrf.mxu0
  %v3826 = vadd.f32 0.0, %v3825
  %3827 = vdwg.mxu0
  %v3828 = vadd.f32 %v3753, %v3824
  %v3829 = vxor.u32 %v3828, 2147483648
  %v3830 = vmul.f32 %v3829, 1.442695
  %v3831 = vpow.pop %v3830
  %v3832 = vadd.f32 %v3831, 1.0
  %v3833 = vrcp.pop %v3832
  %v3834 = vmul.f32 1.0, %v3833
  %v3835 = vadd.f32 %v3826, %v3112
  %v3836 = vmul.f32 %v3834, %v3835
  %v3837 = vadd.f32 %v3754, %v3836
  %v3838 = vtanh.pop %v3837
  %v3839 = vsub.f32 1.0, %v3834
  %3841 = vrot.lane.b32.xlu0 %v3838, 64
  %v3842 = vpop.permute.xlu0 %3841
  %v3844 = vmul.f32 %v3839, %v3842
  %v3845 = vmul.f32 %v3834, %v3743
  %v3846 = vadd.f32 %v3844, %v3845
  %3848 = vrot.lane.b32.xlu0 %v3846, 64
  %v3849 = vpop.permute.xlu0 %3848
  %3851 = vst.msk [vmem:[%s9 + $0x38] sm:$0xff] %vm593, %v3849
  %v3852 = vld [vmem:[#allocation2 + $0x80] sm:$0xff]
  %v3853 = vld [vmem:[#allocation2 + $0x88] sm:$0xff]
  %v3854 = vld [vmem:[#allocation2 + $0x70] sm:$0xff]
  %v3855 = vld [vmem:[#allocation2 + $0x78] sm:$0xff]
  %v3856 = vsel %vm3018, %v3852, %v3854
  %v3857 = vsel %vm3019, %v3853, %v3855
  %v3858 = vsel %vm593, %v3849, 0
  %3860 = vmatprep.subr.mxu0 0.0
  %3861 = vmatpush1.msra.mxu0 0.0
  %3862 = vmatprep.subr.mxu0 0.0
  %3863 = vmatpush1.msra.mxu0 0.0
  %3864 = vmatprep.subr.mxu0 0.0
  %3865 = vmatpush1.msra.mxu0 0.0
  %3866 = vmatprep.subr.mxu0 0.0
  %3867 = vmatpush1.msra.mxu0 0.0
  %3868 = vmatprep.subr.mxu0 0.0
  %3869 = vmatpush1.msra.mxu0 0.0
  %3870 = vmatprep.subr.mxu0 0.0
  %3871 = vmatpush1.msra.mxu0 0.0
  %3872 = vmatprep.subr.mxu0 0.0
  %3873 = vmatpush1.msra.mxu0 0.0
  %3874 = vmatprep.subr.mxu0 0.0
  %3875 = vmatpush1.msra.mxu0 0.0
  %3876 = vmatprep.subr.mxu0 %v3001
  %3877 = vmatpush1.msra.mxu0 %v3000
  %3878 = vmatprep.subr.mxu0 %v2999
  %3879 = vmatpush1.msra.mxu0 %v2998
  %3880 = vmatprep.subr.mxu0 %v2997
  %3881 = vmatpush1.msra.mxu0 %v2996
  %3882 = vmatprep.subr.mxu0 %v2995
  %3883 = vmatpush1.msra.mxu0 %v2994
  %3884 = vmatprep.subr.mxu0 %v2993
  %3885 = vmatpush1.msra.mxu0 %v2992
  %3886 = vmatprep.subr.mxu0 %v2991
  %3887 = vmatpush1.msra.mxu0 %v2990
  %3888 = vmatprep.subr.mxu0 %v2989
  %3889 = vmatpush1.msra.mxu0 %v2988
  %3890 = vmatprep.subr.mxu0 %v2987
  %3891 = vmatpush1.msra.mxu0 %v2986
  %3892 = vmatprep.subr.mxu0 0.0
  %3893 = vmatpush2.msra.mxu0 0.0
  %3894 = vmatprep.subr.mxu0 0.0
  %3895 = vmatpush2.msra.mxu0 0.0
  %3896 = vmatprep.subr.mxu0 0.0
  %3897 = vmatpush2.msra.mxu0 0.0
  %3898 = vmatprep.subr.mxu0 0.0
  %3899 = vmatpush2.msra.mxu0 0.0
  %3900 = vmatprep.subr.mxu0 0.0
  %3901 = vmatpush2.msra.mxu0 0.0
  %3902 = vmatprep.subr.mxu0 0.0
  %3903 = vmatpush2.msra.mxu0 0.0
  %3904 = vmatprep.subr.mxu0 0.0
  %3905 = vmatpush2.msra.mxu0 0.0
  %3906 = vmatprep.subr.mxu0 0.0
  %3907 = vmatpush2.msra.mxu0 0.0
  %3908 = vmatprep.subr.mxu0 0.0
  %3909 = vmatpush2.msra.mxu0 0.0
  %3910 = vmatprep.subr.mxu0 0.0
  %3911 = vmatpush2.msra.mxu0 0.0
  %3912 = vmatprep.subr.mxu0 0.0
  %3913 = vmatpush2.msra.mxu0 0.0
  %3914 = vmatprep.subr.mxu0 0.0
  %3915 = vmatpush2.msra.mxu0 0.0
  %3916 = vmatprep.subr.mxu0 0.0
  %3917 = vmatpush2.msra.mxu0 0.0
  %3918 = vmatprep.subr.mxu0 0.0
  %3919 = vmatpush2.msra.mxu0 0.0
  %3920 = vmatprep.subr.mxu0 0.0
  %3921 = vmatpush2.msra.mxu0 0.0
  %3922 = vmatprep.subr.mxu0 0.0
  %3923 = vmatpush2.msra.mxu0 0.0
  %3924 = vmatprep.mubr.f32.mxu0 0.0
  %3925 = vmatmul.mubr.f32.gmra.mxu0 %v3858
  %v3926 = vpop.f32.mrf.mxu0
  %v3927 = vadd.f32 0.0, %v3926
  %v3928 = vpop.f32.mrf.mxu0
  %v3929 = vadd.f32 0.0, %v3928
  %3930 = vdwg.mxu0
  %v3931 = vadd.f32 %v3856, %v3927
  %v3932 = vxor.u32 %v3931, 2147483648
  %v3933 = vmul.f32 %v3932, 1.442695
  %v3934 = vpow.pop %v3933
  %v3935 = vadd.f32 %v3934, 1.0
  %v3936 = vrcp.pop %v3935
  %v3937 = vmul.f32 1.0, %v3936
  %v3938 = vadd.f32 %v3929, %v3112
  %v3939 = vmul.f32 %v3937, %v3938
  %v3940 = vadd.f32 %v3857, %v3939
  %v3941 = vtanh.pop %v3940
  %v3942 = vsub.f32 1.0, %v3937
  %3944 = vrot.lane.b32.xlu0 %v3941, 64
  %v3945 = vpop.permute.xlu0 %3944
  %v3947 = vmul.f32 %v3942, %v3945
  %v3948 = vmul.f32 %v3937, %v3846
  %v3949 = vadd.f32 %v3947, %v3948
  %3951 = vrot.lane.b32.xlu0 %v3949, 64
  %v3952 = vpop.permute.xlu0 %3951
  %3954 = vst.msk [vmem:[%s9 + $0x40] sm:$0xff] %vm593, %v3952
  %v3955 = vld [vmem:[#allocation2 + $0x90] sm:$0xff]
  %v3956 = vld [vmem:[#allocation2 + $0x98] sm:$0xff]
  %v3957 = vld [vmem:[#allocation2 + $0x60] sm:$0xff]
  %v3958 = vld [vmem:[#allocation2 + $0x68] sm:$0xff]
  %v3959 = vsel %vm3018, %v3955, %v3957
  %v3960 = vsel %vm3019, %v3956, %v3958
  %v3961 = vsel %vm593, %v3952, 0
  %3963 = vmatprep.subr.mxu0 0.0
  %3964 = vmatpush1.msra.mxu0 0.0
  %3965 = vmatprep.subr.mxu0 0.0
  %3966 = vmatpush1.msra.mxu0 0.0
  %3967 = vmatprep.subr.mxu0 0.0
  %3968 = vmatpush1.msra.mxu0 0.0
  %3969 = vmatprep.subr.mxu0 0.0
  %3970 = vmatpush1.msra.mxu0 0.0
  %3971 = vmatprep.subr.mxu0 0.0
  %3972 = vmatpush1.msra.mxu0 0.0
  %3973 = vmatprep.subr.mxu0 0.0
  %3974 = vmatpush1.msra.mxu0 0.0
  %3975 = vmatprep.subr.mxu0 0.0
  %3976 = vmatpush1.msra.mxu0 0.0
  %3977 = vmatprep.subr.mxu0 0.0
  %3978 = vmatpush1.msra.mxu0 0.0
  %3979 = vmatprep.subr.mxu0 %v3001
  %3980 = vmatpush1.msra.mxu0 %v3000
  %3981 = vmatprep.subr.mxu0 %v2999
  %3982 = vmatpush1.msra.mxu0 %v2998
  %3983 = vmatprep.subr.mxu0 %v2997
  %3984 = vmatpush1.msra.mxu0 %v2996
  %3985 = vmatprep.subr.mxu0 %v2995
  %3986 = vmatpush1.msra.mxu0 %v2994
  %3987 = vmatprep.subr.mxu0 %v2993
  %3988 = vmatpush1.msra.mxu0 %v2992
  %3989 = vmatprep.subr.mxu0 %v2991
  %3990 = vmatpush1.msra.mxu0 %v2990
  %3991 = vmatprep.subr.mxu0 %v2989
  %3992 = vmatpush1.msra.mxu0 %v2988
  %3993 = vmatprep.subr.mxu0 %v2987
  %3994 = vmatpush1.msra.mxu0 %v2986
  %3995 = vmatprep.subr.mxu0 0.0
  %3996 = vmatpush2.msra.mxu0 0.0
  %3997 = vmatprep.subr.mxu0 0.0
  %3998 = vmatpush2.msra.mxu0 0.0
  %3999 = vmatprep.subr.mxu0 0.0
  %4000 = vmatpush2.msra.mxu0 0.0
  %4001 = vmatprep.subr.mxu0 0.0
  %4002 = vmatpush2.msra.mxu0 0.0
  %4003 = vmatprep.subr.mxu0 0.0
  %4004 = vmatpush2.msra.mxu0 0.0
  %4005 = vmatprep.subr.mxu0 0.0
  %4006 = vmatpush2.msra.mxu0 0.0
  %4007 = vmatprep.subr.mxu0 0.0
  %4008 = vmatpush2.msra.mxu0 0.0
  %4009 = vmatprep.subr.mxu0 0.0
  %4010 = vmatpush2.msra.mxu0 0.0
  %4011 = vmatprep.subr.mxu0 0.0
  %4012 = vmatpush2.msra.mxu0 0.0
  %4013 = vmatprep.subr.mxu0 0.0
  %4014 = vmatpush2.msra.mxu0 0.0
  %4015 = vmatprep.subr.mxu0 0.0
  %4016 = vmatpush2.msra.mxu0 0.0
  %4017 = vmatprep.subr.mxu0 0.0
  %4018 = vmatpush2.msra.mxu0 0.0
  %4019 = vmatprep.subr.mxu0 0.0
  %4020 = vmatpush2.msra.mxu0 0.0
  %4021 = vmatprep.subr.mxu0 0.0
  %4022 = vmatpush2.msra.mxu0 0.0
  %4023 = vmatprep.subr.mxu0 0.0
  %4024 = vmatpush2.msra.mxu0 0.0
  %4025 = vmatprep.subr.mxu0 0.0
  %4026 = vmatpush2.msra.mxu0 0.0
  %4027 = vmatprep.mubr.f32.mxu0 0.0
  %4028 = vmatmul.mubr.f32.gmra.mxu0 %v3961
  %v4029 = vpop.f32.mrf.mxu0
  %v4030 = vadd.f32 0.0, %v4029
  %v4031 = vpop.f32.mrf.mxu0
  %v4032 = vadd.f32 0.0, %v4031
  %4033 = vdwg.mxu0
  %v4034 = vadd.f32 %v3959, %v4030
  %v4035 = vxor.u32 %v4034, 2147483648
  %v4036 = vmul.f32 %v4035, 1.442695
  %v4037 = vpow.pop %v4036
  %v4038 = vadd.f32 %v4037, 1.0
  %v4039 = vrcp.pop %v4038
  %v4040 = vmul.f32 1.0, %v4039
  %v4041 = vadd.f32 %v4032, %v3112
  %v4042 = vmul.f32 %v4040, %v4041
  %v4043 = vadd.f32 %v3960, %v4042
  %v4044 = vtanh.pop %v4043
  %v4045 = vsub.f32 1.0, %v4040
  %4047 = vrot.lane.b32.xlu0 %v4044, 64
  %v4048 = vpop.permute.xlu0 %4047
  %v4050 = vmul.f32 %v4045, %v4048
  %v4051 = vmul.f32 %v4040, %v3949
  %v4052 = vadd.f32 %v4050, %v4051
  %4054 = vrot.lane.b32.xlu0 %v4052, 64
  %v4055 = vpop.permute.xlu0 %4054
  %4057 = vst.msk [vmem:[%s9 + $0x48] sm:$0xff] %vm593, %v4055
  %v4058 = vld [vmem:[#allocation2 + $0xa0] sm:$0xff]
  %v4059 = vld [vmem:[#allocation2 + $0xa8] sm:$0xff]
  %v4060 = vld [vmem:[#allocation2 + $0x50] sm:$0xff]
  %v4061 = vld [vmem:[#allocation2 + $0x58] sm:$0xff]
  %v4062 = vsel %vm3018, %v4058, %v4060
  %v4063 = vsel %vm3019, %v4059, %v4061
  %v4064 = vsel %vm593, %v4055, 0
  %4066 = vmatprep.subr.mxu0 0.0
  %4067 = vmatpush1.msra.mxu0 0.0
  %4068 = vmatprep.subr.mxu0 0.0
  %4069 = vmatpush1.msra.mxu0 0.0
  %4070 = vmatprep.subr.mxu0 0.0
  %4071 = vmatpush1.msra.mxu0 0.0
  %4072 = vmatprep.subr.mxu0 0.0
  %4073 = vmatpush1.msra.mxu0 0.0
  %4074 = vmatprep.subr.mxu0 0.0
  %4075 = vmatpush1.msra.mxu0 0.0
  %4076 = vmatprep.subr.mxu0 0.0
  %4077 = vmatpush1.msra.mxu0 0.0
  %4078 = vmatprep.subr.mxu0 0.0
  %4079 = vmatpush1.msra.mxu0 0.0
  %4080 = vmatprep.subr.mxu0 0.0
  %4081 = vmatpush1.msra.mxu0 0.0
  %4082 = vmatprep.subr.mxu0 %v3001
  %4083 = vmatpush1.msra.mxu0 %v3000
  %4084 = vmatprep.subr.mxu0 %v2999
  %4085 = vmatpush1.msra.mxu0 %v2998
  %4086 = vmatprep.subr.mxu0 %v2997
  %4087 = vmatpush1.msra.mxu0 %v2996
  %4088 = vmatprep.subr.mxu0 %v2995
  %4089 = vmatpush1.msra.mxu0 %v2994
  %4090 = vmatprep.subr.mxu0 %v2993
  %4091 = vmatpush1.msra.mxu0 %v2992
  %4092 = vmatprep.subr.mxu0 %v2991
  %4093 = vmatpush1.msra.mxu0 %v2990
  %4094 = vmatprep.subr.mxu0 %v2989
  %4095 = vmatpush1.msra.mxu0 %v2988
  %4096 = vmatprep.subr.mxu0 %v2987
  %4097 = vmatpush1.msra.mxu0 %v2986
  %4098 = vmatprep.subr.mxu0 0.0
  %4099 = vmatpush2.msra.mxu0 0.0
  %4100 = vmatprep.subr.mxu0 0.0
  %4101 = vmatpush2.msra.mxu0 0.0
  %4102 = vmatprep.subr.mxu0 0.0
  %4103 = vmatpush2.msra.mxu0 0.0
  %4104 = vmatprep.subr.mxu0 0.0
  %4105 = vmatpush2.msra.mxu0 0.0
  %4106 = vmatprep.subr.mxu0 0.0
  %4107 = vmatpush2.msra.mxu0 0.0
  %4108 = vmatprep.subr.mxu0 0.0
  %4109 = vmatpush2.msra.mxu0 0.0
  %4110 = vmatprep.subr.mxu0 0.0
  %4111 = vmatpush2.msra.mxu0 0.0
  %4112 = vmatprep.subr.mxu0 0.0
  %4113 = vmatpush2.msra.mxu0 0.0
  %4114 = vmatprep.subr.mxu0 0.0
  %4115 = vmatpush2.msra.mxu0 0.0
  %4116 = vmatprep.subr.mxu0 0.0
  %4117 = vmatpush2.msra.mxu0 0.0
  %4118 = vmatprep.subr.mxu0 0.0
  %4119 = vmatpush2.msra.mxu0 0.0
  %4120 = vmatprep.subr.mxu0 0.0
  %4121 = vmatpush2.msra.mxu0 0.0
  %4122 = vmatprep.subr.mxu0 0.0
  %4123 = vmatpush2.msra.mxu0 0.0
  %4124 = vmatprep.subr.mxu0 0.0
  %4125 = vmatpush2.msra.mxu0 0.0
  %4126 = vmatprep.subr.mxu0 0.0
  %4127 = vmatpush2.msra.mxu0 0.0
  %4128 = vmatprep.subr.mxu0 0.0
  %4129 = vmatpush2.msra.mxu0 0.0
  %4130 = vmatprep.mubr.f32.mxu0 0.0
  %4131 = vmatmul.mubr.f32.gmra.mxu0 %v4064
  %v4132 = vpop.f32.mrf.mxu0
  %v4133 = vadd.f32 0.0, %v4132
  %v4134 = vpop.f32.mrf.mxu0
  %v4135 = vadd.f32 0.0, %v4134
  %4136 = vdwg.mxu0
  %v4137 = vadd.f32 %v4062, %v4133
  %v4138 = vxor.u32 %v4137, 2147483648
  %v4139 = vmul.f32 %v4138, 1.442695
  %v4140 = vpow.pop %v4139
  %v4141 = vadd.f32 %v4140, 1.0
  %v4142 = vrcp.pop %v4141
  %v4143 = vmul.f32 1.0, %v4142
  %v4144 = vadd.f32 %v4135, %v3112
  %v4145 = vmul.f32 %v4143, %v4144
  %v4146 = vadd.f32 %v4063, %v4145
  %v4147 = vtanh.pop %v4146
  %v4148 = vsub.f32 1.0, %v4143
  %4150 = vrot.lane.b32.xlu0 %v4147, 64
  %v4151 = vpop.permute.xlu0 %4150
  %v4153 = vmul.f32 %v4148, %v4151
  %v4154 = vmul.f32 %v4143, %v4052
  %v4155 = vadd.f32 %v4153, %v4154
  %4157 = vrot.lane.b32.xlu0 %v4155, 64
  %v4158 = vpop.permute.xlu0 %4157
  %4160 = vst.msk [vmem:[%s9 + $0x50] sm:$0xff] %vm593, %v4158
  %v4161 = vld [vmem:[#allocation2 + $0xb0] sm:$0xff]
  %v4162 = vld [vmem:[#allocation2 + $0xb8] sm:$0xff]
  %v4163 = vld [vmem:[#allocation2 + $0x40] sm:$0xff]
  %v4164 = vld [vmem:[#allocation2 + $0x48] sm:$0xff]
  %v4165 = vsel %vm3018, %v4161, %v4163
  %v4166 = vsel %vm3019, %v4162, %v4164
  %v4167 = vsel %vm593, %v4158, 0
  %4169 = vmatprep.subr.mxu0 0.0
  %4170 = vmatpush1.msra.mxu0 0.0
  %4171 = vmatprep.subr.mxu0 0.0
  %4172 = vmatpush1.msra.mxu0 0.0
  %4173 = vmatprep.subr.mxu0 0.0
  %4174 = vmatpush1.msra.mxu0 0.0
  %4175 = vmatprep.subr.mxu0 0.0
  %4176 = vmatpush1.msra.mxu0 0.0
  %4177 = vmatprep.subr.mxu0 0.0
  %4178 = vmatpush1.msra.mxu0 0.0
  %4179 = vmatprep.subr.mxu0 0.0
  %4180 = vmatpush1.msra.mxu0 0.0
  %4181 = vmatprep.subr.mxu0 0.0
  %4182 = vmatpush1.msra.mxu0 0.0
  %4183 = vmatprep.subr.mxu0 0.0
  %4184 = vmatpush1.msra.mxu0 0.0
  %4185 = vmatprep.subr.mxu0 %v3001
  %4186 = vmatpush1.msra.mxu0 %v3000
  %4187 = vmatprep.subr.mxu0 %v2999
  %4188 = vmatpush1.msra.mxu0 %v2998
  %4189 = vmatprep.subr.mxu0 %v2997
  %4190 = vmatpush1.msra.mxu0 %v2996
  %4191 = vmatprep.subr.mxu0 %v2995
  %4192 = vmatpush1.msra.mxu0 %v2994
  %4193 = vmatprep.subr.mxu0 %v2993
  %4194 = vmatpush1.msra.mxu0 %v2992
  %4195 = vmatprep.subr.mxu0 %v2991
  %4196 = vmatpush1.msra.mxu0 %v2990
  %4197 = vmatprep.subr.mxu0 %v2989
  %4198 = vmatpush1.msra.mxu0 %v2988
  %4199 = vmatprep.subr.mxu0 %v2987
  %4200 = vmatpush1.msra.mxu0 %v2986
  %4201 = vmatprep.subr.mxu0 0.0
  %4202 = vmatpush2.msra.mxu0 0.0
  %4203 = vmatprep.subr.mxu0 0.0
  %4204 = vmatpush2.msra.mxu0 0.0
  %4205 = vmatprep.subr.mxu0 0.0
  %4206 = vmatpush2.msra.mxu0 0.0
  %4207 = vmatprep.subr.mxu0 0.0
  %4208 = vmatpush2.msra.mxu0 0.0
  %4209 = vmatprep.subr.mxu0 0.0
  %4210 = vmatpush2.msra.mxu0 0.0
  %4211 = vmatprep.subr.mxu0 0.0
  %4212 = vmatpush2.msra.mxu0 0.0
  %4213 = vmatprep.subr.mxu0 0.0
  %4214 = vmatpush2.msra.mxu0 0.0
  %4215 = vmatprep.subr.mxu0 0.0
  %4216 = vmatpush2.msra.mxu0 0.0
  %4217 = vmatprep.subr.mxu0 0.0
  %4218 = vmatpush2.msra.mxu0 0.0
  %4219 = vmatprep.subr.mxu0 0.0
  %4220 = vmatpush2.msra.mxu0 0.0
  %4221 = vmatprep.subr.mxu0 0.0
  %4222 = vmatpush2.msra.mxu0 0.0
  %4223 = vmatprep.subr.mxu0 0.0
  %4224 = vmatpush2.msra.mxu0 0.0
  %4225 = vmatprep.subr.mxu0 0.0
  %4226 = vmatpush2.msra.mxu0 0.0
  %4227 = vmatprep.subr.mxu0 0.0
  %4228 = vmatpush2.msra.mxu0 0.0
  %4229 = vmatprep.subr.mxu0 0.0
  %4230 = vmatpush2.msra.mxu0 0.0
  %4231 = vmatprep.subr.mxu0 0.0
  %4232 = vmatpush2.msra.mxu0 0.0
  %4233 = vmatprep.mubr.f32.mxu0 0.0
  %4234 = vmatmul.mubr.f32.gmra.mxu0 %v4167
  %v4235 = vpop.f32.mrf.mxu0
  %v4236 = vadd.f32 0.0, %v4235
  %v4237 = vpop.f32.mrf.mxu0
  %v4238 = vadd.f32 0.0, %v4237
  %4239 = vdwg.mxu0
  %v4240 = vadd.f32 %v4165, %v4236
  %v4241 = vxor.u32 %v4240, 2147483648
  %v4242 = vmul.f32 %v4241, 1.442695
  %v4243 = vpow.pop %v4242
  %v4244 = vadd.f32 %v4243, 1.0
  %v4245 = vrcp.pop %v4244
  %v4246 = vmul.f32 1.0, %v4245
  %v4247 = vadd.f32 %v4238, %v3112
  %v4248 = vmul.f32 %v4246, %v4247
  %v4249 = vadd.f32 %v4166, %v4248
  %v4250 = vtanh.pop %v4249
  %v4251 = vsub.f32 1.0, %v4246
  %4253 = vrot.lane.b32.xlu0 %v4250, 64
  %v4254 = vpop.permute.xlu0 %4253
  %v4256 = vmul.f32 %v4251, %v4254
  %v4257 = vmul.f32 %v4246, %v4155
  %v4258 = vadd.f32 %v4256, %v4257
  %4260 = vrot.lane.b32.xlu0 %v4258, 64
  %v4261 = vpop.permute.xlu0 %4260
  %4263 = vst.msk [vmem:[%s9 + $0x58] sm:$0xff] %vm593, %v4261
  %v4264 = vld [vmem:[#allocation2 + $0xc0] sm:$0xff]
  %v4265 = vld [vmem:[#allocation2 + $0xc8] sm:$0xff]
  %v4266 = vld [vmem:[#allocation2 + $0x30] sm:$0xff]
  %v4267 = vld [vmem:[#allocation2 + $0x38] sm:$0xff]
  %v4268 = vsel %vm3018, %v4264, %v4266
  %v4269 = vsel %vm3019, %v4265, %v4267
  %v4270 = vsel %vm593, %v4261, 0
  %4272 = vmatprep.subr.mxu0 0.0
  %4273 = vmatpush1.msra.mxu0 0.0
  %4274 = vmatprep.subr.mxu0 0.0
  %4275 = vmatpush1.msra.mxu0 0.0
  %4276 = vmatprep.subr.mxu0 0.0
  %4277 = vmatpush1.msra.mxu0 0.0
  %4278 = vmatprep.subr.mxu0 0.0
  %4279 = vmatpush1.msra.mxu0 0.0
  %4280 = vmatprep.subr.mxu0 0.0
  %4281 = vmatpush1.msra.mxu0 0.0
  %4282 = vmatprep.subr.mxu0 0.0
  %4283 = vmatpush1.msra.mxu0 0.0
  %4284 = vmatprep.subr.mxu0 0.0
  %4285 = vmatpush1.msra.mxu0 0.0
  %4286 = vmatprep.subr.mxu0 0.0
  %4287 = vmatpush1.msra.mxu0 0.0
  %4288 = vmatprep.subr.mxu0 %v3001
  %4289 = vmatpush1.msra.mxu0 %v3000
  %4290 = vmatprep.subr.mxu0 %v2999
  %4291 = vmatpush1.msra.mxu0 %v2998
  %4292 = vmatprep.subr.mxu0 %v2997
  %4293 = vmatpush1.msra.mxu0 %v2996
  %4294 = vmatprep.subr.mxu0 %v2995
  %4295 = vmatpush1.msra.mxu0 %v2994
  %4296 = vmatprep.subr.mxu0 %v2993
  %4297 = vmatpush1.msra.mxu0 %v2992
  %4298 = vmatprep.subr.mxu0 %v2991
  %4299 = vmatpush1.msra.mxu0 %v2990
  %4300 = vmatprep.subr.mxu0 %v2989
  %4301 = vmatpush1.msra.mxu0 %v2988
  %4302 = vmatprep.subr.mxu0 %v2987
  %4303 = vmatpush1.msra.mxu0 %v2986
  %4304 = vmatprep.subr.mxu0 0.0
  %4305 = vmatpush2.msra.mxu0 0.0
  %4306 = vmatprep.subr.mxu0 0.0
  %4307 = vmatpush2.msra.mxu0 0.0
  %4308 = vmatprep.subr.mxu0 0.0
  %4309 = vmatpush2.msra.mxu0 0.0
  %4310 = vmatprep.subr.mxu0 0.0
  %4311 = vmatpush2.msra.mxu0 0.0
  %4312 = vmatprep.subr.mxu0 0.0
  %4313 = vmatpush2.msra.mxu0 0.0
  %4314 = vmatprep.subr.mxu0 0.0
  %4315 = vmatpush2.msra.mxu0 0.0
  %4316 = vmatprep.subr.mxu0 0.0
  %4317 = vmatpush2.msra.mxu0 0.0
  %4318 = vmatprep.subr.mxu0 0.0
  %4319 = vmatpush2.msra.mxu0 0.0
  %4320 = vmatprep.subr.mxu0 0.0
  %4321 = vmatpush2.msra.mxu0 0.0
  %4322 = vmatprep.subr.mxu0 0.0
  %4323 = vmatpush2.msra.mxu0 0.0
  %4324 = vmatprep.subr.mxu0 0.0
  %4325 = vmatpush2.msra.mxu0 0.0
  %4326 = vmatprep.subr.mxu0 0.0
  %4327 = vmatpush2.msra.mxu0 0.0
  %4328 = vmatprep.subr.mxu0 0.0
  %4329 = vmatpush2.msra.mxu0 0.0
  %4330 = vmatprep.subr.mxu0 0.0
  %4331 = vmatpush2.msra.mxu0 0.0
  %4332 = vmatprep.subr.mxu0 0.0
  %4333 = vmatpush2.msra.mxu0 0.0
  %4334 = vmatprep.subr.mxu0 0.0
  %4335 = vmatpush2.msra.mxu0 0.0
  %4336 = vmatprep.mubr.f32.mxu0 0.0
  %4337 = vmatmul.mubr.f32.gmra.mxu0 %v4270
  %v4338 = vpop.f32.mrf.mxu0
  %v4339 = vadd.f32 0.0, %v4338
  %v4340 = vpop.f32.mrf.mxu0
  %v4341 = vadd.f32 0.0, %v4340
  %4342 = vdwg.mxu0
  %v4343 = vadd.f32 %v4268, %v4339
  %v4344 = vxor.u32 %v4343, 2147483648
  %v4345 = vmul.f32 %v4344, 1.442695
  %v4346 = vpow.pop %v4345
  %v4347 = vadd.f32 %v4346, 1.0
  %v4348 = vrcp.pop %v4347
  %v4349 = vmul.f32 1.0, %v4348
  %v4350 = vadd.f32 %v4341, %v3112
  %v4351 = vmul.f32 %v4349, %v4350
  %v4352 = vadd.f32 %v4269, %v4351
  %v4353 = vtanh.pop %v4352
  %v4354 = vsub.f32 1.0, %v4349
  %4356 = vrot.lane.b32.xlu0 %v4353, 64
  %v4357 = vpop.permute.xlu0 %4356
  %v4359 = vmul.f32 %v4354, %v4357
  %v4360 = vmul.f32 %v4349, %v4258
  %v4361 = vadd.f32 %v4359, %v4360
  %4363 = vrot.lane.b32.xlu0 %v4361, 64
  %v4364 = vpop.permute.xlu0 %4363
  %4366 = vst.msk [vmem:[%s9 + $0x60] sm:$0xff] %vm593, %v4364
  %v4367 = vld [vmem:[#allocation2 + $0xd0] sm:$0xff]
  %v4368 = vld [vmem:[#allocation2 + $0xd8] sm:$0xff]
  %v4369 = vld [vmem:[#allocation2 + $0x20] sm:$0xff]
  %v4370 = vld [vmem:[#allocation2 + $0x28] sm:$0xff]
  %v4371 = vsel %vm3018, %v4367, %v4369
  %v4372 = vsel %vm3019, %v4368, %v4370
  %v4373 = vsel %vm593, %v4364, 0
  %4375 = vmatprep.subr.mxu0 0.0
  %4376 = vmatpush1.msra.mxu0 0.0
  %4377 = vmatprep.subr.mxu0 0.0
  %4378 = vmatpush1.msra.mxu0 0.0
  %4379 = vmatprep.subr.mxu0 0.0
  %4380 = vmatpush1.msra.mxu0 0.0
  %4381 = vmatprep.subr.mxu0 0.0
  %4382 = vmatpush1.msra.mxu0 0.0
  %4383 = vmatprep.subr.mxu0 0.0
  %4384 = vmatpush1.msra.mxu0 0.0
  %4385 = vmatprep.subr.mxu0 0.0
  %4386 = vmatpush1.msra.mxu0 0.0
  %4387 = vmatprep.subr.mxu0 0.0
  %4388 = vmatpush1.msra.mxu0 0.0
  %4389 = vmatprep.subr.mxu0 0.0
  %4390 = vmatpush1.msra.mxu0 0.0
  %4391 = vmatprep.subr.mxu0 %v3001
  %4392 = vmatpush1.msra.mxu0 %v3000
  %4393 = vmatprep.subr.mxu0 %v2999
  %4394 = vmatpush1.msra.mxu0 %v2998
  %4395 = vmatprep.subr.mxu0 %v2997
  %4396 = vmatpush1.msra.mxu0 %v2996
  %4397 = vmatprep.subr.mxu0 %v2995
  %4398 = vmatpush1.msra.mxu0 %v2994
  %4399 = vmatprep.subr.mxu0 %v2993
  %4400 = vmatpush1.msra.mxu0 %v2992
  %4401 = vmatprep.subr.mxu0 %v2991
  %4402 = vmatpush1.msra.mxu0 %v2990
  %4403 = vmatprep.subr.mxu0 %v2989
  %4404 = vmatpush1.msra.mxu0 %v2988
  %4405 = vmatprep.subr.mxu0 %v2987
  %4406 = vmatpush1.msra.mxu0 %v2986
  %4407 = vmatprep.subr.mxu0 0.0
  %4408 = vmatpush2.msra.mxu0 0.0
  %4409 = vmatprep.subr.mxu0 0.0
  %4410 = vmatpush2.msra.mxu0 0.0
  %4411 = vmatprep.subr.mxu0 0.0
  %4412 = vmatpush2.msra.mxu0 0.0
  %4413 = vmatprep.subr.mxu0 0.0
  %4414 = vmatpush2.msra.mxu0 0.0
  %4415 = vmatprep.subr.mxu0 0.0
  %4416 = vmatpush2.msra.mxu0 0.0
  %4417 = vmatprep.subr.mxu0 0.0
  %4418 = vmatpush2.msra.mxu0 0.0
  %4419 = vmatprep.subr.mxu0 0.0
  %4420 = vmatpush2.msra.mxu0 0.0
  %4421 = vmatprep.subr.mxu0 0.0
  %4422 = vmatpush2.msra.mxu0 0.0
  %4423 = vmatprep.subr.mxu0 0.0
  %4424 = vmatpush2.msra.mxu0 0.0
  %4425 = vmatprep.subr.mxu0 0.0
  %4426 = vmatpush2.msra.mxu0 0.0
  %4427 = vmatprep.subr.mxu0 0.0
  %4428 = vmatpush2.msra.mxu0 0.0
  %4429 = vmatprep.subr.mxu0 0.0
  %4430 = vmatpush2.msra.mxu0 0.0
  %4431 = vmatprep.subr.mxu0 0.0
  %4432 = vmatpush2.msra.mxu0 0.0
  %4433 = vmatprep.subr.mxu0 0.0
  %4434 = vmatpush2.msra.mxu0 0.0
  %4435 = vmatprep.subr.mxu0 0.0
  %4436 = vmatpush2.msra.mxu0 0.0
  %4437 = vmatprep.subr.mxu0 0.0
  %4438 = vmatpush2.msra.mxu0 0.0
  %4439 = vmatprep.mubr.f32.mxu0 0.0
  %4440 = vmatmul.mubr.f32.gmra.mxu0 %v4373
  %v4441 = vpop.f32.mrf.mxu0
  %v4442 = vadd.f32 0.0, %v4441
  %v4443 = vpop.f32.mrf.mxu0
  %v4444 = vadd.f32 0.0, %v4443
  %4445 = vdwg.mxu0
  %v4446 = vadd.f32 %v4371, %v4442
  %v4447 = vxor.u32 %v4446, 2147483648
  %v4448 = vmul.f32 %v4447, 1.442695
  %v4449 = vpow.pop %v4448
  %v4450 = vadd.f32 %v4449, 1.0
  %v4451 = vrcp.pop %v4450
  %v4452 = vmul.f32 1.0, %v4451
  %v4453 = vadd.f32 %v4444, %v3112
  %v4454 = vmul.f32 %v4452, %v4453
  %v4455 = vadd.f32 %v4372, %v4454
  %v4456 = vtanh.pop %v4455
  %v4457 = vsub.f32 1.0, %v4452
  %4459 = vrot.lane.b32.xlu0 %v4456, 64
  %v4460 = vpop.permute.xlu0 %4459
  %v4462 = vmul.f32 %v4457, %v4460
  %v4463 = vmul.f32 %v4452, %v4361
  %v4464 = vadd.f32 %v4462, %v4463
  %4466 = vrot.lane.b32.xlu0 %v4464, 64
  %v4467 = vpop.permute.xlu0 %4466
  %4469 = vst.msk [vmem:[%s9 + $0x68] sm:$0xff] %vm593, %v4467
  %v4470 = vld [vmem:[#allocation2 + $0xe0] sm:$0xff]
  %v4471 = vld [vmem:[#allocation2 + $0xe8] sm:$0xff]
  %v4472 = vld [vmem:[#allocation2 + $0x10] sm:$0xff]
  %v4473 = vld [vmem:[#allocation2 + $0x18] sm:$0xff]
  %v4474 = vsel %vm3018, %v4470, %v4472
  %v4475 = vsel %vm3019, %v4471, %v4473
  %v4476 = vsel %vm593, %v4467, 0
  %4478 = vmatprep.subr.mxu0 0.0
  %4479 = vmatpush1.msra.mxu0 0.0
  %4480 = vmatprep.subr.mxu0 0.0
  %4481 = vmatpush1.msra.mxu0 0.0
  %4482 = vmatprep.subr.mxu0 0.0
  %4483 = vmatpush1.msra.mxu0 0.0
  %4484 = vmatprep.subr.mxu0 0.0
  %4485 = vmatpush1.msra.mxu0 0.0
  %4486 = vmatprep.subr.mxu0 0.0
  %4487 = vmatpush1.msra.mxu0 0.0
  %4488 = vmatprep.subr.mxu0 0.0
  %4489 = vmatpush1.msra.mxu0 0.0
  %4490 = vmatprep.subr.mxu0 0.0
  %4491 = vmatpush1.msra.mxu0 0.0
  %4492 = vmatprep.subr.mxu0 0.0
  %4493 = vmatpush1.msra.mxu0 0.0
  %4494 = vmatprep.subr.mxu0 %v3001
  %4495 = vmatpush1.msra.mxu0 %v3000
  %4496 = vmatprep.subr.mxu0 %v2999
  %4497 = vmatpush1.msra.mxu0 %v2998
  %4498 = vmatprep.subr.mxu0 %v2997
  %4499 = vmatpush1.msra.mxu0 %v2996
  %4500 = vmatprep.subr.mxu0 %v2995
  %4501 = vmatpush1.msra.mxu0 %v2994
  %4502 = vmatprep.subr.mxu0 %v2993
  %4503 = vmatpush1.msra.mxu0 %v2992
  %4504 = vmatprep.subr.mxu0 %v2991
  %4505 = vmatpush1.msra.mxu0 %v2990
  %4506 = vmatprep.subr.mxu0 %v2989
  %4507 = vmatpush1.msra.mxu0 %v2988
  %4508 = vmatprep.subr.mxu0 %v2987
  %4509 = vmatpush1.msra.mxu0 %v2986
  %4510 = vmatprep.subr.mxu0 0.0
  %4511 = vmatpush2.msra.mxu0 0.0
  %4512 = vmatprep.subr.mxu0 0.0
  %4513 = vmatpush2.msra.mxu0 0.0
  %4514 = vmatprep.subr.mxu0 0.0
  %4515 = vmatpush2.msra.mxu0 0.0
  %4516 = vmatprep.subr.mxu0 0.0
  %4517 = vmatpush2.msra.mxu0 0.0
  %4518 = vmatprep.subr.mxu0 0.0
  %4519 = vmatpush2.msra.mxu0 0.0
  %4520 = vmatprep.subr.mxu0 0.0
  %4521 = vmatpush2.msra.mxu0 0.0
  %4522 = vmatprep.subr.mxu0 0.0
  %4523 = vmatpush2.msra.mxu0 0.0
  %4524 = vmatprep.subr.mxu0 0.0
  %4525 = vmatpush2.msra.mxu0 0.0
  %4526 = vmatprep.subr.mxu0 0.0
  %4527 = vmatpush2.msra.mxu0 0.0
  %4528 = vmatprep.subr.mxu0 0.0
  %4529 = vmatpush2.msra.mxu0 0.0
  %4530 = vmatprep.subr.mxu0 0.0
  %4531 = vmatpush2.msra.mxu0 0.0
  %4532 = vmatprep.subr.mxu0 0.0
  %4533 = vmatpush2.msra.mxu0 0.0
  %4534 = vmatprep.subr.mxu0 0.0
  %4535 = vmatpush2.msra.mxu0 0.0
  %4536 = vmatprep.subr.mxu0 0.0
  %4537 = vmatpush2.msra.mxu0 0.0
  %4538 = vmatprep.subr.mxu0 0.0
  %4539 = vmatpush2.msra.mxu0 0.0
  %4540 = vmatprep.subr.mxu0 0.0
  %4541 = vmatpush2.msra.mxu0 0.0
  %4542 = vmatprep.mubr.f32.mxu0 0.0
  %4543 = vmatmul.mubr.f32.gmra.mxu0 %v4476
  %v4544 = vpop.f32.mrf.mxu0
  %v4545 = vadd.f32 0.0, %v4544
  %v4546 = vpop.f32.mrf.mxu0
  %v4547 = vadd.f32 0.0, %v4546
  %4548 = vdwg.mxu0
  %v4549 = vadd.f32 %v4474, %v4545
  %v4550 = vxor.u32 %v4549, 2147483648
  %v4551 = vmul.f32 %v4550, 1.442695
  %v4552 = vpow.pop %v4551
  %v4553 = vadd.f32 %v4552, 1.0
  %v4554 = vrcp.pop %v4553
  %v4555 = vmul.f32 1.0, %v4554
  %v4556 = vadd.f32 %v4547, %v3112
  %v4557 = vmul.f32 %v4555, %v4556
  %v4558 = vadd.f32 %v4475, %v4557
  %v4559 = vtanh.pop %v4558
  %v4560 = vsub.f32 1.0, %v4555
  %4562 = vrot.lane.b32.xlu0 %v4559, 64
  %v4563 = vpop.permute.xlu0 %4562
  %v4565 = vmul.f32 %v4560, %v4563
  %v4566 = vmul.f32 %v4555, %v4464
  %v4567 = vadd.f32 %v4565, %v4566
  %4569 = vrot.lane.b32.xlu0 %v4567, 64
  %v4570 = vpop.permute.xlu0 %4569
  %4572 = vst.msk [vmem:[%s9 + $0x70] sm:$0xff] %vm593, %v4570
  %v4573 = vld [vmem:[#allocation2 + $0xf0] sm:$0xff]
  %v4574 = vld [vmem:[#allocation2 + $0xf8] sm:$0xff]
  %v4575 = vld [vmem:[#allocation2] sm:$0xff]
  %v4576 = vld [vmem:[#allocation2 + $0x8] sm:$0xff]
  %v4577 = vsel %vm3018, %v4573, %v4575
  %v4578 = vsel %vm3019, %v4574, %v4576
  %v4579 = vsel %vm593, %v4570, 0
  %4581 = vmatprep.subr.mxu0 0.0
  %4582 = vmatpush1.msra.mxu0 0.0
  %4583 = vmatprep.subr.mxu0 0.0
  %4584 = vmatpush1.msra.mxu0 0.0
  %4585 = vmatprep.subr.mxu0 0.0
  %4586 = vmatpush1.msra.mxu0 0.0
  %4587 = vmatprep.subr.mxu0 0.0
  %4588 = vmatpush1.msra.mxu0 0.0
  %4589 = vmatprep.subr.mxu0 0.0
  %4590 = vmatpush1.msra.mxu0 0.0
  %4591 = vmatprep.subr.mxu0 0.0
  %4592 = vmatpush1.msra.mxu0 0.0
  %4593 = vmatprep.subr.mxu0 0.0
  %4594 = vmatpush1.msra.mxu0 0.0
  %4595 = vmatprep.subr.mxu0 0.0
  %4596 = vmatpush1.msra.mxu0 0.0
  %4597 = vmatprep.subr.mxu0 %v3001
  %4598 = vmatpush1.msra.mxu0 %v3000
  %4599 = vmatprep.subr.mxu0 %v2999
  %4600 = vmatpush1.msra.mxu0 %v2998
  %4601 = vmatprep.subr.mxu0 %v2997
  %4602 = vmatpush1.msra.mxu0 %v2996
  %4603 = vmatprep.subr.mxu0 %v2995
  %4604 = vmatpush1.msra.mxu0 %v2994
  %4605 = vmatprep.subr.mxu0 %v2993
  %4606 = vmatpush1.msra.mxu0 %v2992
  %4607 = vmatprep.subr.mxu0 %v2991
  %4608 = vmatpush1.msra.mxu0 %v2990
  %4609 = vmatprep.subr.mxu0 %v2989
  %4610 = vmatpush1.msra.mxu0 %v2988
  %4611 = vmatprep.subr.mxu0 %v2987
  %4612 = vmatpush1.msra.mxu0 %v2986
  %4613 = vmatprep.subr.mxu0 0.0
  %4614 = vmatpush2.msra.mxu0 0.0
  %4615 = vmatprep.subr.mxu0 0.0
  %4616 = vmatpush2.msra.mxu0 0.0
  %4617 = vmatprep.subr.mxu0 0.0
  %4618 = vmatpush2.msra.mxu0 0.0
  %4619 = vmatprep.subr.mxu0 0.0
  %4620 = vmatpush2.msra.mxu0 0.0
  %4621 = vmatprep.subr.mxu0 0.0
  %4622 = vmatpush2.msra.mxu0 0.0
  %4623 = vmatprep.subr.mxu0 0.0
  %4624 = vmatpush2.msra.mxu0 0.0
  %4625 = vmatprep.subr.mxu0 0.0
  %4626 = vmatpush2.msra.mxu0 0.0
  %4627 = vmatprep.subr.mxu0 0.0
  %4628 = vmatpush2.msra.mxu0 0.0
  %4629 = vmatprep.subr.mxu0 0.0
  %4630 = vmatpush2.msra.mxu0 0.0
  %4631 = vmatprep.subr.mxu0 0.0
  %4632 = vmatpush2.msra.mxu0 0.0
  %4633 = vmatprep.subr.mxu0 0.0
  %4634 = vmatpush2.msra.mxu0 0.0
  %4635 = vmatprep.subr.mxu0 0.0
  %4636 = vmatpush2.msra.mxu0 0.0
  %4637 = vmatprep.subr.mxu0 0.0
  %4638 = vmatpush2.msra.mxu0 0.0
  %4639 = vmatprep.subr.mxu0 0.0
  %4640 = vmatpush2.msra.mxu0 0.0
  %4641 = vmatprep.subr.mxu0 0.0
  %4642 = vmatpush2.msra.mxu0 0.0
  %4643 = vmatprep.subr.mxu0 0.0
  %4644 = vmatpush2.msra.mxu0 0.0
  %4645 = vmatprep.mubr.f32.mxu0 0.0
  %4646 = vmatmul.mubr.f32.gmra.mxu0 %v4579
  %v4647 = vpop.f32.mrf.mxu0
  %v4648 = vadd.f32 0.0, %v4647
  %v4649 = vpop.f32.mrf.mxu0
  %v4650 = vadd.f32 0.0, %v4649
  %4651 = vdwg.mxu0
  %v4652 = vadd.f32 %v4577, %v4648
  %v4653 = vxor.u32 %v4652, 2147483648
  %v4654 = vmul.f32 %v4653, 1.442695
  %v4655 = vpow.pop %v4654
  %v4656 = vadd.f32 %v4655, 1.0
  %v4657 = vrcp.pop %v4656
  %v4658 = vmul.f32 1.0, %v4657
  %v4659 = vadd.f32 %v4650, %v3112
  %v4660 = vmul.f32 %v4658, %v4659
  %v4661 = vadd.f32 %v4578, %v4660
  %v4662 = vtanh.pop %v4661
  %v4663 = vsub.f32 1.0, %v4658
  %4665 = vrot.lane.b32.xlu0 %v4662, 64
  %v4666 = vpop.permute.xlu0 %4665
  %v4668 = vmul.f32 %v4663, %v4666
  %v4669 = vmul.f32 %v4658, %v4567
  %v4670 = vadd.f32 %v4668, %v4669
  %4672 = vrot.lane.b32.xlu0 %v4670, 64
  %v4673 = vpop.permute.xlu0 %4672
  %4675 = vst.msk [vmem:[%s9 + $0x78] sm:$0xff] %vm593, %v4673
  // Predicated region
  $region38: #{tpu_custom_call.1} parent=0 // pred_check
    _
  $region39: #{tpu_custom_call.1} parent=0 // pred_check_branch
    %4677 = sbr.rel (0) target = $region41
  $region40: #{tpu_custom_call.1} parent=0 // pred_region
    _
  $region41: #{tpu_custom_call.1} parent=0 // pred_fallthru
    _
  // Predicated region
  $region42: #{tpu_custom_call.1} parent=0 // pred_check
    _
  $region43: #{tpu_custom_call.1} parent=0 // pred_check_branch
    %4679 = sbr.rel (0) target = $region45
  $region44: #{tpu_custom_call.1} parent=0 // pred_region
    _
  $region45: #{tpu_custom_call.1} parent=0 // pred_fallthru
    _

</llo_original>
